<compile_context>
chip_gen: v7x
topology: tpu7x:2x2x1
jax: 0.10.0
libtpu: 0.0.40
codegen_flags: <defaults>
</compile_context>

<pallas_src>
import functools
import math

import jax
import jax.numpy as jnp
from jax import lax
from jax.experimental import pallas as pl
from jax.experimental.pallas import tpu as pltpu


def _round_up(x, m):
    return (x + m - 1) // m * m


# ----------------------------------------------------------------------------
# Flat-canvas geometry.
#
# Per image, activations live as a (Cp, Lp) bf16 canvas:
#   canvas[c, C0 + p] = spatially zero-padded image, flattened row-major
#                       (p in [0, hp*wp)), channels zero-padded to Cp;
#   everything outside [C0, C0 + hp*wp) is zero.
# A 3x3 / pad-1 conv output at canvas position j only reads canvas positions
# j + d with d in [-head, +head], head = pad*wp + pad, so a 128-lane lead /
# tail zero zone keeps every shifted tap view in bounds while C0 and Mt stay
# multiples of 128 (lane-aligned compute window and stores).
# ----------------------------------------------------------------------------
def _chain_geometry(H, W, pad, k):
    wp, hp = W + 2 * pad, H + 2 * pad
    P = hp * wp
    head = pad * wp + pad                 # flat offset of first valid output
    C0 = 128                              # lane-aligned start of the window
    assert head <= C0, "spatial width too large for the 128-lane lead zone"
    Mt = _round_up(max(P - head, 1), 128)  # compute-window width (lanes)
    Lp = _round_up(C0 + Mt + head, 128)    # total canvas width (lanes)
    return wp, hp, P, head, C0, Mt, Lp


# ----------------------------------------------------------------------------
# Pallas kernel: fused chain of "same" Conv2d + (bias+BN as scale/shift) +
# optional ReLU layers on the (channels-sublane, flat-space-lane) canvas.
# ----------------------------------------------------------------------------
def _conv_chain_kernel(x_ref, w_ref, ss_ref, o_ref, *, relus, k, pad,
                       H, W, wp, C0, Mt, Lp):
    # x_ref : (1, Cp, Lp)       bf16  input canvas for this image
    # w_ref : (L, Cp, k*k*Cp)   bf16  per-layer stacked tap weights (resident)
    # ss_ref: (L, Cp, 2)        f32   per-layer fused (scale, shift)
    # o_ref : (1, Cp, Lp)       bf16  output canvas (next chain ready)
    Cp = x_ref.shape[1]
    L = w_ref.shape[0]

    # In-kernel validity mask of the Mt-wide window (window index i == padded
    # flat position p).  Float decomposition (exact at these sizes) avoids
    # vector integer div/mod.
    ii = lax.broadcasted_iota(jnp.int32, (1, Mt), 1).astype(jnp.float32)
    row = jnp.floor(ii / float(wp))
    col = ii - row * float(wp)
    valid = ((row >= float(pad)) & (row < float(pad + H)) &
             (col >= float(pad)) & (col < float(pad + W)))

    zero_lead = jnp.zeros((Cp, C0), jnp.bfloat16)
    zero_tail = jnp.zeros((Cp, Lp - C0 - Mt), jnp.bfloat16)

    # Tap start offsets (row-major k x k stencil) relative to the window.
    offs = [C0 + (dy - pad) * wp + (dx - pad)
            for dy in range(k) for dx in range(k)]

    canvas = x_ref[0]                                   # (Cp, Lp) bf16
    for l in range(L):
        # In-VMEM im2col: stack the k*k shifted views along the contraction
        # axis -> one MXU matmul per layer (bf16 x bf16, f32 accumulate).
        xs = jnp.concatenate([canvas[:, o:o + Mt] for o in offs], axis=0)
        acc = jnp.dot(w_ref[l], xs, preferred_element_type=jnp.float32)

        # f32 epilogue: fused conv-bias + BatchNorm scale/shift, optional
        # ReLU, then zero the padding ring / wrap-around columns so they act
        # as the next layer's zero padding.
        ssl = ss_ref[l]                                 # (Cp, 2) f32
        y = acc * ssl[:, 0:1] + ssl[:, 1:2]
        if relus[l]:
            y = jnp.maximum(y, 0.0)
        y = jnp.where(valid, y, 0.0).astype(jnp.bfloat16)

        # Rebuild the full canvas from lane-aligned 128-multiple pieces.
        canvas = jnp.concatenate([zero_lead, y, zero_tail], axis=1)

    o_ref[0] = canvas                                   # one full-row store


def _fused_conv_chain(canvas, w_stack, ss_stack, relus, *, k, pad, H, W,
                      wp, C0, Mt, Lp):
    N, Cp, _ = canvas.shape
    L = w_stack.shape[0]
    kern = functools.partial(_conv_chain_kernel, relus=tuple(relus), k=k,
                             pad=pad, H=H, W=W, wp=wp, C0=C0, Mt=Mt, Lp=Lp)
    return pl.pallas_call(
        kern,
        out_shape=jax.ShapeDtypeStruct((N, Cp, Lp), jnp.bfloat16),
        grid_spec=pltpu.PrefetchScalarGridSpec(
            num_scalar_prefetch=0,
            grid=(N,),                         # one whole image per grid step
            in_specs=[
                pl.BlockSpec((1, Cp, Lp), lambda n: (n, 0, 0)),
                pl.BlockSpec((L, Cp, k * k * Cp), lambda n: (0, 0, 0)),
                pl.BlockSpec((L, Cp, 2), lambda n: (0, 0, 0)),
            ],
            out_specs=pl.BlockSpec((1, Cp, Lp), lambda n: (n, 0, 0)),
        ),
        compiler_params=pltpu.CompilerParams(
            dimension_semantics=("parallel",)),
    )(canvas, w_stack, ss_stack)


# ----------------------------------------------------------------------------
# Canvas <-> NCHW conversion (only at chain boundaries).
# ----------------------------------------------------------------------------
def _to_canvas(x_nchw, Cp, pad, C0, Lp):
    N, C, H, W = x_nchw.shape
    xp = jnp.pad(x_nchw, ((0, 0), (0, Cp - C), (pad, pad), (pad, pad)))
    flat = xp.reshape(N, Cp, -1)                       # (N, Cp, hp*wp)
    canvas = jnp.pad(flat, ((0, 0), (0, 0), (C0, Lp - C0 - flat.shape[-1])))
    return canvas.astype(jnp.bfloat16)


def _from_canvas(canvas, Cout, H, W, pad, C0):
    N = canvas.shape[0]
    wp, hp = W + 2 * pad, H + 2 * pad
    flat = canvas[:, :Cout, C0:C0 + hp * wp].astype(jnp.float32)
    img = flat.reshape(N, Cout, hp, wp)
    return img[:, :, pad:pad + H, pad:pad + W]          # NCHW


# ----------------------------------------------------------------------------
# Layers
# ----------------------------------------------------------------------------
class ConvBNAct:
    """nn.Conv2d(k, pad, bias) [+ nn.BatchNorm2d (eval)] [+ nn.ReLU]."""

    def __init__(self, cin, cout, k, pad, key, bn=True, relu=True,
                 use_bias=True):
        self.cin, self.cout, self.k, self.pad = cin, cout, k, pad
        self.bn, self.relu = bn, relu
        kw_, kb_ = jax.random.split(key)
        bound = 1.0 / math.sqrt(cin * k * k)
        self.weight = jax.random.uniform(kw_, (cout, cin, k, k),
                                         minval=-bound, maxval=bound,
                                         dtype=jnp.float32)
        if use_bias:
            self.bias = jax.random.uniform(kb_, (cout,), minval=-bound,
                                           maxval=bound, dtype=jnp.float32)
        else:
            self.bias = jnp.zeros((cout,), jnp.float32)
        # TODO(synk): BatchNorm2d implemented in inference mode (running
        # stats); training-mode batch statistics are not implemented.
        self.gamma = jnp.ones((cout,), jnp.float32)
        self.beta = jnp.zeros((cout,), jnp.float32)
        self.mean = jnp.zeros((cout,), jnp.float32)
        self.var = jnp.ones((cout,), jnp.float32)
        self.eps = 1e-5

    def scale_shift(self):
        if self.bn:
            s = self.gamma * lax.rsqrt(self.var + self.eps)
            t = (self.bias - self.mean) * s + self.beta
        else:
            s = jnp.ones((self.cout,), jnp.float32)
            t = self.bias
        return s, t

    def stacked_taps(self, Cp):
        # (Cout, Cin, kh, kw) -> (Cp, k*k*Cp): contraction axis is
        # [tap*Cp + cin] to match the in-kernel stacking; channels zero-padded
        # to the chain-wide Cp; bf16 for the MXU.
        w = jnp.transpose(self.weight, (0, 2, 3, 1))     # (Cout, k, k, Cin)
        w = jnp.pad(w, ((0, Cp - self.cout), (0, 0), (0, 0),
                        (0, Cp - self.cin)))
        return w.reshape(Cp, self.k * self.k * Cp).astype(jnp.bfloat16)

    def padded_ss(self, Cp):
        s, t = self.scale_shift()
        ss = jnp.stack([s, t], axis=-1)                  # (Cout, 2)
        return jnp.pad(ss, ((0, Cp - self.cout), (0, 0)))  # (Cp, 2)

    def reference(self, x_nchw):
        # Pure-JAX NCHW reference (same bf16 matmul inputs, f32 accumulate).
        y = lax.conv_general_dilated(
            x_nchw.astype(jnp.bfloat16), self.weight.astype(jnp.bfloat16),
            window_strides=(1, 1), padding=[(self.pad, self.pad)] * 2,
            dimension_numbers=("NCHW", "OIHW", "NCHW"),
            preferred_element_type=jnp.float32)
        s, t = self.scale_shift()
        y = y * s[None, :, None, None] + t[None, :, None, None]
        return jnp.maximum(y, 0.0) if self.relu else y


def _apply_chain(layers, x_nchw):
    """Fused multi-layer Conv+BN+ReLU chain: one pallas_call per chain."""
    N, Cin, H, W = x_nchw.shape
    k, pad = layers[0].k, layers[0].pad
    assert all(l.k == k and l.pad == pad for l in layers)
    assert 2 * pad == k - 1, "UNet convs must be size-preserving"
    Cp = max(16, _round_up(max([Cin] + [l.cout for l in layers]), 16))
    wp, hp, P, head, C0, Mt, Lp = _chain_geometry(H, W, pad, k)
    canvas = _to_canvas(x_nchw, Cp, pad, C0, Lp)
    w_stack = jnp.stack([l.stacked_taps(Cp) for l in layers])
    ss_stack = jnp.stack([l.padded_ss(Cp) for l in layers])
    relus = tuple(bool(l.relu) for l in layers)
    out = _fused_conv_chain(canvas, w_stack, ss_stack, relus, k=k, pad=pad,
                            H=H, W=W, wp=wp, C0=C0, Mt=Mt, Lp=Lp)
    return _from_canvas(out, layers[-1].cout, H, W, pad, C0)


class UpConv2x2:
    """nn.ConvTranspose2d(cin, cout, kernel_size=2, stride=2) in NCHW."""

    def __init__(self, cin, cout, key, use_bias=True):
        kw_, kb_ = jax.random.split(key)
        bound = 1.0 / math.sqrt(cin * 4)
        self.weight = jax.random.uniform(kw_, (cin, cout, 2, 2),
                                         minval=-bound, maxval=bound,
                                         dtype=jnp.float32)
        if use_bias:
            self.bias = jax.random.uniform(kb_, (cout,), minval=-bound,
                                           maxval=bound, dtype=jnp.float32)
        else:
            self.bias = jnp.zeros((cout,), jnp.float32)

    def __call__(self, x):
        # stride-2, kernel-2 transpose conv: non-overlapping 2x2 upsample.
        y = jnp.einsum("nchw,coij->nohiwj", x, self.weight)
        N, Co, H, _, W, _ = y.shape
        return y.reshape(N, Co, H * 2, W * 2) + self.bias[None, :, None, None]


def avg_pool_nchw(x, window, stride=2):
    # nn.AvgPool2d(window, stride=2, padding=(window-1)//2), count_include_pad
    p = (window - 1) // 2
    s = lax.reduce_window(x, 0.0, lax.add,
                          (1, 1, window, window), (1, 1, stride, stride),
                          [(0, 0), (0, 0), (p, p), (p, p)])
    return s / float(window * window)


# ----------------------------------------------------------------------------
# UNet
# ----------------------------------------------------------------------------
class PallasUNet:
    def __init__(self, args, key):
        self.args = args
        nk, ks, pad, ub = (args.num_kernels, args.kernel_size, args.padding,
                           args.bias)
        keys = iter(jax.random.split(key, 64))

        self.encoder = []
        for b in range(args.num_blocks):
            layers = []
            if b == 0:
                layers.append(ConvBNAct(args.num_channels, nk, ks, pad,
                                        next(keys), bn=False, relu=True,
                                        use_bias=ub))
                for _ in range(1, args.num_enc_conv):
                    layers.append(ConvBNAct(nk, nk, ks, pad, next(keys),
                                            use_bias=ub))
            else:
                for l in range(args.num_enc_conv):
                    cin = nk * 2 ** (b - 1) if l == 0 else nk * 2 ** b
                    layers.append(ConvBNAct(cin, nk * 2 ** b, ks, pad,
                                            next(keys), use_bias=ub))
            self.encoder.append(layers)

        b = args.num_blocks - 1
        self.mid = []
        for l in range(args.num_mid_conv):
            cin = nk * 2 ** b if l == 0 else nk * 2 ** (b + 1)
            self.mid.append(ConvBNAct(cin, nk * 2 ** (b + 1), ks, pad,
                                      next(keys), use_bias=ub))

        self.upsample, self.decoder = {}, {}
        for b in range(args.num_blocks - 1, -1, -1):
            layers = []
            if b == 0:
                self.upsample[b] = UpConv2x2(nk * 2, nk, next(keys),
                                             use_bias=ub)
                for l in range(args.num_dec_conv - 1):
                    cin = nk * 2 if l == 0 else nk
                    layers.append(ConvBNAct(cin, nk, ks, pad, next(keys),
                                            use_bias=ub))
                layers.append(ConvBNAct(nk, args.num_channels, ks, pad,
                                        next(keys), bn=False, relu=False,
                                        use_bias=ub))
            else:
                self.upsample[b] = UpConv2x2(nk * 2 ** (b + 1), nk * 2 ** b,
                                             next(keys), use_bias=ub)
                for l in range(args.num_dec_conv):
                    cin = nk * 2 ** (b + 1) if l == 0 else nk * 2 ** b
                    layers.append(ConvBNAct(cin, nk * 2 ** b, ks, pad,
                                            next(keys), use_bias=ub))
            self.decoder[b] = layers

    # --- Pallas forward (NCHW in, NCHW out) ------------------------------
    @functools.partial(jax.jit, static_argnums=0)
    def __call__(self, x):
        a = self.args
        unpooled = []
        for b in range(a.num_blocks):
            xu = _apply_chain(self.encoder[b], x)
            unpooled.append(xu)
            x = avg_pool_nchw(xu, a.pool_window)
        x = _apply_chain(self.mid, x)
        for b in range(a.num_blocks - 1, -1, -1):
            x = self.upsample[b](x)
            # TODO(synk): fold upsample + skip-concat into the first decoder
            # conv (split-weight accumulated matmuls) to drop this glue.
            x = jnp.concatenate([x, unpooled[b]], axis=1)
            x = _apply_chain(self.decoder[b], x)
        return x

    # --- Pure-JAX reference ----------------------------------------------
    def reference(self, x):
        a = self.args

        def chain(layers, x):
            for layer in layers:
                x = layer.reference(x)
            # Mirror the kernel's bf16 activation hand-off at chain borders.
            return x.astype(jnp.bfloat16).astype(jnp.float32)

        unpooled = []
        for b in range(a.num_blocks):
            xu = chain(self.encoder[b], x)
            unpooled.append(xu)
            x = avg_pool_nchw(xu, a.pool_window)
        x = chain(self.mid, x)
        for b in range(a.num_blocks - 1, -1, -1):
            x = self.upsample[b](x)
            x = jnp.concatenate([x, unpooled[b]], axis=1)
            x = chain(self.decoder[b], x)
        return x


# ----------------------------------------------------------------------------
class Args:
    num_channels = 4
    num_kernels = 8
    kernel_size = 3
    padding = 1
    bias = True
    num_blocks = 2
    num_enc_conv = 2
    num_mid_conv = 2
    num_dec_conv = 2
    pool_window = 3


if __name__ == "__main__":
    root = jax.random.PRNGKey(0)
    kx, kp = jax.random.split(root)
    args = Args()

    N, C, H, W = 2, args.num_channels, 16, 16
    x = jax.random.normal(kx, (N, C, H, W), dtype=jnp.float32)

    net = PallasUNet(args, kp)
    y = net(x)
    jax.block_until_ready(y)

    y_ref = net.reference(x)
    assert y.shape == (N, args.num_channels, H, W), y.shape
    assert jnp.allclose(y, y_ref, atol=2e-2, rtol=2e-2), \
        float(jnp.max(jnp.abs(y - y_ref)))

    print("KERNEL_OK")
</pallas_src>

<mosaic_0001>
module attributes {stable_mosaic.version = 11 : i64} {
  func.func @_conv_chain_kernel(%arg0: i32, %arg1: memref<1x16x640xbf16, #tpu.memory_space<vmem>>, %arg2: memref<2x16x144xbf16, #tpu.memory_space<vmem>>, %arg3: memref<2x16x2xf32, #tpu.memory_space<vmem>>, %arg4: memref<1x16x640xbf16, #tpu.memory_space<vmem>>) attributes {dimension_semantics = [#tpu.dimension_semantics<parallel>], iteration_bounds = array<i64: 2>, scalar_prefetch = 0 : i64, scratch_operands = 0 : i64, tpu.core_type = #tpu.core_type<tc>, window_params = [{transform_indices = @transform_0, window_bounds = array<i64: 1, 16, 640>}, {pipeline_mode = #tpu.pipeline_mode<synchronous>, transform_indices = @transform_1, window_bounds = array<i64: 2, 16, 144>}, {pipeline_mode = #tpu.pipeline_mode<synchronous>, transform_indices = @transform_2, window_bounds = array<i64: 2, 16, 2>}, {transform_indices = @transform_3, window_bounds = array<i64: 1, 16, 640>}]} {
    %0 = tpu.iota {dimensions = array<i32: 1>} : vector<1x384xi32>
    %1 = arith.sitofp %0 : vector<1x384xi32> to vector<1x384xf32>
    %cst = arith.constant 1.800000e+01 : f32
    %2 = vector.broadcast %cst : f32 to vector<1x384xf32>
    %3 = arith.divf %1, %2 : vector<1x384xf32>
    %4 = math.floor %3 : vector<1x384xf32>
    %cst_0 = arith.constant 1.800000e+01 : f32
    %5 = vector.broadcast %cst_0 : f32 to vector<1x384xf32>
    %6 = arith.mulf %4, %5 : vector<1x384xf32>
    %7 = arith.subf %1, %6 : vector<1x384xf32>
    %cst_1 = arith.constant 1.000000e+00 : f32
    %8 = vector.broadcast %cst_1 : f32 to vector<1x384xf32>
    %9 = arith.cmpf oge, %4, %8 : vector<1x384xf32>
    %cst_2 = arith.constant 1.700000e+01 : f32
    %10 = vector.broadcast %cst_2 : f32 to vector<1x384xf32>
    %11 = arith.cmpf olt, %4, %10 : vector<1x384xf32>
    %12 = arith.andi %9, %11 : vector<1x384xi1>
    %cst_3 = arith.constant 1.000000e+00 : f32
    %13 = vector.broadcast %cst_3 : f32 to vector<1x384xf32>
    %14 = arith.cmpf oge, %7, %13 : vector<1x384xf32>
    %15 = arith.andi %12, %14 : vector<1x384xi1>
    %cst_4 = arith.constant 1.700000e+01 : f32
    %16 = vector.broadcast %cst_4 : f32 to vector<1x384xf32>
    %17 = arith.cmpf olt, %7, %16 : vector<1x384xf32>
    %18 = arith.andi %15, %17 : vector<1x384xi1>
    %cst_5 = arith.constant 0.000000e+00 : bf16
    %19 = vector.broadcast %cst_5 : bf16 to vector<16x128xbf16>
    %cst_6 = arith.constant 0.000000e+00 : bf16
    %20 = vector.broadcast %cst_6 : bf16 to vector<16x128xbf16>
    %c0 = arith.constant 0 : index
    %c0_7 = arith.constant 0 : index
    %c0_8 = arith.constant 0 : index
    %21 = vector.load %arg1[%c0, %c0_7, %c0_8] : memref<1x16x640xbf16, #tpu.memory_space<vmem>>, vector<1x16x640xbf16>
    %22 = vector.shape_cast %21 : vector<1x16x640xbf16> to vector<16x640xbf16>
    %23 = vector.extract_strided_slice %22 {offsets = [0, 109], sizes = [16, 384], strides = [1, 1]} : vector<16x640xbf16> to vector<16x384xbf16>
    %24 = vector.extract_strided_slice %22 {offsets = [0, 110], sizes = [16, 384], strides = [1, 1]} : vector<16x640xbf16> to vector<16x384xbf16>
    %25 = vector.extract_strided_slice %22 {offsets = [0, 111], sizes = [16, 384], strides = [1, 1]} : vector<16x640xbf16> to vector<16x384xbf16>
    %26 = vector.extract_strided_slice %22 {offsets = [0, 127], sizes = [16, 384], strides = [1, 1]} : vector<16x640xbf16> to vector<16x384xbf16>
    %27 = vector.extract_strided_slice %22 {offsets = [0, 128], sizes = [16, 384], strides = [1, 1]} : vector<16x640xbf16> to vector<16x384xbf16>
    %28 = vector.extract_strided_slice %22 {offsets = [0, 129], sizes = [16, 384], strides = [1, 1]} : vector<16x640xbf16> to vector<16x384xbf16>
    %29 = vector.extract_strided_slice %22 {offsets = [0, 145], sizes = [16, 384], strides = [1, 1]} : vector<16x640xbf16> to vector<16x384xbf16>
    %30 = vector.extract_strided_slice %22 {offsets = [0, 146], sizes = [16, 384], strides = [1, 1]} : vector<16x640xbf16> to vector<16x384xbf16>
    %31 = vector.extract_strided_slice %22 {offsets = [0, 147], sizes = [16, 384], strides = [1, 1]} : vector<16x640xbf16> to vector<16x384xbf16>
    %32 = tpu.concatenate %23, %24, %25, %26, %27, %28, %29, %30, %31 in 0 : vector<16x384xbf16>, vector<16x384xbf16>, vector<16x384xbf16>, vector<16x384xbf16>, vector<16x384xbf16>, vector<16x384xbf16>, vector<16x384xbf16>, vector<16x384xbf16>, vector<16x384xbf16> -> vector<144x384xbf16>
    %c0_9 = arith.constant 0 : index
    %c0_10 = arith.constant 0 : index
    %c0_11 = arith.constant 0 : index
    %33 = vector.load %arg2[%c0_9, %c0_10, %c0_11] : memref<2x16x144xbf16, #tpu.memory_space<vmem>>, vector<1x16x144xbf16>
    %34 = vector.shape_cast %33 : vector<1x16x144xbf16> to vector<16x144xbf16>
    %cst_12 = arith.constant dense<0.000000e+00> : vector<16x384xf32>
    %35 = tpu.matmul %34, %32, %cst_12 {dimension_numbers = #tpu.dot_dimension_numbers<[1], [0], [0], [1], [0, 0, 1, 1], [], []>} : vector<16x144xbf16>, vector<144x384xbf16>, vector<16x384xf32> -> vector<16x384xf32>
    %c0_13 = arith.constant 0 : index
    %c0_14 = arith.constant 0 : index
    %c0_15 = arith.constant 0 : index
    %36 = vector.load %arg3[%c0_13, %c0_14, %c0_15] : memref<2x16x2xf32, #tpu.memory_space<vmem>>, vector<1x16x2xf32>
    %37 = vector.shape_cast %36 : vector<1x16x2xf32> to vector<16x2xf32>
    %38 = vector.extract_strided_slice %37 {offsets = [0, 0], sizes = [16, 1], strides = [1, 1]} : vector<16x2xf32> to vector<16x1xf32>
    %39 = vector.broadcast %38 : vector<16x1xf32> to vector<16x384xf32>
    %40 = arith.mulf %35, %39 : vector<16x384xf32>
    %41 = vector.extract_strided_slice %37 {offsets = [0, 1], sizes = [16, 1], strides = [1, 1]} : vector<16x2xf32> to vector<16x1xf32>
    %42 = vector.broadcast %41 : vector<16x1xf32> to vector<16x384xf32>
    %43 = arith.addf %40, %42 : vector<16x384xf32>
    %cst_16 = arith.constant 0.000000e+00 : f32
    %44 = vector.broadcast %cst_16 : f32 to vector<16x384xf32>
    %45 = arith.maximumf %43, %44 : vector<16x384xf32>
    %cst_17 = arith.constant 0.000000e+00 : f32
    %46 = vector.shape_cast %18 : vector<1x384xi1> to vector<1x384xi1>
    %47 = vector.broadcast %46 : vector<1x384xi1> to vector<16x384xi1>
    %48 = vector.broadcast %cst_17 : f32 to vector<16x384xf32>
    %49 = arith.select %47, %45, %48 : vector<16x384xi1>, vector<16x384xf32>
    %50 = arith.truncf %49 : vector<16x384xf32> to vector<16x384xbf16>
    %51 = tpu.concatenate %19, %50, %20 in 1 : vector<16x128xbf16>, vector<16x384xbf16>, vector<16x128xbf16> -> vector<16x640xbf16>
    %52 = vector.extract_strided_slice %51 {offsets = [0, 109], sizes = [16, 384], strides = [1, 1]} : vector<16x640xbf16> to vector<16x384xbf16>
    %53 = vector.extract_strided_slice %51 {offsets = [0, 110], sizes = [16, 384], strides = [1, 1]} : vector<16x640xbf16> to vector<16x384xbf16>
    %54 = vector.extract_strided_slice %51 {offsets = [0, 111], sizes = [16, 384], strides = [1, 1]} : vector<16x640xbf16> to vector<16x384xbf16>
    %55 = vector.extract_strided_slice %51 {offsets = [0, 127], sizes = [16, 384], strides = [1, 1]} : vector<16x640xbf16> to vector<16x384xbf16>
    %56 = vector.extract_strided_slice %51 {offsets = [0, 128], sizes = [16, 384], strides = [1, 1]} : vector<16x640xbf16> to vector<16x384xbf16>
    %57 = vector.extract_strided_slice %51 {offsets = [0, 129], sizes = [16, 384], strides = [1, 1]} : vector<16x640xbf16> to vector<16x384xbf16>
    %58 = vector.extract_strided_slice %51 {offsets = [0, 145], sizes = [16, 384], strides = [1, 1]} : vector<16x640xbf16> to vector<16x384xbf16>
    %59 = vector.extract_strided_slice %51 {offsets = [0, 146], sizes = [16, 384], strides = [1, 1]} : vector<16x640xbf16> to vector<16x384xbf16>
    %60 = vector.extract_strided_slice %51 {offsets = [0, 147], sizes = [16, 384], strides = [1, 1]} : vector<16x640xbf16> to vector<16x384xbf16>
    %61 = tpu.concatenate %52, %53, %54, %55, %56, %57, %58, %59, %60 in 0 : vector<16x384xbf16>, vector<16x384xbf16>, vector<16x384xbf16>, vector<16x384xbf16>, vector<16x384xbf16>, vector<16x384xbf16>, vector<16x384xbf16>, vector<16x384xbf16>, vector<16x384xbf16> -> vector<144x384xbf16>
    %c1 = arith.constant 1 : index
    %c0_18 = arith.constant 0 : index
    %c0_19 = arith.constant 0 : index
    %62 = vector.load %arg2[%c1, %c0_18, %c0_19] : memref<2x16x144xbf16, #tpu.memory_space<vmem>>, vector<1x16x144xbf16>
    %63 = vector.shape_cast %62 : vector<1x16x144xbf16> to vector<16x144xbf16>
    %cst_20 = arith.constant dense<0.000000e+00> : vector<16x384xf32>
    %64 = tpu.matmul %63, %61, %cst_20 {dimension_numbers = #tpu.dot_dimension_numbers<[1], [0], [0], [1], [0, 0, 1, 1], [], []>} : vector<16x144xbf16>, vector<144x384xbf16>, vector<16x384xf32> -> vector<16x384xf32>
    %c1_21 = arith.constant 1 : index
    %c0_22 = arith.constant 0 : index
    %c0_23 = arith.constant 0 : index
    %65 = vector.load %arg3[%c1_21, %c0_22, %c0_23] : memref<2x16x2xf32, #tpu.memory_space<vmem>>, vector<1x16x2xf32>
    %66 = vector.shape_cast %65 : vector<1x16x2xf32> to vector<16x2xf32>
    %67 = vector.extract_strided_slice %66 {offsets = [0, 0], sizes = [16, 1], strides = [1, 1]} : vector<16x2xf32> to vector<16x1xf32>
    %68 = vector.broadcast %67 : vector<16x1xf32> to vector<16x384xf32>
    %69 = arith.mulf %64, %68 : vector<16x384xf32>
    %70 = vector.extract_strided_slice %66 {offsets = [0, 1], sizes = [16, 1], strides = [1, 1]} : vector<16x2xf32> to vector<16x1xf32>
    %71 = vector.broadcast %70 : vector<16x1xf32> to vector<16x384xf32>
    %72 = arith.addf %69, %71 : vector<16x384xf32>
    %cst_24 = arith.constant 0.000000e+00 : f32
    %73 = vector.broadcast %cst_24 : f32 to vector<16x384xf32>
    %74 = arith.maximumf %72, %73 : vector<16x384xf32>
    %cst_25 = arith.constant 0.000000e+00 : f32
    %75 = vector.shape_cast %18 : vector<1x384xi1> to vector<1x384xi1>
    %76 = vector.broadcast %75 : vector<1x384xi1> to vector<16x384xi1>
    %77 = vector.broadcast %cst_25 : f32 to vector<16x384xf32>
    %78 = arith.select %76, %74, %77 : vector<16x384xi1>, vector<16x384xf32>
    %79 = arith.truncf %78 : vector<16x384xf32> to vector<16x384xbf16>
    %80 = tpu.concatenate %19, %79, %20 in 1 : vector<16x128xbf16>, vector<16x384xbf16>, vector<16x128xbf16> -> vector<16x640xbf16>
    %c0_26 = arith.constant 0 : index
    %c0_27 = arith.constant 0 : index
    %c0_28 = arith.constant 0 : index
    %81 = vector.load %arg4[%c0_26, %c0_27, %c0_28] : memref<1x16x640xbf16, #tpu.memory_space<vmem>>, vector<1x16x640xbf16>
    %82 = vector.shape_cast %81 : vector<1x16x640xbf16> to vector<16x640xbf16>
    %83 = vector.shape_cast %80 : vector<16x640xbf16> to vector<1x16x640xbf16>
    tpu.vector_store %arg4[%c0_26, %c0_27, %c0_28], %83 {strides = array<i32>} : memref<1x16x640xbf16, #tpu.memory_space<vmem>>, vector<1x16x640xbf16>,
    return
  }
  func.func @transform_0(%arg0: i32) -> (i32, i32, i32) {
    %c0_i32 = arith.constant 0 : i32
    %c0_i32_0 = arith.constant 0 : i32
    %c0_i32_1 = arith.constant 0 : i32
    return %arg0, %c0_i32, %c0_i32_0 : i32, i32, i32
  }
  func.func @transform_1(%arg0: i32) -> (i32, i32, i32) {
    %c0_i32 = arith.constant 0 : i32
    %c0_i32_0 = arith.constant 0 : i32
    %c0_i32_1 = arith.constant 0 : i32
    %c0_i32_2 = arith.constant 0 : i32
    return %c0_i32, %c0_i32_0, %c0_i32_1 : i32, i32, i32
  }
  func.func @transform_2(%arg0: i32) -> (i32, i32, i32) {
    %c0_i32 = arith.constant 0 : i32
    %c0_i32_0 = arith.constant 0 : i32
    %c0_i32_1 = arith.constant 0 : i32
    %c0_i32_2 = arith.constant 0 : i32
    return %c0_i32, %c0_i32_0, %c0_i32_1 : i32, i32, i32
  }
  func.func @transform_3(%arg0: i32) -> (i32, i32, i32) {
    %c0_i32 = arith.constant 0 : i32
    %c0_i32_0 = arith.constant 0 : i32
    %c0_i32_1 = arith.constant 0 : i32
    return %arg0, %c0_i32, %c0_i32_0 : i32, i32, i32
  }
}

module attributes {stable_mosaic.version = 11 : i64} {
  func.func @_conv_chain_kernel(%arg0: i32, %arg1: memref<1x16x384xbf16, #tpu.memory_space<vmem>>, %arg2: memref<2x16x144xbf16, #tpu.memory_space<vmem>>, %arg3: memref<2x16x2xf32, #tpu.memory_space<vmem>>, %arg4: memref<1x16x384xbf16, #tpu.memory_space<vmem>>) attributes {dimension_semantics = [#tpu.dimension_semantics<parallel>], iteration_bounds = array<i64: 2>, scalar_prefetch = 0 : i64, scratch_operands = 0 : i64, tpu.core_type = #tpu.core_type<tc>, window_params = [{transform_indices = @transform_0, window_bounds = array<i64: 1, 16, 384>}, {pipeline_mode = #tpu.pipeline_mode<synchronous>, transform_indices = @transform_1, window_bounds = array<i64: 2, 16, 144>}, {pipeline_mode = #tpu.pipeline_mode<synchronous>, transform_indices = @transform_2, window_bounds = array<i64: 2, 16, 2>}, {transform_indices = @transform_3, window_bounds = array<i64: 1, 16, 384>}]} {
    %0 = tpu.iota {dimensions = array<i32: 1>} : vector<1x128xi32>
    %1 = arith.sitofp %0 : vector<1x128xi32> to vector<1x128xf32>
    %cst = arith.constant 1.000000e+01 : f32
    %2 = vector.broadcast %cst : f32 to vector<1x128xf32>
    %3 = arith.divf %1, %2 : vector<1x128xf32>
    %4 = math.floor %3 : vector<1x128xf32>
    %cst_0 = arith.constant 1.000000e+01 : f32
    %5 = vector.broadcast %cst_0 : f32 to vector<1x128xf32>
    %6 = arith.mulf %4, %5 : vector<1x128xf32>
    %7 = arith.subf %1, %6 : vector<1x128xf32>
    %cst_1 = arith.constant 1.000000e+00 : f32
    %8 = vector.broadcast %cst_1 : f32 to vector<1x128xf32>
    %9 = arith.cmpf oge, %4, %8 : vector<1x128xf32>
    %cst_2 = arith.constant 9.000000e+00 : f32
    %10 = vector.broadcast %cst_2 : f32 to vector<1x128xf32>
    %11 = arith.cmpf olt, %4, %10 : vector<1x128xf32>
    %12 = arith.andi %9, %11 : vector<1x128xi1>
    %cst_3 = arith.constant 1.000000e+00 : f32
    %13 = vector.broadcast %cst_3 : f32 to vector<1x128xf32>
    %14 = arith.cmpf oge, %7, %13 : vector<1x128xf32>
    %15 = arith.andi %12, %14 : vector<1x128xi1>
    %cst_4 = arith.constant 9.000000e+00 : f32
    %16 = vector.broadcast %cst_4 : f32 to vector<1x128xf32>
    %17 = arith.cmpf olt, %7, %16 : vector<1x128xf32>
    %18 = arith.andi %15, %17 : vector<1x128xi1>
    %cst_5 = arith.constant 0.000000e+00 : bf16
    %19 = vector.broadcast %cst_5 : bf16 to vector<16x128xbf16>
    %cst_6 = arith.constant 0.000000e+00 : bf16
    %20 = vector.broadcast %cst_6 : bf16 to vector<16x128xbf16>
    %c0 = arith.constant 0 : index
    %c0_7 = arith.constant 0 : index
    %c0_8 = arith.constant 0 : index
    %21 = vector.load %arg1[%c0, %c0_7, %c0_8] : memref<1x16x384xbf16, #tpu.memory_space<vmem>>, vector<1x16x384xbf16>
    %22 = vector.shape_cast %21 : vector<1x16x384xbf16> to vector<16x384xbf16>
    %23 = vector.extract_strided_slice %22 {offsets = [0, 117], sizes = [16, 128], strides = [1, 1]} : vector<16x384xbf16> to vector<16x128xbf16>
    %24 = vector.extract_strided_slice %22 {offsets = [0, 118], sizes = [16, 128], strides = [1, 1]} : vector<16x384xbf16> to vector<16x128xbf16>
    %25 = vector.extract_strided_slice %22 {offsets = [0, 119], sizes = [16, 128], strides = [1, 1]} : vector<16x384xbf16> to vector<16x128xbf16>
    %26 = vector.extract_strided_slice %22 {offsets = [0, 127], sizes = [16, 128], strides = [1, 1]} : vector<16x384xbf16> to vector<16x128xbf16>
    %27 = vector.extract_strided_slice %22 {offsets = [0, 128], sizes = [16, 128], strides = [1, 1]} : vector<16x384xbf16> to vector<16x128xbf16>
    %28 = vector.extract_strided_slice %22 {offsets = [0, 129], sizes = [16, 128], strides = [1, 1]} : vector<16x384xbf16> to vector<16x128xbf16>
    %29 = vector.extract_strided_slice %22 {offsets = [0, 137], sizes = [16, 128], strides = [1, 1]} : vector<16x384xbf16> to vector<16x128xbf16>
    %30 = vector.extract_strided_slice %22 {offsets = [0, 138], sizes = [16, 128], strides = [1, 1]} : vector<16x384xbf16> to vector<16x128xbf16>
    %31 = vector.extract_strided_slice %22 {offsets = [0, 139], sizes = [16, 128], strides = [1, 1]} : vector<16x384xbf16> to vector<16x128xbf16>
    %32 = tpu.concatenate %23, %24, %25, %26, %27, %28, %29, %30, %31 in 0 : vector<16x128xbf16>, vector<16x128xbf16>, vector<16x128xbf16>, vector<16x128xbf16>, vector<16x128xbf16>, vector<16x128xbf16>, vector<16x128xbf16>, vector<16x128xbf16>, vector<16x128xbf16> -> vector<144x128xbf16>
    %c0_9 = arith.constant 0 : index
    %c0_10 = arith.constant 0 : index
    %c0_11 = arith.constant 0 : index
    %33 = vector.load %arg2[%c0_9, %c0_10, %c0_11] : memref<2x16x144xbf16, #tpu.memory_space<vmem>>, vector<1x16x144xbf16>
    %34 = vector.shape_cast %33 : vector<1x16x144xbf16> to vector<16x144xbf16>
    %cst_12 = arith.constant dense<0.000000e+00> : vector<16x128xf32>
    %35 = tpu.matmul %34, %32, %cst_12 {dimension_numbers = #tpu.dot_dimension_numbers<[1], [0], [0], [1], [0, 0, 1, 1], [], []>} : vector<16x144xbf16>, vector<144x128xbf16>, vector<16x128xf32> -> vector<16x128xf32>
    %c0_13 = arith.constant 0 : index
    %c0_14 = arith.constant 0 : index
    %c0_15 = arith.constant 0 : index
    %36 = vector.load %arg3[%c0_13, %c0_14, %c0_15] : memref<2x16x2xf32, #tpu.memory_space<vmem>>, vector<1x16x2xf32>
    %37 = vector.shape_cast %36 : vector<1x16x2xf32> to vector<16x2xf32>
    %38 = vector.extract_strided_slice %37 {offsets = [0, 0], sizes = [16, 1], strides = [1, 1]} : vector<16x2xf32> to vector<16x1xf32>
    %39 = vector.broadcast %38 : vector<16x1xf32> to vector<16x128xf32>
    %40 = arith.mulf %35, %39 : vector<16x128xf32>
    %41 = vector.extract_strided_slice %37 {offsets = [0, 1], sizes = [16, 1], strides = [1, 1]} : vector<16x2xf32> to vector<16x1xf32>
    %42 = vector.broadcast %41 : vector<16x1xf32> to vector<16x128xf32>
    %43 = arith.addf %40, %42 : vector<16x128xf32>
    %cst_16 = arith.constant 0.000000e+00 : f32
    %44 = vector.broadcast %cst_16 : f32 to vector<16x128xf32>
    %45 = arith.maximumf %43, %44 : vector<16x128xf32>
    %cst_17 = arith.constant 0.000000e+00 : f32
    %46 = vector.shape_cast %18 : vector<1x128xi1> to vector<1x128xi1>
    %47 = vector.broadcast %46 : vector<1x128xi1> to vector<16x128xi1>
    %48 = vector.broadcast %cst_17 : f32 to vector<16x128xf32>
    %49 = arith.select %47, %45, %48 : vector<16x128xi1>, vector<16x128xf32>
    %50 = arith.truncf %49 : vector<16x128xf32> to vector<16x128xbf16>
    %51 = tpu.concatenate %19, %50, %20 in 1 : vector<16x128xbf16>, vector<16x128xbf16>, vector<16x128xbf16> -> vector<16x384xbf16>
    %52 = vector.extract_strided_slice %51 {offsets = [0, 117], sizes = [16, 128], strides = [1, 1]} : vector<16x384xbf16> to vector<16x128xbf16>
    %53 = vector.extract_strided_slice %51 {offsets = [0, 118], sizes = [16, 128], strides = [1, 1]} : vector<16x384xbf16> to vector<16x128xbf16>
    %54 = vector.extract_strided_slice %51 {offsets = [0, 119], sizes = [16, 128], strides = [1, 1]} : vector<16x384xbf16> to vector<16x128xbf16>
    %55 = vector.extract_strided_slice %51 {offsets = [0, 127], sizes = [16, 128], strides = [1, 1]} : vector<16x384xbf16> to vector<16x128xbf16>
    %56 = vector.extract_strided_slice %51 {offsets = [0, 128], sizes = [16, 128], strides = [1, 1]} : vector<16x384xbf16> to vector<16x128xbf16>
    %57 = vector.extract_strided_slice %51 {offsets = [0, 129], sizes = [16, 128], strides = [1, 1]} : vector<16x384xbf16> to vector<16x128xbf16>
    %58 = vector.extract_strided_slice %51 {offsets = [0, 137], sizes = [16, 128], strides = [1, 1]} : vector<16x384xbf16> to vector<16x128xbf16>
    %59 = vector.extract_strided_slice %51 {offsets = [0, 138], sizes = [16, 128], strides = [1, 1]} : vector<16x384xbf16> to vector<16x128xbf16>
    %60 = vector.extract_strided_slice %51 {offsets = [0, 139], sizes = [16, 128], strides = [1, 1]} : vector<16x384xbf16> to vector<16x128xbf16>
    %61 = tpu.concatenate %52, %53, %54, %55, %56, %57, %58, %59, %60 in 0 : vector<16x128xbf16>, vector<16x128xbf16>, vector<16x128xbf16>, vector<16x128xbf16>, vector<16x128xbf16>, vector<16x128xbf16>, vector<16x128xbf16>, vector<16x128xbf16>, vector<16x128xbf16> -> vector<144x128xbf16>
    %c1 = arith.constant 1 : index
    %c0_18 = arith.constant 0 : index
    %c0_19 = arith.constant 0 : index
    %62 = vector.load %arg2[%c1, %c0_18, %c0_19] : memref<2x16x144xbf16, #tpu.memory_space<vmem>>, vector<1x16x144xbf16>
    %63 = vector.shape_cast %62 : vector<1x16x144xbf16> to vector<16x144xbf16>
    %cst_20 = arith.constant dense<0.000000e+00> : vector<16x128xf32>
    %64 = tpu.matmul %63, %61, %cst_20 {dimension_numbers = #tpu.dot_dimension_numbers<[1], [0], [0], [1], [0, 0, 1, 1], [], []>} : vector<16x144xbf16>, vector<144x128xbf16>, vector<16x128xf32> -> vector<16x128xf32>
    %c1_21 = arith.constant 1 : index
    %c0_22 = arith.constant 0 : index
    %c0_23 = arith.constant 0 : index
    %65 = vector.load %arg3[%c1_21, %c0_22, %c0_23] : memref<2x16x2xf32, #tpu.memory_space<vmem>>, vector<1x16x2xf32>
    %66 = vector.shape_cast %65 : vector<1x16x2xf32> to vector<16x2xf32>
    %67 = vector.extract_strided_slice %66 {offsets = [0, 0], sizes = [16, 1], strides = [1, 1]} : vector<16x2xf32> to vector<16x1xf32>
    %68 = vector.broadcast %67 : vector<16x1xf32> to vector<16x128xf32>
    %69 = arith.mulf %64, %68 : vector<16x128xf32>
    %70 = vector.extract_strided_slice %66 {offsets = [0, 1], sizes = [16, 1], strides = [1, 1]} : vector<16x2xf32> to vector<16x1xf32>
    %71 = vector.broadcast %70 : vector<16x1xf32> to vector<16x128xf32>
    %72 = arith.addf %69, %71 : vector<16x128xf32>
    %cst_24 = arith.constant 0.000000e+00 : f32
    %73 = vector.broadcast %cst_24 : f32 to vector<16x128xf32>
    %74 = arith.maximumf %72, %73 : vector<16x128xf32>
    %cst_25 = arith.constant 0.000000e+00 : f32
    %75 = vector.shape_cast %18 : vector<1x128xi1> to vector<1x128xi1>
    %76 = vector.broadcast %75 : vector<1x128xi1> to vector<16x128xi1>
    %77 = vector.broadcast %cst_25 : f32 to vector<16x128xf32>
    %78 = arith.select %76, %74, %77 : vector<16x128xi1>, vector<16x128xf32>
    %79 = arith.truncf %78 : vector<16x128xf32> to vector<16x128xbf16>
    %80 = tpu.concatenate %19, %79, %20 in 1 : vector<16x128xbf16>, vector<16x128xbf16>, vector<16x128xbf16> -> vector<16x384xbf16>
    %c0_26 = arith.constant 0 : index
    %c0_27 = arith.constant 0 : index
    %c0_28 = arith.constant 0 : index
    %81 = vector.load %arg4[%c0_26, %c0_27, %c0_28] : memref<1x16x384xbf16, #tpu.memory_space<vmem>>, vector<1x16x384xbf16>
    %82 = vector.shape_cast %81 : vector<1x16x384xbf16> to vector<16x384xbf16>
    %83 = vector.shape_cast %80 : vector<16x384xbf16> to vector<1x16x384xbf16>
    tpu.vector_store %arg4[%c0_26, %c0_27, %c0_28], %83 {strides = array<i32>} : memref<1x16x384xbf16, #tpu.memory_space<vmem>>, vector<1x16x384xbf16>,
    return
  }
  func.func @transform_0(%arg0: i32) -> (i32, i32, i32) {
    %c0_i32 = arith.constant 0 : i32
    %c0_i32_0 = arith.constant 0 : i32
    %c0_i32_1 = arith.constant 0 : i32
    return %arg0, %c0_i32, %c0_i32_0 : i32, i32, i32
  }
  func.func @transform_1(%arg0: i32) -> (i32, i32, i32) {
    %c0_i32 = arith.constant 0 : i32
    %c0_i32_0 = arith.constant 0 : i32
    %c0_i32_1 = arith.constant 0 : i32
    %c0_i32_2 = arith.constant 0 : i32
    return %c0_i32, %c0_i32_0, %c0_i32_1 : i32, i32, i32
  }
  func.func @transform_2(%arg0: i32) -> (i32, i32, i32) {
    %c0_i32 = arith.constant 0 : i32
    %c0_i32_0 = arith.constant 0 : i32
    %c0_i32_1 = arith.constant 0 : i32
    %c0_i32_2 = arith.constant 0 : i32
    return %c0_i32, %c0_i32_0, %c0_i32_1 : i32, i32, i32
  }
  func.func @transform_3(%arg0: i32) -> (i32, i32, i32) {
    %c0_i32 = arith.constant 0 : i32
    %c0_i32_0 = arith.constant 0 : i32
    %c0_i32_1 = arith.constant 0 : i32
    return %arg0, %c0_i32, %c0_i32_0 : i32, i32, i32
  }
}

module attributes {stable_mosaic.version = 11 : i64} {
  func.func @_conv_chain_kernel(%arg0: i32, %arg1: memref<1x32x384xbf16, #tpu.memory_space<vmem>>, %arg2: memref<2x32x288xbf16, #tpu.memory_space<vmem>>, %arg3: memref<2x32x2xf32, #tpu.memory_space<vmem>>, %arg4: memref<1x32x384xbf16, #tpu.memory_space<vmem>>) attributes {dimension_semantics = [#tpu.dimension_semantics<parallel>], iteration_bounds = array<i64: 2>, scalar_prefetch = 0 : i64, scratch_operands = 0 : i64, tpu.core_type = #tpu.core_type<tc>, window_params = [{transform_indices = @transform_0, window_bounds = array<i64: 1, 32, 384>}, {pipeline_mode = #tpu.pipeline_mode<synchronous>, transform_indices = @transform_1, window_bounds = array<i64: 2, 32, 288>}, {pipeline_mode = #tpu.pipeline_mode<synchronous>, transform_indices = @transform_2, window_bounds = array<i64: 2, 32, 2>}, {transform_indices = @transform_3, window_bounds = array<i64: 1, 32, 384>}]} {
    %0 = tpu.iota {dimensions = array<i32: 1>} : vector<1x128xi32>
    %1 = arith.sitofp %0 : vector<1x128xi32> to vector<1x128xf32>
    %cst = arith.constant 6.000000e+00 : f32
    %2 = vector.broadcast %cst : f32 to vector<1x128xf32>
    %3 = arith.divf %1, %2 : vector<1x128xf32>
    %4 = math.floor %3 : vector<1x128xf32>
    %cst_0 = arith.constant 6.000000e+00 : f32
    %5 = vector.broadcast %cst_0 : f32 to vector<1x128xf32>
    %6 = arith.mulf %4, %5 : vector<1x128xf32>
    %7 = arith.subf %1, %6 : vector<1x128xf32>
    %cst_1 = arith.constant 1.000000e+00 : f32
    %8 = vector.broadcast %cst_1 : f32 to vector<1x128xf32>
    %9 = arith.cmpf oge, %4, %8 : vector<1x128xf32>
    %cst_2 = arith.constant 5.000000e+00 : f32
    %10 = vector.broadcast %cst_2 : f32 to vector<1x128xf32>
    %11 = arith.cmpf olt, %4, %10 : vector<1x128xf32>
    %12 = arith.andi %9, %11 : vector<1x128xi1>
    %cst_3 = arith.constant 1.000000e+00 : f32
    %13 = vector.broadcast %cst_3 : f32 to vector<1x128xf32>
    %14 = arith.cmpf oge, %7, %13 : vector<1x128xf32>
    %15 = arith.andi %12, %14 : vector<1x128xi1>
    %cst_4 = arith.constant 5.000000e+00 : f32
    %16 = vector.broadcast %cst_4 : f32 to vector<1x128xf32>
    %17 = arith.cmpf olt, %7, %16 : vector<1x128xf32>
    %18 = arith.andi %15, %17 : vector<1x128xi1>
    %cst_5 = arith.constant 0.000000e+00 : bf16
    %19 = vector.broadcast %cst_5 : bf16 to vector<32x128xbf16>
    %cst_6 = arith.constant 0.000000e+00 : bf16
    %20 = vector.broadcast %cst_6 : bf16 to vector<32x128xbf16>
    %c0 = arith.constant 0 : index
    %c0_7 = arith.constant 0 : index
    %c0_8 = arith.constant 0 : index
    %21 = vector.load %arg1[%c0, %c0_7, %c0_8] : memref<1x32x384xbf16, #tpu.memory_space<vmem>>, vector<1x32x384xbf16>
    %22 = vector.shape_cast %21 : vector<1x32x384xbf16> to vector<32x384xbf16>
    %23 = vector.extract_strided_slice %22 {offsets = [0, 121], sizes = [32, 128], strides = [1, 1]} : vector<32x384xbf16> to vector<32x128xbf16>
    %24 = vector.extract_strided_slice %22 {offsets = [0, 122], sizes = [32, 128], strides = [1, 1]} : vector<32x384xbf16> to vector<32x128xbf16>
    %25 = vector.extract_strided_slice %22 {offsets = [0, 123], sizes = [32, 128], strides = [1, 1]} : vector<32x384xbf16> to vector<32x128xbf16>
    %26 = vector.extract_strided_slice %22 {offsets = [0, 127], sizes = [32, 128], strides = [1, 1]} : vector<32x384xbf16> to vector<32x128xbf16>
    %27 = vector.extract_strided_slice %22 {offsets = [0, 128], sizes = [32, 128], strides = [1, 1]} : vector<32x384xbf16> to vector<32x128xbf16>
    %28 = vector.extract_strided_slice %22 {offsets = [0, 129], sizes = [32, 128], strides = [1, 1]} : vector<32x384xbf16> to vector<32x128xbf16>
    %29 = vector.extract_strided_slice %22 {offsets = [0, 133], sizes = [32, 128], strides = [1, 1]} : vector<32x384xbf16> to vector<32x128xbf16>
    %30 = vector.extract_strided_slice %22 {offsets = [0, 134], sizes = [32, 128], strides = [1, 1]} : vector<32x384xbf16> to vector<32x128xbf16>
    %31 = vector.extract_strided_slice %22 {offsets = [0, 135], sizes = [32, 128], strides = [1, 1]} : vector<32x384xbf16> to vector<32x128xbf16>
    %32 = tpu.concatenate %23, %24, %25, %26, %27, %28, %29, %30, %31 in 0 : vector<32x128xbf16>, vector<32x128xbf16>, vector<32x128xbf16>, vector<32x128xbf16>, vector<32x128xbf16>, vector<32x128xbf16>, vector<32x128xbf16>, vector<32x128xbf16>, vector<32x128xbf16> -> vector<288x128xbf16>
    %c0_9 = arith.constant 0 : index
    %c0_10 = arith.constant 0 : index
    %c0_11 = arith.constant 0 : index
    %33 = vector.load %arg2[%c0_9, %c0_10, %c0_11] : memref<2x32x288xbf16, #tpu.memory_space<vmem>>, vector<1x32x288xbf16>
    %34 = vector.shape_cast %33 : vector<1x32x288xbf16> to vector<32x288xbf16>
    %cst_12 = arith.constant dense<0.000000e+00> : vector<32x128xf32>
    %35 = tpu.matmul %34, %32, %cst_12 {dimension_numbers = #tpu.dot_dimension_numbers<[1], [0], [0], [1], [0, 0, 1, 1], [], []>} : vector<32x288xbf16>, vector<288x128xbf16>, vector<32x128xf32> -> vector<32x128xf32>
    %c0_13 = arith.constant 0 : index
    %c0_14 = arith.constant 0 : index
    %c0_15 = arith.constant 0 : index
    %36 = vector.load %arg3[%c0_13, %c0_14, %c0_15] : memref<2x32x2xf32, #tpu.memory_space<vmem>>, vector<1x32x2xf32>
    %37 = vector.shape_cast %36 : vector<1x32x2xf32> to vector<32x2xf32>
    %38 = vector.extract_strided_slice %37 {offsets = [0, 0], sizes = [32, 1], strides = [1, 1]} : vector<32x2xf32> to vector<32x1xf32>
    %39 = vector.broadcast %38 : vector<32x1xf32> to vector<32x128xf32>
    %40 = arith.mulf %35, %39 : vector<32x128xf32>
    %41 = vector.extract_strided_slice %37 {offsets = [0, 1], sizes = [32, 1], strides = [1, 1]} : vector<32x2xf32> to vector<32x1xf32>
    %42 = vector.broadcast %41 : vector<32x1xf32> to vector<32x128xf32>
    %43 = arith.addf %40, %42 : vector<32x128xf32>
    %cst_16 = arith.constant 0.000000e+00 : f32
    %44 = vector.broadcast %cst_16 : f32 to vector<32x128xf32>
    %45 = arith.maximumf %43, %44 : vector<32x128xf32>
    %cst_17 = arith.constant 0.000000e+00 : f32
    %46 = vector.shape_cast %18 : vector<1x128xi1> to vector<1x128xi1>
    %47 = vector.broadcast %46 : vector<1x128xi1> to vector<32x128xi1>
    %48 = vector.broadcast %cst_17 : f32 to vector<32x128xf32>
    %49 = arith.select %47, %45, %48 : vector<32x128xi1>, vector<32x128xf32>
    %50 = arith.truncf %49 : vector<32x128xf32> to vector<32x128xbf16>
    %51 = tpu.concatenate %19, %50, %20 in 1 : vector<32x128xbf16>, vector<32x128xbf16>, vector<32x128xbf16> -> vector<32x384xbf16>
    %52 = vector.extract_strided_slice %51 {offsets = [0, 121], sizes = [32, 128], strides = [1, 1]} : vector<32x384xbf16> to vector<32x128xbf16>
    %53 = vector.extract_strided_slice %51 {offsets = [0, 122], sizes = [32, 128], strides = [1, 1]} : vector<32x384xbf16> to vector<32x128xbf16>
    %54 = vector.extract_strided_slice %51 {offsets = [0, 123], sizes = [32, 128], strides = [1, 1]} : vector<32x384xbf16> to vector<32x128xbf16>
    %55 = vector.extract_strided_slice %51 {offsets = [0, 127], sizes = [32, 128], strides = [1, 1]} : vector<32x384xbf16> to vector<32x128xbf16>
    %56 = vector.extract_strided_slice %51 {offsets = [0, 128], sizes = [32, 128], strides = [1, 1]} : vector<32x384xbf16> to vector<32x128xbf16>
    %57 = vector.extract_strided_slice %51 {offsets = [0, 129], sizes = [32, 128], strides = [1, 1]} : vector<32x384xbf16> to vector<32x128xbf16>
    %58 = vector.extract_strided_slice %51 {offsets = [0, 133], sizes = [32, 128], strides = [1, 1]} : vector<32x384xbf16> to vector<32x128xbf16>
    %59 = vector.extract_strided_slice %51 {offsets = [0, 134], sizes = [32, 128], strides = [1, 1]} : vector<32x384xbf16> to vector<32x128xbf16>
    %60 = vector.extract_strided_slice %51 {offsets = [0, 135], sizes = [32, 128], strides = [1, 1]} : vector<32x384xbf16> to vector<32x128xbf16>
    %61 = tpu.concatenate %52, %53, %54, %55, %56, %57, %58, %59, %60 in 0 : vector<32x128xbf16>, vector<32x128xbf16>, vector<32x128xbf16>, vector<32x128xbf16>, vector<32x128xbf16>, vector<32x128xbf16>, vector<32x128xbf16>, vector<32x128xbf16>, vector<32x128xbf16> -> vector<288x128xbf16>
    %c1 = arith.constant 1 : index
    %c0_18 = arith.constant 0 : index
    %c0_19 = arith.constant 0 : index
    %62 = vector.load %arg2[%c1, %c0_18, %c0_19] : memref<2x32x288xbf16, #tpu.memory_space<vmem>>, vector<1x32x288xbf16>
    %63 = vector.shape_cast %62 : vector<1x32x288xbf16> to vector<32x288xbf16>
    %cst_20 = arith.constant dense<0.000000e+00> : vector<32x128xf32>
    %64 = tpu.matmul %63, %61, %cst_20 {dimension_numbers = #tpu.dot_dimension_numbers<[1], [0], [0], [1], [0, 0, 1, 1], [], []>} : vector<32x288xbf16>, vector<288x128xbf16>, vector<32x128xf32> -> vector<32x128xf32>
    %c1_21 = arith.constant 1 : index
    %c0_22 = arith.constant 0 : index
    %c0_23 = arith.constant 0 : index
    %65 = vector.load %arg3[%c1_21, %c0_22, %c0_23] : memref<2x32x2xf32, #tpu.memory_space<vmem>>, vector<1x32x2xf32>
    %66 = vector.shape_cast %65 : vector<1x32x2xf32> to vector<32x2xf32>
    %67 = vector.extract_strided_slice %66 {offsets = [0, 0], sizes = [32, 1], strides = [1, 1]} : vector<32x2xf32> to vector<32x1xf32>
    %68 = vector.broadcast %67 : vector<32x1xf32> to vector<32x128xf32>
    %69 = arith.mulf %64, %68 : vector<32x128xf32>
    %70 = vector.extract_strided_slice %66 {offsets = [0, 1], sizes = [32, 1], strides = [1, 1]} : vector<32x2xf32> to vector<32x1xf32>
    %71 = vector.broadcast %70 : vector<32x1xf32> to vector<32x128xf32>
    %72 = arith.addf %69, %71 : vector<32x128xf32>
    %cst_24 = arith.constant 0.000000e+00 : f32
    %73 = vector.broadcast %cst_24 : f32 to vector<32x128xf32>
    %74 = arith.maximumf %72, %73 : vector<32x128xf32>
    %cst_25 = arith.constant 0.000000e+00 : f32
    %75 = vector.shape_cast %18 : vector<1x128xi1> to vector<1x128xi1>
    %76 = vector.broadcast %75 : vector<1x128xi1> to vector<32x128xi1>
    %77 = vector.broadcast %cst_25 : f32 to vector<32x128xf32>
    %78 = arith.select %76, %74, %77 : vector<32x128xi1>, vector<32x128xf32>
    %79 = arith.truncf %78 : vector<32x128xf32> to vector<32x128xbf16>
    %80 = tpu.concatenate %19, %79, %20 in 1 : vector<32x128xbf16>, vector<32x128xbf16>, vector<32x128xbf16> -> vector<32x384xbf16>
    %c0_26 = arith.constant 0 : index
    %c0_27 = arith.constant 0 : index
    %c0_28 = arith.constant 0 : index
    %81 = vector.load %arg4[%c0_26, %c0_27, %c0_28] : memref<1x32x384xbf16, #tpu.memory_space<vmem>>, vector<1x32x384xbf16>
    %82 = vector.shape_cast %81 : vector<1x32x384xbf16> to vector<32x384xbf16>
    %83 = vector.shape_cast %80 : vector<32x384xbf16> to vector<1x32x384xbf16>
    tpu.vector_store %arg4[%c0_26, %c0_27, %c0_28], %83 {strides = array<i32>} : memref<1x32x384xbf16, #tpu.memory_space<vmem>>, vector<1x32x384xbf16>,
    return
  }
  func.func @transform_0(%arg0: i32) -> (i32, i32, i32) {
    %c0_i32 = arith.constant 0 : i32
    %c0_i32_0 = arith.constant 0 : i32
    %c0_i32_1 = arith.constant 0 : i32
    return %arg0, %c0_i32, %c0_i32_0 : i32, i32, i32
  }
  func.func @transform_1(%arg0: i32) -> (i32, i32, i32) {
    %c0_i32 = arith.constant 0 : i32
    %c0_i32_0 = arith.constant 0 : i32
    %c0_i32_1 = arith.constant 0 : i32
    %c0_i32_2 = arith.constant 0 : i32
    return %c0_i32, %c0_i32_0, %c0_i32_1 : i32, i32, i32
  }
  func.func @transform_2(%arg0: i32) -> (i32, i32, i32) {
    %c0_i32 = arith.constant 0 : i32
    %c0_i32_0 = arith.constant 0 : i32
    %c0_i32_1 = arith.constant 0 : i32
    %c0_i32_2 = arith.constant 0 : i32
    return %c0_i32, %c0_i32_0, %c0_i32_1 : i32, i32, i32
  }
  func.func @transform_3(%arg0: i32) -> (i32, i32, i32) {
    %c0_i32 = arith.constant 0 : i32
    %c0_i32_0 = arith.constant 0 : i32
    %c0_i32_1 = arith.constant 0 : i32
    return %arg0, %c0_i32, %c0_i32_0 : i32, i32, i32
  }
}

module attributes {stable_mosaic.version = 11 : i64} {
  func.func @_conv_chain_kernel(%arg0: i32, %arg1: memref<1x32x384xbf16, #tpu.memory_space<vmem>>, %arg2: memref<2x32x288xbf16, #tpu.memory_space<vmem>>, %arg3: memref<2x32x2xf32, #tpu.memory_space<vmem>>, %arg4: memref<1x32x384xbf16, #tpu.memory_space<vmem>>) attributes {dimension_semantics = [#tpu.dimension_semantics<parallel>], iteration_bounds = array<i64: 2>, scalar_prefetch = 0 : i64, scratch_operands = 0 : i64, tpu.core_type = #tpu.core_type<tc>, window_params = [{transform_indices = @transform_0, window_bounds = array<i64: 1, 32, 384>}, {pipeline_mode = #tpu.pipeline_mode<synchronous>, transform_indices = @transform_1, window_bounds = array<i64: 2, 32, 288>}, {pipeline_mode = #tpu.pipeline_mode<synchronous>, transform_indices = @transform_2, window_bounds = array<i64: 2, 32, 2>}, {transform_indices = @transform_3, window_bounds = array<i64: 1, 32, 384>}]} {
    %0 = tpu.iota {dimensions = array<i32: 1>} : vector<1x128xi32>
    %1 = arith.sitofp %0 : vector<1x128xi32> to vector<1x128xf32>
    %cst = arith.constant 1.000000e+01 : f32
    %2 = vector.broadcast %cst : f32 to vector<1x128xf32>
    %3 = arith.divf %1, %2 : vector<1x128xf32>
    %4 = math.floor %3 : vector<1x128xf32>
    %cst_0 = arith.constant 1.000000e+01 : f32
    %5 = vector.broadcast %cst_0 : f32 to vector<1x128xf32>
    %6 = arith.mulf %4, %5 : vector<1x128xf32>
    %7 = arith.subf %1, %6 : vector<1x128xf32>
    %cst_1 = arith.constant 1.000000e+00 : f32
    %8 = vector.broadcast %cst_1 : f32 to vector<1x128xf32>
    %9 = arith.cmpf oge, %4, %8 : vector<1x128xf32>
    %cst_2 = arith.constant 9.000000e+00 : f32
    %10 = vector.broadcast %cst_2 : f32 to vector<1x128xf32>
    %11 = arith.cmpf olt, %4, %10 : vector<1x128xf32>
    %12 = arith.andi %9, %11 : vector<1x128xi1>
    %cst_3 = arith.constant 1.000000e+00 : f32
    %13 = vector.broadcast %cst_3 : f32 to vector<1x128xf32>
    %14 = arith.cmpf oge, %7, %13 : vector<1x128xf32>
    %15 = arith.andi %12, %14 : vector<1x128xi1>
    %cst_4 = arith.constant 9.000000e+00 : f32
    %16 = vector.broadcast %cst_4 : f32 to vector<1x128xf32>
    %17 = arith.cmpf olt, %7, %16 : vector<1x128xf32>
    %18 = arith.andi %15, %17 : vector<1x128xi1>
    %cst_5 = arith.constant 0.000000e+00 : bf16
    %19 = vector.broadcast %cst_5 : bf16 to vector<32x128xbf16>
    %cst_6 = arith.constant 0.000000e+00 : bf16
    %20 = vector.broadcast %cst_6 : bf16 to vector<32x128xbf16>
    %c0 = arith.constant 0 : index
    %c0_7 = arith.constant 0 : index
    %c0_8 = arith.constant 0 : index
    %21 = vector.load %arg1[%c0, %c0_7, %c0_8] : memref<1x32x384xbf16, #tpu.memory_space<vmem>>, vector<1x32x384xbf16>
    %22 = vector.shape_cast %21 : vector<1x32x384xbf16> to vector<32x384xbf16>
    %23 = vector.extract_strided_slice %22 {offsets = [0, 117], sizes = [32, 128], strides = [1, 1]} : vector<32x384xbf16> to vector<32x128xbf16>
    %24 = vector.extract_strided_slice %22 {offsets = [0, 118], sizes = [32, 128], strides = [1, 1]} : vector<32x384xbf16> to vector<32x128xbf16>
    %25 = vector.extract_strided_slice %22 {offsets = [0, 119], sizes = [32, 128], strides = [1, 1]} : vector<32x384xbf16> to vector<32x128xbf16>
    %26 = vector.extract_strided_slice %22 {offsets = [0, 127], sizes = [32, 128], strides = [1, 1]} : vector<32x384xbf16> to vector<32x128xbf16>
    %27 = vector.extract_strided_slice %22 {offsets = [0, 128], sizes = [32, 128], strides = [1, 1]} : vector<32x384xbf16> to vector<32x128xbf16>
    %28 = vector.extract_strided_slice %22 {offsets = [0, 129], sizes = [32, 128], strides = [1, 1]} : vector<32x384xbf16> to vector<32x128xbf16>
    %29 = vector.extract_strided_slice %22 {offsets = [0, 137], sizes = [32, 128], strides = [1, 1]} : vector<32x384xbf16> to vector<32x128xbf16>
    %30 = vector.extract_strided_slice %22 {offsets = [0, 138], sizes = [32, 128], strides = [1, 1]} : vector<32x384xbf16> to vector<32x128xbf16>
    %31 = vector.extract_strided_slice %22 {offsets = [0, 139], sizes = [32, 128], strides = [1, 1]} : vector<32x384xbf16> to vector<32x128xbf16>
    %32 = tpu.concatenate %23, %24, %25, %26, %27, %28, %29, %30, %31 in 0 : vector<32x128xbf16>, vector<32x128xbf16>, vector<32x128xbf16>, vector<32x128xbf16>, vector<32x128xbf16>, vector<32x128xbf16>, vector<32x128xbf16>, vector<32x128xbf16>, vector<32x128xbf16> -> vector<288x128xbf16>
    %c0_9 = arith.constant 0 : index
    %c0_10 = arith.constant 0 : index
    %c0_11 = arith.constant 0 : index
    %33 = vector.load %arg2[%c0_9, %c0_10, %c0_11] : memref<2x32x288xbf16, #tpu.memory_space<vmem>>, vector<1x32x288xbf16>
    %34 = vector.shape_cast %33 : vector<1x32x288xbf16> to vector<32x288xbf16>
    %cst_12 = arith.constant dense<0.000000e+00> : vector<32x128xf32>
    %35 = tpu.matmul %34, %32, %cst_12 {dimension_numbers = #tpu.dot_dimension_numbers<[1], [0], [0], [1], [0, 0, 1, 1], [], []>} : vector<32x288xbf16>, vector<288x128xbf16>, vector<32x128xf32> -> vector<32x128xf32>
    %c0_13 = arith.constant 0 : index
    %c0_14 = arith.constant 0 : index
    %c0_15 = arith.constant 0 : index
    %36 = vector.load %arg3[%c0_13, %c0_14, %c0_15] : memref<2x32x2xf32, #tpu.memory_space<vmem>>, vector<1x32x2xf32>
    %37 = vector.shape_cast %36 : vector<1x32x2xf32> to vector<32x2xf32>
    %38 = vector.extract_strided_slice %37 {offsets = [0, 0], sizes = [32, 1], strides = [1, 1]} : vector<32x2xf32> to vector<32x1xf32>
    %39 = vector.broadcast %38 : vector<32x1xf32> to vector<32x128xf32>
    %40 = arith.mulf %35, %39 : vector<32x128xf32>
    %41 = vector.extract_strided_slice %37 {offsets = [0, 1], sizes = [32, 1], strides = [1, 1]} : vector<32x2xf32> to vector<32x1xf32>
    %42 = vector.broadcast %41 : vector<32x1xf32> to vector<32x128xf32>
    %43 = arith.addf %40, %42 : vector<32x128xf32>
    %cst_16 = arith.constant 0.000000e+00 : f32
    %44 = vector.broadcast %cst_16 : f32 to vector<32x128xf32>
    %45 = arith.maximumf %43, %44 : vector<32x128xf32>
    %cst_17 = arith.constant 0.000000e+00 : f32
    %46 = vector.shape_cast %18 : vector<1x128xi1> to vector<1x128xi1>
    %47 = vector.broadcast %46 : vector<1x128xi1> to vector<32x128xi1>
    %48 = vector.broadcast %cst_17 : f32 to vector<32x128xf32>
    %49 = arith.select %47, %45, %48 : vector<32x128xi1>, vector<32x128xf32>
    %50 = arith.truncf %49 : vector<32x128xf32> to vector<32x128xbf16>
    %51 = tpu.concatenate %19, %50, %20 in 1 : vector<32x128xbf16>, vector<32x128xbf16>, vector<32x128xbf16> -> vector<32x384xbf16>
    %52 = vector.extract_strided_slice %51 {offsets = [0, 117], sizes = [32, 128], strides = [1, 1]} : vector<32x384xbf16> to vector<32x128xbf16>
    %53 = vector.extract_strided_slice %51 {offsets = [0, 118], sizes = [32, 128], strides = [1, 1]} : vector<32x384xbf16> to vector<32x128xbf16>
    %54 = vector.extract_strided_slice %51 {offsets = [0, 119], sizes = [32, 128], strides = [1, 1]} : vector<32x384xbf16> to vector<32x128xbf16>
    %55 = vector.extract_strided_slice %51 {offsets = [0, 127], sizes = [32, 128], strides = [1, 1]} : vector<32x384xbf16> to vector<32x128xbf16>
    %56 = vector.extract_strided_slice %51 {offsets = [0, 128], sizes = [32, 128], strides = [1, 1]} : vector<32x384xbf16> to vector<32x128xbf16>
    %57 = vector.extract_strided_slice %51 {offsets = [0, 129], sizes = [32, 128], strides = [1, 1]} : vector<32x384xbf16> to vector<32x128xbf16>
    %58 = vector.extract_strided_slice %51 {offsets = [0, 137], sizes = [32, 128], strides = [1, 1]} : vector<32x384xbf16> to vector<32x128xbf16>
    %59 = vector.extract_strided_slice %51 {offsets = [0, 138], sizes = [32, 128], strides = [1, 1]} : vector<32x384xbf16> to vector<32x128xbf16>
    %60 = vector.extract_strided_slice %51 {offsets = [0, 139], sizes = [32, 128], strides = [1, 1]} : vector<32x384xbf16> to vector<32x128xbf16>
    %61 = tpu.concatenate %52, %53, %54, %55, %56, %57, %58, %59, %60 in 0 : vector<32x128xbf16>, vector<32x128xbf16>, vector<32x128xbf16>, vector<32x128xbf16>, vector<32x128xbf16>, vector<32x128xbf16>, vector<32x128xbf16>, vector<32x128xbf16>, vector<32x128xbf16> -> vector<288x128xbf16>
    %c1 = arith.constant 1 : index
    %c0_18 = arith.constant 0 : index
    %c0_19 = arith.constant 0 : index
    %62 = vector.load %arg2[%c1, %c0_18, %c0_19] : memref<2x32x288xbf16, #tpu.memory_space<vmem>>, vector<1x32x288xbf16>
    %63 = vector.shape_cast %62 : vector<1x32x288xbf16> to vector<32x288xbf16>
    %cst_20 = arith.constant dense<0.000000e+00> : vector<32x128xf32>
    %64 = tpu.matmul %63, %61, %cst_20 {dimension_numbers = #tpu.dot_dimension_numbers<[1], [0], [0], [1], [0, 0, 1, 1], [], []>} : vector<32x288xbf16>, vector<288x128xbf16>, vector<32x128xf32> -> vector<32x128xf32>
    %c1_21 = arith.constant 1 : index
    %c0_22 = arith.constant 0 : index
    %c0_23 = arith.constant 0 : index
    %65 = vector.load %arg3[%c1_21, %c0_22, %c0_23] : memref<2x32x2xf32, #tpu.memory_space<vmem>>, vector<1x32x2xf32>
    %66 = vector.shape_cast %65 : vector<1x32x2xf32> to vector<32x2xf32>
    %67 = vector.extract_strided_slice %66 {offsets = [0, 0], sizes = [32, 1], strides = [1, 1]} : vector<32x2xf32> to vector<32x1xf32>
    %68 = vector.broadcast %67 : vector<32x1xf32> to vector<32x128xf32>
    %69 = arith.mulf %64, %68 : vector<32x128xf32>
    %70 = vector.extract_strided_slice %66 {offsets = [0, 1], sizes = [32, 1], strides = [1, 1]} : vector<32x2xf32> to vector<32x1xf32>
    %71 = vector.broadcast %70 : vector<32x1xf32> to vector<32x128xf32>
    %72 = arith.addf %69, %71 : vector<32x128xf32>
    %cst_24 = arith.constant 0.000000e+00 : f32
    %73 = vector.broadcast %cst_24 : f32 to vector<32x128xf32>
    %74 = arith.maximumf %72, %73 : vector<32x128xf32>
    %cst_25 = arith.constant 0.000000e+00 : f32
    %75 = vector.shape_cast %18 : vector<1x128xi1> to vector<1x128xi1>
    %76 = vector.broadcast %75 : vector<1x128xi1> to vector<32x128xi1>
    %77 = vector.broadcast %cst_25 : f32 to vector<32x128xf32>
    %78 = arith.select %76, %74, %77 : vector<32x128xi1>, vector<32x128xf32>
    %79 = arith.truncf %78 : vector<32x128xf32> to vector<32x128xbf16>
    %80 = tpu.concatenate %19, %79, %20 in 1 : vector<32x128xbf16>, vector<32x128xbf16>, vector<32x128xbf16> -> vector<32x384xbf16>
    %c0_26 = arith.constant 0 : index
    %c0_27 = arith.constant 0 : index
    %c0_28 = arith.constant 0 : index
    %81 = vector.load %arg4[%c0_26, %c0_27, %c0_28] : memref<1x32x384xbf16, #tpu.memory_space<vmem>>, vector<1x32x384xbf16>
    %82 = vector.shape_cast %81 : vector<1x32x384xbf16> to vector<32x384xbf16>
    %83 = vector.shape_cast %80 : vector<32x384xbf16> to vector<1x32x384xbf16>
    tpu.vector_store %arg4[%c0_26, %c0_27, %c0_28], %83 {strides = array<i32>} : memref<1x32x384xbf16, #tpu.memory_space<vmem>>, vector<1x32x384xbf16>,
    return
  }
  func.func @transform_0(%arg0: i32) -> (i32, i32, i32) {
    %c0_i32 = arith.constant 0 : i32
    %c0_i32_0 = arith.constant 0 : i32
    %c0_i32_1 = arith.constant 0 : i32
    return %arg0, %c0_i32, %c0_i32_0 : i32, i32, i32
  }
  func.func @transform_1(%arg0: i32) -> (i32, i32, i32) {
    %c0_i32 = arith.constant 0 : i32
    %c0_i32_0 = arith.constant 0 : i32
    %c0_i32_1 = arith.constant 0 : i32
    %c0_i32_2 = arith.constant 0 : i32
    return %c0_i32, %c0_i32_0, %c0_i32_1 : i32, i32, i32
  }
  func.func @transform_2(%arg0: i32) -> (i32, i32, i32) {
    %c0_i32 = arith.constant 0 : i32
    %c0_i32_0 = arith.constant 0 : i32
    %c0_i32_1 = arith.constant 0 : i32
    %c0_i32_2 = arith.constant 0 : i32
    return %c0_i32, %c0_i32_0, %c0_i32_1 : i32, i32, i32
  }
  func.func @transform_3(%arg0: i32) -> (i32, i32, i32) {
    %c0_i32 = arith.constant 0 : i32
    %c0_i32_0 = arith.constant 0 : i32
    %c0_i32_1 = arith.constant 0 : i32
    return %arg0, %c0_i32, %c0_i32_0 : i32, i32, i32
  }
}

module attributes {stable_mosaic.version = 11 : i64} {
  func.func @_conv_chain_kernel(%arg0: i32, %arg1: memref<1x16x640xbf16, #tpu.memory_space<vmem>>, %arg2: memref<2x16x144xbf16, #tpu.memory_space<vmem>>, %arg3: memref<2x16x2xf32, #tpu.memory_space<vmem>>, %arg4: memref<1x16x640xbf16, #tpu.memory_space<vmem>>) attributes {dimension_semantics = [#tpu.dimension_semantics<parallel>], iteration_bounds = array<i64: 2>, scalar_prefetch = 0 : i64, scratch_operands = 0 : i64, tpu.core_type = #tpu.core_type<tc>, window_params = [{transform_indices = @transform_0, window_bounds = array<i64: 1, 16, 640>}, {pipeline_mode = #tpu.pipeline_mode<synchronous>, transform_indices = @transform_1, window_bounds = array<i64: 2, 16, 144>}, {pipeline_mode = #tpu.pipeline_mode<synchronous>, transform_indices = @transform_2, window_bounds = array<i64: 2, 16, 2>}, {transform_indices = @transform_3, window_bounds = array<i64: 1, 16, 640>}]} {
    %0 = tpu.iota {dimensions = array<i32: 1>} : vector<1x384xi32>
    %1 = arith.sitofp %0 : vector<1x384xi32> to vector<1x384xf32>
    %cst = arith.constant 1.800000e+01 : f32
    %2 = vector.broadcast %cst : f32 to vector<1x384xf32>
    %3 = arith.divf %1, %2 : vector<1x384xf32>
    %4 = math.floor %3 : vector<1x384xf32>
    %cst_0 = arith.constant 1.800000e+01 : f32
    %5 = vector.broadcast %cst_0 : f32 to vector<1x384xf32>
    %6 = arith.mulf %4, %5 : vector<1x384xf32>
    %7 = arith.subf %1, %6 : vector<1x384xf32>
    %cst_1 = arith.constant 1.000000e+00 : f32
    %8 = vector.broadcast %cst_1 : f32 to vector<1x384xf32>
    %9 = arith.cmpf oge, %4, %8 : vector<1x384xf32>
    %cst_2 = arith.constant 1.700000e+01 : f32
    %10 = vector.broadcast %cst_2 : f32 to vector<1x384xf32>
    %11 = arith.cmpf olt, %4, %10 : vector<1x384xf32>
    %12 = arith.andi %9, %11 : vector<1x384xi1>
    %cst_3 = arith.constant 1.000000e+00 : f32
    %13 = vector.broadcast %cst_3 : f32 to vector<1x384xf32>
    %14 = arith.cmpf oge, %7, %13 : vector<1x384xf32>
    %15 = arith.andi %12, %14 : vector<1x384xi1>
    %cst_4 = arith.constant 1.700000e+01 : f32
    %16 = vector.broadcast %cst_4 : f32 to vector<1x384xf32>
    %17 = arith.cmpf olt, %7, %16 : vector<1x384xf32>
    %18 = arith.andi %15, %17 : vector<1x384xi1>
    %cst_5 = arith.constant 0.000000e+00 : bf16
    %19 = vector.broadcast %cst_5 : bf16 to vector<16x128xbf16>
    %cst_6 = arith.constant 0.000000e+00 : bf16
    %20 = vector.broadcast %cst_6 : bf16 to vector<16x128xbf16>
    %c0 = arith.constant 0 : index
    %c0_7 = arith.constant 0 : index
    %c0_8 = arith.constant 0 : index
    %21 = vector.load %arg1[%c0, %c0_7, %c0_8] : memref<1x16x640xbf16, #tpu.memory_space<vmem>>, vector<1x16x640xbf16>
    %22 = vector.shape_cast %21 : vector<1x16x640xbf16> to vector<16x640xbf16>
    %23 = vector.extract_strided_slice %22 {offsets = [0, 109], sizes = [16, 384], strides = [1, 1]} : vector<16x640xbf16> to vector<16x384xbf16>
    %24 = vector.extract_strided_slice %22 {offsets = [0, 110], sizes = [16, 384], strides = [1, 1]} : vector<16x640xbf16> to vector<16x384xbf16>
    %25 = vector.extract_strided_slice %22 {offsets = [0, 111], sizes = [16, 384], strides = [1, 1]} : vector<16x640xbf16> to vector<16x384xbf16>
    %26 = vector.extract_strided_slice %22 {offsets = [0, 127], sizes = [16, 384], strides = [1, 1]} : vector<16x640xbf16> to vector<16x384xbf16>
    %27 = vector.extract_strided_slice %22 {offsets = [0, 128], sizes = [16, 384], strides = [1, 1]} : vector<16x640xbf16> to vector<16x384xbf16>
    %28 = vector.extract_strided_slice %22 {offsets = [0, 129], sizes = [16, 384], strides = [1, 1]} : vector<16x640xbf16> to vector<16x384xbf16>
    %29 = vector.extract_strided_slice %22 {offsets = [0, 145], sizes = [16, 384], strides = [1, 1]} : vector<16x640xbf16> to vector<16x384xbf16>
    %30 = vector.extract_strided_slice %22 {offsets = [0, 146], sizes = [16, 384], strides = [1, 1]} : vector<16x640xbf16> to vector<16x384xbf16>
    %31 = vector.extract_strided_slice %22 {offsets = [0, 147], sizes = [16, 384], strides = [1, 1]} : vector<16x640xbf16> to vector<16x384xbf16>
    %32 = tpu.concatenate %23, %24, %25, %26, %27, %28, %29, %30, %31 in 0 : vector<16x384xbf16>, vector<16x384xbf16>, vector<16x384xbf16>, vector<16x384xbf16>, vector<16x384xbf16>, vector<16x384xbf16>, vector<16x384xbf16>, vector<16x384xbf16>, vector<16x384xbf16> -> vector<144x384xbf16>
    %c0_9 = arith.constant 0 : index
    %c0_10 = arith.constant 0 : index
    %c0_11 = arith.constant 0 : index
    %33 = vector.load %arg2[%c0_9, %c0_10, %c0_11] : memref<2x16x144xbf16, #tpu.memory_space<vmem>>, vector<1x16x144xbf16>
    %34 = vector.shape_cast %33 : vector<1x16x144xbf16> to vector<16x144xbf16>
    %cst_12 = arith.constant dense<0.000000e+00> : vector<16x384xf32>
    %35 = tpu.matmul %34, %32, %cst_12 {dimension_numbers = #tpu.dot_dimension_numbers<[1], [0], [0], [1], [0, 0, 1, 1], [], []>} : vector<16x144xbf16>, vector<144x384xbf16>, vector<16x384xf32> -> vector<16x384xf32>
    %c0_13 = arith.constant 0 : index
    %c0_14 = arith.constant 0 : index
    %c0_15 = arith.constant 0 : index
    %36 = vector.load %arg3[%c0_13, %c0_14, %c0_15] : memref<2x16x2xf32, #tpu.memory_space<vmem>>, vector<1x16x2xf32>
    %37 = vector.shape_cast %36 : vector<1x16x2xf32> to vector<16x2xf32>
    %38 = vector.extract_strided_slice %37 {offsets = [0, 0], sizes = [16, 1], strides = [1, 1]} : vector<16x2xf32> to vector<16x1xf32>
    %39 = vector.broadcast %38 : vector<16x1xf32> to vector<16x384xf32>
    %40 = arith.mulf %35, %39 : vector<16x384xf32>
    %41 = vector.extract_strided_slice %37 {offsets = [0, 1], sizes = [16, 1], strides = [1, 1]} : vector<16x2xf32> to vector<16x1xf32>
    %42 = vector.broadcast %41 : vector<16x1xf32> to vector<16x384xf32>
    %43 = arith.addf %40, %42 : vector<16x384xf32>
    %cst_16 = arith.constant 0.000000e+00 : f32
    %44 = vector.broadcast %cst_16 : f32 to vector<16x384xf32>
    %45 = arith.maximumf %43, %44 : vector<16x384xf32>
    %cst_17 = arith.constant 0.000000e+00 : f32
    %46 = vector.shape_cast %18 : vector<1x384xi1> to vector<1x384xi1>
    %47 = vector.broadcast %46 : vector<1x384xi1> to vector<16x384xi1>
    %48 = vector.broadcast %cst_17 : f32 to vector<16x384xf32>
    %49 = arith.select %47, %45, %48 : vector<16x384xi1>, vector<16x384xf32>
    %50 = arith.truncf %49 : vector<16x384xf32> to vector<16x384xbf16>
    %51 = tpu.concatenate %19, %50, %20 in 1 : vector<16x128xbf16>, vector<16x384xbf16>, vector<16x128xbf16> -> vector<16x640xbf16>
    %52 = vector.extract_strided_slice %51 {offsets = [0, 109], sizes = [16, 384], strides = [1, 1]} : vector<16x640xbf16> to vector<16x384xbf16>
    %53 = vector.extract_strided_slice %51 {offsets = [0, 110], sizes = [16, 384], strides = [1, 1]} : vector<16x640xbf16> to vector<16x384xbf16>
    %54 = vector.extract_strided_slice %51 {offsets = [0, 111], sizes = [16, 384], strides = [1, 1]} : vector<16x640xbf16> to vector<16x384xbf16>
    %55 = vector.extract_strided_slice %51 {offsets = [0, 127], sizes = [16, 384], strides = [1, 1]} : vector<16x640xbf16> to vector<16x384xbf16>
    %56 = vector.extract_strided_slice %51 {offsets = [0, 128], sizes = [16, 384], strides = [1, 1]} : vector<16x640xbf16> to vector<16x384xbf16>
    %57 = vector.extract_strided_slice %51 {offsets = [0, 129], sizes = [16, 384], strides = [1, 1]} : vector<16x640xbf16> to vector<16x384xbf16>
    %58 = vector.extract_strided_slice %51 {offsets = [0, 145], sizes = [16, 384], strides = [1, 1]} : vector<16x640xbf16> to vector<16x384xbf16>
    %59 = vector.extract_strided_slice %51 {offsets = [0, 146], sizes = [16, 384], strides = [1, 1]} : vector<16x640xbf16> to vector<16x384xbf16>
    %60 = vector.extract_strided_slice %51 {offsets = [0, 147], sizes = [16, 384], strides = [1, 1]} : vector<16x640xbf16> to vector<16x384xbf16>
    %61 = tpu.concatenate %52, %53, %54, %55, %56, %57, %58, %59, %60 in 0 : vector<16x384xbf16>, vector<16x384xbf16>, vector<16x384xbf16>, vector<16x384xbf16>, vector<16x384xbf16>, vector<16x384xbf16>, vector<16x384xbf16>, vector<16x384xbf16>, vector<16x384xbf16> -> vector<144x384xbf16>
    %c1 = arith.constant 1 : index
    %c0_18 = arith.constant 0 : index
    %c0_19 = arith.constant 0 : index
    %62 = vector.load %arg2[%c1, %c0_18, %c0_19] : memref<2x16x144xbf16, #tpu.memory_space<vmem>>, vector<1x16x144xbf16>
    %63 = vector.shape_cast %62 : vector<1x16x144xbf16> to vector<16x144xbf16>
    %cst_20 = arith.constant dense<0.000000e+00> : vector<16x384xf32>
    %64 = tpu.matmul %63, %61, %cst_20 {dimension_numbers = #tpu.dot_dimension_numbers<[1], [0], [0], [1], [0, 0, 1, 1], [], []>} : vector<16x144xbf16>, vector<144x384xbf16>, vector<16x384xf32> -> vector<16x384xf32>
    %c1_21 = arith.constant 1 : index
    %c0_22 = arith.constant 0 : index
    %c0_23 = arith.constant 0 : index
    %65 = vector.load %arg3[%c1_21, %c0_22, %c0_23] : memref<2x16x2xf32, #tpu.memory_space<vmem>>, vector<1x16x2xf32>
    %66 = vector.shape_cast %65 : vector<1x16x2xf32> to vector<16x2xf32>
    %67 = vector.extract_strided_slice %66 {offsets = [0, 0], sizes = [16, 1], strides = [1, 1]} : vector<16x2xf32> to vector<16x1xf32>
    %68 = vector.broadcast %67 : vector<16x1xf32> to vector<16x384xf32>
    %69 = arith.mulf %64, %68 : vector<16x384xf32>
    %70 = vector.extract_strided_slice %66 {offsets = [0, 1], sizes = [16, 1], strides = [1, 1]} : vector<16x2xf32> to vector<16x1xf32>
    %71 = vector.broadcast %70 : vector<16x1xf32> to vector<16x384xf32>
    %72 = arith.addf %69, %71 : vector<16x384xf32>
    %cst_24 = arith.constant 0.000000e+00 : f32
    %73 = vector.shape_cast %18 : vector<1x384xi1> to vector<1x384xi1>
    %74 = vector.broadcast %73 : vector<1x384xi1> to vector<16x384xi1>
    %75 = vector.broadcast %cst_24 : f32 to vector<16x384xf32>
    %76 = arith.select %74, %72, %75 : vector<16x384xi1>, vector<16x384xf32>
    %77 = arith.truncf %76 : vector<16x384xf32> to vector<16x384xbf16>
    %78 = tpu.concatenate %19, %77, %20 in 1 : vector<16x128xbf16>, vector<16x384xbf16>, vector<16x128xbf16> -> vector<16x640xbf16>
    %c0_25 = arith.constant 0 : index
    %c0_26 = arith.constant 0 : index
    %c0_27 = arith.constant 0 : index
    %79 = vector.load %arg4[%c0_25, %c0_26, %c0_27] : memref<1x16x640xbf16, #tpu.memory_space<vmem>>, vector<1x16x640xbf16>
    %80 = vector.shape_cast %79 : vector<1x16x640xbf16> to vector<16x640xbf16>
    %81 = vector.shape_cast %78 : vector<16x640xbf16> to vector<1x16x640xbf16>
    tpu.vector_store %arg4[%c0_25, %c0_26, %c0_27], %81 {strides = array<i32>} : memref<1x16x640xbf16, #tpu.memory_space<vmem>>, vector<1x16x640xbf16>,
    return
  }
  func.func @transform_0(%arg0: i32) -> (i32, i32, i32) {
    %c0_i32 = arith.constant 0 : i32
    %c0_i32_0 = arith.constant 0 : i32
    %c0_i32_1 = arith.constant 0 : i32
    return %arg0, %c0_i32, %c0_i32_0 : i32, i32, i32
  }
  func.func @transform_1(%arg0: i32) -> (i32, i32, i32) {
    %c0_i32 = arith.constant 0 : i32
    %c0_i32_0 = arith.constant 0 : i32
    %c0_i32_1 = arith.constant 0 : i32
    %c0_i32_2 = arith.constant 0 : i32
    return %c0_i32, %c0_i32_0, %c0_i32_1 : i32, i32, i32
  }
  func.func @transform_2(%arg0: i32) -> (i32, i32, i32) {
    %c0_i32 = arith.constant 0 : i32
    %c0_i32_0 = arith.constant 0 : i32
    %c0_i32_1 = arith.constant 0 : i32
    %c0_i32_2 = arith.constant 0 : i32
    return %c0_i32, %c0_i32_0, %c0_i32_1 : i32, i32, i32
  }
  func.func @transform_3(%arg0: i32) -> (i32, i32, i32) {
    %c0_i32 = arith.constant 0 : i32
    %c0_i32_0 = arith.constant 0 : i32
    %c0_i32_1 = arith.constant 0 : i32
    return %arg0, %c0_i32, %c0_i32_0 : i32, i32, i32
  }
}

</mosaic_0001>

<llo_original>
// kernel: a_call__.5
$region0: #{a_call__.5}
  #allocation0 [shape = 'u32[]', space=smem, size = 0x4, offset = 0x4, fixed_abs, tag = 'smem constant byte address 0x4 - core index']
  #allocation1 [shape = 'u32[144,128]{1,0:T(1,128)}', space=vmem, size = 0x12000, scoped, tag = 'internal scratch']
  %s0 = inlined_call_operand.vmem [shape: bf16[2,16,640], index: 0, kind: input, shape index: {}]
  %s1 = inlined_call_operand.vmem [shape: bf16[2,16,144], index: 1, kind: input, shape index: {}]
  %s2 = inlined_call_operand.vmem [shape: f32[2,16,2], index: 2, kind: input, shape index: {}]
  %s3 = inlined_call_operand.vmem [shape: bf16[2,16,640], index: 3, kind: output, shape index: {}]
  %s4 = sld [smem:[#allocation0]]
  $region45: #{a_call__.5} parent=0
    _
  %s6 = ssub.s32 1, %s4
  %s7 = scalar_select 0, %s6, %s4
  loop: start=0, step=1, limit=4
  $region2: #{a_call__.5} parent=0 // loop_pre_header
    _
  $region3: #{a_call__.5} parent=0 // loop_header
    %s9 = sphi 0, %s13
    %p10 = scmp.ge.s32.totalorder %s9, 4
    %s19 = sphi 0, %s21
    %s22 = sphi 0, %s19
    %s23 = sphi 0, %s22
    %s39 = sphi 0, %s23
    %s43 = sphi 0, %s43
    %s45 = sphi 0, %s43
    %s46 = sphi 0, %s45
    %s60 = sphi 0, %s46
    %s64 = sphi 0, %s64
    %s66 = sphi 0, %s64
    %s67 = sphi 0, %s66
    %s81 = sphi 0, %s67
    %s87 = sphi 0, %s89
    %s90 = sphi 0, %s87
    %s91 = sphi 0, %s90
    %s107 = sphi 0, %s91
  $region4: #{a_call__.5} parent=0 // loop_header_branch
    %12 = sbr.rel (%p10) target = $region8
  $region5: #{a_call__.5} parent=0 // loop_body
    %s14 = ssub.s32 %s9, 1
    %s15 = ssub.s32 %s9, 2
    %s16 = sadd.s32 %s9, 1
    %s17 = ssub.s32 %s9, %s16
    %p18 = scmp.eq.s32.totalorder %s17, 0
    %s20 = sadd.s32 %s19, 1
    %s21 = scalar_select %p18, %s19, %s20
    %p24 = pneg %p18
    %p25 = scmp.eq.s32.totalorder %s9, 1
    %p26 = por %p24, %p25
    %p27 = scmp.ne.s32.totalorder %s19, %s22
    %p28 = scmp.eq.s32.totalorder %s9, 0
    %p29 = por %p27, %p28
    %p30 = scmp.ne.s32.totalorder %s19, %s22
    %p31 = scmp.eq.s32.totalorder %s14, 1
    %p32 = por %p30, %p31
    %p33 = scmp.ne.s32.totalorder %s22, %s23
    %p34 = scmp.eq.s32.totalorder %s14, 0
    %p35 = por %p33, %p34
    %p36 = scmp.ne.s32.totalorder %s22, %s23
    %p37 = scmp.eq.s32.totalorder %s15, 1
    %p38 = por %p36, %p37
    %p40 = scmp.ne.s32.totalorder %s23, %s39
    %p41 = scmp.eq.s32.totalorder %s15, 0
    %p42 = por %p40, %p41
    %s44 = sadd.s32 %s43, 1
    %p47 = scmp.eq.s32.totalorder %s9, 1
    %p48 = scmp.ne.s32.totalorder %s43, %s45
    %p49 = scmp.eq.s32.totalorder %s9, 0
    %p50 = por %p48, %p49
    %p51 = scmp.ne.s32.totalorder %s43, %s45
    %p52 = scmp.eq.s32.totalorder %s14, 1
    %p53 = por %p51, %p52
    %p54 = scmp.ne.s32.totalorder %s45, %s46
    %p55 = scmp.eq.s32.totalorder %s14, 0
    %p56 = por %p54, %p55
    %p57 = scmp.ne.s32.totalorder %s45, %s46
    %p58 = scmp.eq.s32.totalorder %s15, 1
    %p59 = por %p57, %p58
    %p61 = scmp.ne.s32.totalorder %s46, %s60
    %p62 = scmp.eq.s32.totalorder %s15, 0
    %p63 = por %p61, %p62
    %s65 = sadd.s32 %s64, 1
    %p68 = scmp.eq.s32.totalorder %s9, 1
    %p69 = scmp.ne.s32.totalorder %s64, %s66
    %p70 = scmp.eq.s32.totalorder %s9, 0
    %p71 = por %p69, %p70
    %p72 = scmp.ne.s32.totalorder %s64, %s66
    %p73 = scmp.eq.s32.totalorder %s14, 1
    %p74 = por %p72, %p73
    %p75 = scmp.ne.s32.totalorder %s66, %s67
    %p76 = scmp.eq.s32.totalorder %s14, 0
    %p77 = por %p75, %p76
    %p78 = scmp.ne.s32.totalorder %s66, %s67
    %p79 = scmp.eq.s32.totalorder %s15, 1
    %p80 = por %p78, %p79
    %p82 = scmp.ne.s32.totalorder %s67, %s81
    %p83 = scmp.eq.s32.totalorder %s15, 0
    %p84 = por %p82, %p83
    %s85 = ssub.s32 %s9, %s16
    %p86 = scmp.eq.s32.totalorder %s85, 0
    %s88 = sadd.s32 %s87, 1
    %s89 = scalar_select %p86, %s87, %s88
    %p92 = pneg %p86
    %p93 = scmp.eq.s32.totalorder %s9, 1
    %p94 = por %p92, %p93
    %p95 = scmp.ne.s32.totalorder %s87, %s90
    %p96 = scmp.eq.s32.totalorder %s9, 0
    %p97 = por %p95, %p96
    %p98 = scmp.ne.s32.totalorder %s87, %s90
    %p99 = scmp.eq.s32.totalorder %s14, 1
    %p100 = por %p98, %p99
    %p101 = scmp.ne.s32.totalorder %s90, %s91
    %p102 = scmp.eq.s32.totalorder %s14, 0
    %p103 = por %p101, %p102
    %p104 = scmp.ne.s32.totalorder %s90, %s91
    %p105 = scmp.eq.s32.totalorder %s15, 1
    %p106 = por %p104, %p105
    %p108 = scmp.ne.s32.totalorder %s91, %s107
    %p109 = scmp.eq.s32.totalorder %s15, 0
    %p110 = por %p108, %p109
    %p111 = scmp.le.s32.totalorder 1, %s9
    %p112 = scmp.lt.s32.totalorder %s9, 3
    %p113 = pnand %p111, %p112
    %p114 = pneg %p113
    // Predicated region
    $region9: #{a_call__.5} parent=5 // pred_check
      _
    $region10: #{a_call__.5} parent=5 // pred_check_branch
      %116 = sbr.rel (%p113) target = $region12
    $region11: #{a_call__.5} parent=5 // pred_region
      %s117 = ssub.s32 %s9, 1
      // Predicated region
      $region13: #{a_call__.5} parent=11 // pred_check
        %p118 = pneg %p56
      $region14: #{a_call__.5} parent=11 // pred_check_branch
        %120 = sbr.rel (%p118) target = $region16
      $region15: #{a_call__.5} parent=11 // pred_region
        _
      $region16: #{a_call__.5} parent=11 // pred_fallthru
        _
      // Predicated region
      $region17: #{a_call__.5} parent=11 // pred_check
        %p121 = pneg %p77
      $region18: #{a_call__.5} parent=11 // pred_check_branch
        %123 = sbr.rel (%p121) target = $region20
      $region19: #{a_call__.5} parent=11 // pred_region
        _
      $region20: #{a_call__.5} parent=11 // pred_fallthru
        _
    $region12: #{a_call__.5} parent=5 // pred_fallthru
      _
    %p124 = scmp.lt.s32.totalorder %s9, 2
    // Predicated region
    $region21: #{a_call__.5} parent=5 // pred_check
      %p125 = pneg %p124
    $region22: #{a_call__.5} parent=5 // pred_check_branch
      %127 = sbr.rel (%p125) target = $region24
    $region23: #{a_call__.5} parent=5 // pred_region
      // Predicated region
      $region25: #{a_call__.5} parent=23 // pred_check
        %p128 = pneg %p29
      $region26: #{a_call__.5} parent=23 // pred_check_branch
        %130 = sbr.rel (%p128) target = $region28
      $region27: #{a_call__.5} parent=23 // pred_region
        %p131 = scmp.lt.s32.totalorder %s9, 1
        %s132 = scalar_select %p131, %s9, 1
        %s133 = smul.addr %s132, 10
        %s134 = smul.addr %s133, 4
        %s135 = scalar_lea.vmem %s0, %s134
      $region28: #{a_call__.5} parent=23 // pred_fallthru
        _
    $region24: #{a_call__.5} parent=5 // pred_fallthru
      _
    %p136 = scmp.le.s32.totalorder 1, %s9
    %p137 = scmp.lt.s32.totalorder %s9, 3
    %p138 = pnand %p136, %p137
    %p139 = pneg %p138
    // Predicated region
    $region29: #{a_call__.5} parent=5 // pred_check
      _
    $region30: #{a_call__.5} parent=5 // pred_check_branch
      %141 = sbr.rel (%p138) target = $region32
    $region31: #{a_call__.5} parent=5 // pred_region
      %s142 = ssub.s32 %s9, 1
      %p143 = scmp.lt.s32.totalorder %s14, 1
      %s144 = scalar_select %p143, %s14, 1
      %s145 = smul.addr %s144, 10
      %s146 = smul.addr %s145, 4
      %s147 = scalar_lea.vmem %s0, %s146
      %p148 = pneg %p35
      %p149 = pneg %p32
      %p150 = pneg %p56
      %p151 = pneg %p53
      %p152 = pneg %p77
      %p153 = pneg %p74
      %p154 = pneg %p103
      %p155 = pneg %p100
      %p156 = scmp.lt.s32.totalorder %s14, 1
      %s157 = scalar_select %p156, %s14, 1
      %s158 = smul.addr %s157, 10
      %s159 = smul.addr %s158, 4
      %s160 = scalar_lea.vmem %s3, %s159
      %p161 = scmp.lt.s32.totalorder %s14, 1
      %s162 = scalar_select %p161, %s14, 1
      %s163 = smul.addr %s162, 10
      %s164 = smul.addr %s163, 4
      %s165 = scalar_lea.vmem %s0, %s164
      %p166 = scmp.lt.s32.totalorder %s14, 1
      %s167 = scalar_select %p166, %s14, 1
      %s168 = smul.addr %s167, 10
      %s169 = smul.addr %s168, 4
      %s170 = scalar_lea.vmem %s3, %s169
      %v172 = vlaneseq
      %v173 = vand.u32 %v172, 127
      %v174 = vadd.s32 %v173, 128
      %v175 = vadd.s32 %v173, 256
      %v176 = vcvt.s32.f32 %v173
      %v177 = vcvt.s32.f32 %v174
      %v178 = vcvt.s32.f32 %v175
      %v179 = vrcp.pop 18.0
      %v180 = vmul.f32 %v176, %v179
      %v181 = vmul.f32 %v177, %v179
      %v182 = vmul.f32 %v178, %v179
      %v183 = vfloor.f32 %v180
      %v184 = vfloor.f32 %v181
      %v185 = vfloor.f32 %v182
      %v186 = vmul.f32 %v183, 18.0
      %v187 = vmul.f32 %v184, 18.0
      %v188 = vmul.f32 %v185, 18.0
      %v189 = vsub.f32 %v176, %v186
      %v190 = vsub.f32 %v177, %v187
      %v191 = vsub.f32 %v178, %v188
      %vm192 = vcmp.ge.f32.partialorder %v183, 1.0
      %vm193 = vcmp.ge.f32.partialorder %v184, 1.0
      %vm194 = vcmp.ge.f32.partialorder %v185, 1.0
      %vm195 = vcmp.lt.f32.partialorder %v183, 17.0
      %vm196 = vcmp.lt.f32.partialorder %v184, 17.0
      %vm197 = vcmp.lt.f32.partialorder %v185, 17.0
      %vm198 = vmand %vm192, %vm195
      %vm199 = vmand %vm193, %vm196
      %vm200 = vmand %vm194, %vm197
      %vm201 = vcmp.ge.f32.partialorder %v189, 1.0
      %vm202 = vcmp.ge.f32.partialorder %v190, 1.0
      %vm203 = vcmp.ge.f32.partialorder %v191, 1.0
      %vm204 = vmand %vm198, %vm201
      %vm205 = vmand %vm199, %vm202
      %vm206 = vmand %vm200, %vm203
      %vm207 = vcmp.lt.f32.partialorder %v189, 17.0
      %vm208 = vcmp.lt.f32.partialorder %v190, 17.0
      %vm209 = vcmp.lt.f32.partialorder %v191, 17.0
      %vm210 = vmand %vm204, %vm207
      %vm211 = vmand %vm205, %vm208
      %vm212 = vmand %vm206, %vm209
      %v213 = vld [vmem:[%s165] sm:$0xff]
      %v214 = vld [vmem:[%s165 + $0x8] sm:$0xff]
      %v215 = vld [vmem:[%s165 + $0x10] sm:$0xf]
      %v216 = vld [vmem:[%s165 + $0x14] sm:$0xff]
      %v217 = vld [vmem:[%s165 + $0x1c] sm:$0xff]
      %v218 = vld [vmem:[%s165 + $0x24] sm:$0xf]
      %v223 = vunpack.c.l.b16 %v213
      %v224 = vunpack.c.h.b16 %v213
      %v225 = vunpack.c.l.b16 %v214
      %v226 = vunpack.c.h.b16 %v214
      %v227 = vunpack.c.l.b16 %v216
      %v228 = vunpack.c.h.b16 %v216
      %v229 = vunpack.c.l.b16 %v217
      %v230 = vunpack.c.h.b16 %v217
      %v231 = vpack.c.b16 %v227, %v223
      %v232 = vpack.c.b16 %v228, %v224
      %v233 = vpack.c.b16 %v229, %v225
      %v234 = vpack.c.b16 %v230, %v226
      %235 = vrot.lane.b32.xlu0 %v231, 127
      %v236 = vpop.permute.xlu0 %235
      %237 = vrot.lane.b32.xlu0 %v232, 127
      %v238 = vpop.permute.xlu0 %237
      %239 = vrot.lane.b32.xlu0 %v233, 127
      %v240 = vpop.permute.xlu0 %239
      %241 = vrot.lane.b32.xlu0 %v234, 127
      %v242 = vpop.permute.xlu0 %241
      %vm243 = vcmask 1039360
      %v244 = vsel %vm243, %v236, %v238
      %v245 = vsel %vm243, %v238, %v240
      %v246 = vsel %vm243, %v240, %v242
      %247 = vrot.lane.b32.xlu0 %v231, 126
      %v248 = vpop.permute.xlu0 %247
      %249 = vrot.lane.b32.xlu0 %v232, 126
      %v250 = vpop.permute.xlu0 %249
      %251 = vrot.lane.b32.xlu0 %v233, 126
      %v252 = vpop.permute.xlu0 %251
      %253 = vrot.lane.b32.xlu0 %v234, 126
      %v254 = vpop.permute.xlu0 %253
      %vm255 = vcmask 1031168
      %v256 = vsel %vm255, %v248, %v250
      %v257 = vsel %vm255, %v250, %v252
      %v258 = vsel %vm255, %v252, %v254
      %259 = vrot.lane.b32.xlu0 %v231, 110
      %v260 = vpop.permute.xlu0 %259
      %261 = vrot.lane.b32.xlu0 %v232, 110
      %v262 = vpop.permute.xlu0 %261
      %263 = vrot.lane.b32.xlu0 %v233, 110
      %v264 = vpop.permute.xlu0 %263
      %265 = vrot.lane.b32.xlu0 %v234, 110
      %v266 = vpop.permute.xlu0 %265
      %vm267 = vcmask 900096
      %v268 = vsel %vm267, %v260, %v262
      %v269 = vsel %vm267, %v262, %v264
      %v270 = vsel %vm267, %v264, %v266
      %271 = vrot.lane.b32.xlu0 %v232, 109
      %v272 = vpop.permute.xlu0 %271
      %273 = vrot.lane.b32.xlu0 %v233, 109
      %v274 = vpop.permute.xlu0 %273
      %275 = vrot.lane.b32.xlu0 %v234, 109
      %v276 = vpop.permute.xlu0 %275
      %vm277 = vcmask 891904
      %v278 = vsel %vm277, %v272, %v274
      %v279 = vsel %vm277, %v274, %v276
      %v282 = vunpack.c.l.b16 %v215
      %v283 = vunpack.c.l.b16 %v218
      %v284 = vpack.c.b16 %v283, %v282
      %285 = vrot.lane.b32.xlu0 %v232, 108
      %v286 = vpop.permute.xlu0 %285
      %287 = vrot.lane.b32.xlu0 %v233, 108
      %v288 = vpop.permute.xlu0 %287
      %289 = vrot.lane.b32.xlu0 %v234, 108
      %v290 = vpop.permute.xlu0 %289
      %291 = vrot.lane.b32.xlu0 %v284, 108
      %v292 = vpop.permute.xlu0 %291
      %vm293 = vcmask 883712
      %v294 = vsel %vm293, %v286, %v288
      %v295 = vsel %vm293, %v288, %v290
      %v296 = vsel %vm293, %v290, %v292
      %297 = vrot.lane.b32.xlu0 %v232, 92
      %v298 = vpop.permute.xlu0 %297
      %299 = vrot.lane.b32.xlu0 %v233, 92
      %v300 = vpop.permute.xlu0 %299
      %301 = vrot.lane.b32.xlu0 %v234, 92
      %v302 = vpop.permute.xlu0 %301
      %303 = vrot.lane.b32.xlu0 %v284, 92
      %v304 = vpop.permute.xlu0 %303
      %vm305 = vcmask 752640
      %v306 = vsel %vm305, %v298, %v300
      %v307 = vsel %vm305, %v300, %v302
      %v308 = vsel %vm305, %v302, %v304
      %309 = vrot.lane.b32.xlu0 %v232, 91
      %v310 = vpop.permute.xlu0 %309
      %311 = vrot.lane.b32.xlu0 %v233, 91
      %v312 = vpop.permute.xlu0 %311
      %313 = vrot.lane.b32.xlu0 %v234, 91
      %v314 = vpop.permute.xlu0 %313
      %315 = vrot.lane.b32.xlu0 %v284, 91
      %v316 = vpop.permute.xlu0 %315
      %vm317 = vcmask 744448
      %v318 = vsel %vm317, %v310, %v312
      %v319 = vsel %vm317, %v312, %v314
      %v320 = vsel %vm317, %v314, %v316
      %321 = vrot.lane.b32.xlu0 %v232, 90
      %v322 = vpop.permute.xlu0 %321
      %323 = vrot.lane.b32.xlu0 %v233, 90
      %v324 = vpop.permute.xlu0 %323
      %325 = vrot.lane.b32.xlu0 %v234, 90
      %v326 = vpop.permute.xlu0 %325
      %327 = vrot.lane.b32.xlu0 %v284, 90
      %v328 = vpop.permute.xlu0 %327
      %vm329 = vcmask 736256
      %v330 = vsel %vm329, %v322, %v324
      %v331 = vsel %vm329, %v324, %v326
      %v332 = vsel %vm329, %v326, %v328
      %v333 = vld [vmem:[%s1] sm:$0xff]
      %v334 = vld [vmem:[%s1 + $0x8] sm:$0xff]
      %v337 = vunpack.c.l.b16 %v333
      %v338 = vunpack.c.h.b16 %v333
      %v339 = vunpack.c.l.b16 %v334
      %v340 = vunpack.c.h.b16 %v334
      %v341 = vpack.c.b16 %v339, %v337
      %v342 = vpack.c.b16 %v340, %v338
      %344 = vrot.lane.b32.xlu0 %v231, 19
      %v345 = vpop.permute.xlu0 %344
      %346 = vrot.lane.b32.xlu0 %v232, 19
      %v347 = vpop.permute.xlu0 %346
      %348 = vrot.lane.b32.xlu0 %v233, 19
      %v349 = vpop.permute.xlu0 %348
      %350 = vrot.lane.b32.xlu0 %v234, 19
      %v351 = vpop.permute.xlu0 %350
      %352 = vrot.lane.b32.xlu0 %v244, 19
      %v353 = vpop.permute.xlu0 %352
      %354 = vrot.lane.b32.xlu0 %v245, 19
      %v355 = vpop.permute.xlu0 %354
      %356 = vrot.lane.b32.xlu0 %v246, 19
      %v357 = vpop.permute.xlu0 %356
      %358 = vrot.lane.b32.xlu0 %v242, 19
      %v359 = vpop.permute.xlu0 %358
      %360 = vrot.lane.b32.xlu0 %v256, 19
      %v361 = vpop.permute.xlu0 %360
      %362 = vrot.lane.b32.xlu0 %v257, 19
      %v363 = vpop.permute.xlu0 %362
      %364 = vrot.lane.b32.xlu0 %v258, 19
      %v365 = vpop.permute.xlu0 %364
      %366 = vrot.lane.b32.xlu0 %v254, 19
      %v367 = vpop.permute.xlu0 %366
      %368 = vrot.lane.b32.xlu0 %v268, 19
      %v369 = vpop.permute.xlu0 %368
      %370 = vrot.lane.b32.xlu0 %v269, 19
      %v371 = vpop.permute.xlu0 %370
      %372 = vrot.lane.b32.xlu0 %v270, 19
      %v373 = vpop.permute.xlu0 %372
      %374 = vrot.lane.b32.xlu0 %v266, 19
      %v375 = vpop.permute.xlu0 %374
      %376 = vrot.lane.b32.xlu0 %v272, 19
      %v377 = vpop.permute.xlu0 %376
      %378 = vrot.lane.b32.xlu0 %v278, 19
      %v379 = vpop.permute.xlu0 %378
      %380 = vrot.lane.b32.xlu0 %v279, 19
      %v381 = vpop.permute.xlu0 %380
      %382 = vrot.lane.b32.xlu0 %v276, 19
      %v383 = vpop.permute.xlu0 %382
      %384 = vrot.lane.b32.xlu0 %v286, 19
      %v385 = vpop.permute.xlu0 %384
      %386 = vrot.lane.b32.xlu0 %v294, 19
      %v387 = vpop.permute.xlu0 %386
      %388 = vrot.lane.b32.xlu0 %v295, 19
      %v389 = vpop.permute.xlu0 %388
      %390 = vrot.lane.b32.xlu0 %v296, 19
      %v391 = vpop.permute.xlu0 %390
      %392 = vrot.lane.b32.xlu0 %v298, 19
      %v393 = vpop.permute.xlu0 %392
      %394 = vrot.lane.b32.xlu0 %v306, 19
      %v395 = vpop.permute.xlu0 %394
      %396 = vrot.lane.b32.xlu0 %v307, 19
      %v397 = vpop.permute.xlu0 %396
      %398 = vrot.lane.b32.xlu0 %v308, 19
      %v399 = vpop.permute.xlu0 %398
      %400 = vrot.lane.b32.xlu0 %v310, 19
      %v401 = vpop.permute.xlu0 %400
      %402 = vrot.lane.b32.xlu0 %v318, 19
      %v403 = vpop.permute.xlu0 %402
      %404 = vrot.lane.b32.xlu0 %v319, 19
      %v405 = vpop.permute.xlu0 %404
      %406 = vrot.lane.b32.xlu0 %v320, 19
      %v407 = vpop.permute.xlu0 %406
      %408 = vrot.lane.b32.xlu0 %v322, 19
      %v409 = vpop.permute.xlu0 %408
      %410 = vrot.lane.b32.xlu0 %v330, 19
      %v411 = vpop.permute.xlu0 %410
      %412 = vrot.lane.b32.xlu0 %v331, 19
      %v413 = vpop.permute.xlu0 %412
      %414 = vrot.lane.b32.xlu0 %v332, 19
      %v415 = vpop.permute.xlu0 %414
      %vm416 = vcmask 154624
      %v417 = vsel %vm416, %v345, %v347
      %v418 = vsel %vm416, %v347, %v349
      %v419 = vsel %vm416, %v349, %v351
      %v420 = vsel %vm416, %v353, %v355
      %v421 = vsel %vm416, %v355, %v357
      %v422 = vsel %vm416, %v357, %v359
      %v423 = vsel %vm416, %v361, %v363
      %v424 = vsel %vm416, %v363, %v365
      %v425 = vsel %vm416, %v365, %v367
      %v426 = vsel %vm416, %v369, %v371
      %v427 = vsel %vm416, %v371, %v373
      %v428 = vsel %vm416, %v373, %v375
      %v429 = vsel %vm416, %v377, %v379
      %v430 = vsel %vm416, %v379, %v381
      %v431 = vsel %vm416, %v381, %v383
      %v432 = vsel %vm416, %v385, %v387
      %v433 = vsel %vm416, %v387, %v389
      %v434 = vsel %vm416, %v389, %v391
      %v435 = vsel %vm416, %v393, %v395
      %v436 = vsel %vm416, %v395, %v397
      %v437 = vsel %vm416, %v397, %v399
      %v438 = vsel %vm416, %v401, %v403
      %v439 = vsel %vm416, %v403, %v405
      %v440 = vsel %vm416, %v405, %v407
      %v441 = vsel %vm416, %v409, %v411
      %v442 = vsel %vm416, %v411, %v413
      %v443 = vsel %vm416, %v413, %v415
      %vm471 = vcmask 130048
      %v473 = vsel %vm471, %v342, 0
      %475 = vmatprep.subr.bf16.mxu0 %v418
      %476 = vmatpush1.bf16.msra.mxu0 %v417
      %477 = vmatprep.subr.bf16.mxu0 %v421
      %478 = vmatpush1.bf16.msra.mxu0 %v420
      %479 = vmatprep.subr.bf16.mxu0 %v424
      %480 = vmatpush1.bf16.msra.mxu0 %v423
      %481 = vmatprep.subr.bf16.mxu0 %v427
      %482 = vmatpush1.bf16.msra.mxu0 %v426
      %483 = vmatprep.subr.bf16.mxu0 %v430
      %484 = vmatpush1.bf16.msra.mxu0 %v429
      %485 = vmatprep.subr.bf16.mxu0 %v433
      %486 = vmatpush1.bf16.msra.mxu0 %v432
      %487 = vmatprep.subr.bf16.mxu0 %v436
      %488 = vmatpush1.bf16.msra.mxu0 %v435
      %489 = vmatprep.subr.bf16.mxu0 %v439
      %490 = vmatpush1.bf16.msra.mxu0 %v438
      %491 = vmatprep.subr.bf16.mxu0 %v442
      %492 = vmatpush1.bf16.msra.mxu0 %v441
      %493 = vmatprep.subr.bf16.mxu0 0
      %494 = vmatpush1.bf16.msra.mxu0 0
      %495 = vmatprep.subr.bf16.mxu0 0
      %496 = vmatpush1.bf16.msra.mxu0 0
      %497 = vmatprep.subr.bf16.mxu0 0
      %498 = vmatpush1.bf16.msra.mxu0 0
      %499 = vmatprep.subr.bf16.mxu0 0
      %500 = vmatpush1.bf16.msra.mxu0 0
      %501 = vmatprep.subr.bf16.mxu0 0
      %502 = vmatpush1.bf16.msra.mxu0 0
      %503 = vmatprep.subr.bf16.mxu0 0
      %504 = vmatpush1.bf16.msra.mxu0 0
      %505 = vmatprep.subr.bf16.mxu0 0
      %506 = vmatpush1.bf16.msra.mxu0 0
      %507 = vmatprep.mubr.bf16.mxu0 %v473
      %508 = vmatmul.mubr.bf16.gmra.mrb[0].mxu0 %v341
      %v509 = vpop.f32.mrb[0].mxu0
      %v510 = vadd.f32 0.0, %v509
      %v511 = vpop.f32.mrb[0].mxu0
      %v512 = vadd.f32 0.0, %v511
      %v513 = vpop.f32.mrb[0].mxu0
      %v514 = vadd.f32 0.0, %v513
      %v515 = vpop.f32.mrb[0].mxu0
      %v516 = vadd.f32 0.0, %v515
      %517 = vdwg.mxu0
      %518 = vmatprep.subr.bf16.mxu0 0
      %519 = vmatpush1.bf16.msra.mxu0 %v419
      %520 = vmatprep.subr.bf16.mxu0 0
      %521 = vmatpush1.bf16.msra.mxu0 %v422
      %522 = vmatprep.subr.bf16.mxu0 0
      %523 = vmatpush1.bf16.msra.mxu0 %v425
      %524 = vmatprep.subr.bf16.mxu0 0
      %525 = vmatpush1.bf16.msra.mxu0 %v428
      %526 = vmatprep.subr.bf16.mxu0 0
      %527 = vmatpush1.bf16.msra.mxu0 %v431
      %528 = vmatprep.subr.bf16.mxu0 0
      %529 = vmatpush1.bf16.msra.mxu0 %v434
      %530 = vmatprep.subr.bf16.mxu0 0
      %531 = vmatpush1.bf16.msra.mxu0 %v437
      %532 = vmatprep.subr.bf16.mxu0 0
      %533 = vmatpush1.bf16.msra.mxu0 %v440
      %534 = vmatprep.subr.bf16.mxu0 0
      %535 = vmatpush1.bf16.msra.mxu0 %v443
      %536 = vmatprep.subr.bf16.mxu0 0
      %537 = vmatpush1.bf16.msra.mxu0 0
      %538 = vmatprep.subr.bf16.mxu0 0
      %539 = vmatpush1.bf16.msra.mxu0 0
      %540 = vmatprep.subr.bf16.mxu0 0
      %541 = vmatpush1.bf16.msra.mxu0 0
      %542 = vmatprep.subr.bf16.mxu0 0
      %543 = vmatpush1.bf16.msra.mxu0 0
      %544 = vmatprep.subr.bf16.mxu0 0
      %545 = vmatpush1.bf16.msra.mxu0 0
      %546 = vmatprep.subr.bf16.mxu0 0
      %547 = vmatpush1.bf16.msra.mxu0 0
      %548 = vmatprep.subr.bf16.mxu0 0
      %549 = vmatpush1.bf16.msra.mxu0 0
      %550 = vmatprep.mubr.bf16.mxu0 %v473
      %551 = vmatmul.mubr.bf16.gmra.mrb[0].mxu0 %v341
      %v552 = vpop.f32.mrb[0].mxu0
      %v553 = vadd.f32 0.0, %v552
      %v554 = vpop.f32.mrb[0].mxu0
      %v555 = vpop.f32.mrb[0].mxu0
      %v556 = vadd.f32 0.0, %v555
      %v557 = vpop.f32.mrb[0].mxu0
      %558 = vdwg.mxu0
      %v559 = vld [vmem:[%s2] sm:$0xff]
      %v560 = vld [vmem:[%s2 + $0x8] sm:$0xff]
      %562 = vset.pattern.permute.xlu0 0
      %563 = vperm.xlu0 %562, %v559
      %v564 = vpop.permute.xlu0 %563
      %567 = vset.pattern.permute.xlu0 0
      %568 = vperm.xlu0 %567, %v560
      %v569 = vpop.permute.xlu0 %568
      %v571 = vmul.f32 %v510, %v564
      %v572 = vmul.f32 %v512, %v564
      %v573 = vmul.f32 %v553, %v564
      %v574 = vmul.f32 %v514, %v569
      %v575 = vmul.f32 %v516, %v569
      %v576 = vmul.f32 %v556, %v569
      %577 = vset.pattern.permute.xlu0 1
      %578 = vperm.xlu0 %577, %v559
      %v579 = vpop.permute.xlu0 %578
      %581 = vset.pattern.permute.xlu0 1
      %582 = vperm.xlu0 %581, %v560
      %v583 = vpop.permute.xlu0 %582
      %v585 = vadd.f32 %v571, %v579
      %v586 = vadd.f32 %v572, %v579
      %v587 = vadd.f32 %v573, %v579
      %v588 = vadd.f32 %v574, %v583
      %v589 = vadd.f32 %v575, %v583
      %v590 = vadd.f32 %v576, %v583
      %v591 = vmax.f32 %v585, 0.0
      %v592 = vmax.f32 %v586, 0.0
      %v593 = vmax.f32 %v587, 0.0
      %v594 = vmax.f32 %v588, 0.0
      %v595 = vmax.f32 %v589, 0.0
      %v596 = vmax.f32 %v590, 0.0
      %v597 = vsel %vm210, 1, 0
      %v598 = vsel %vm211, 1, 0
      %v599 = vsel %vm212, 1, 0
      %vm600 = vcmp.eq.s32.totalorder %v597, 1
      %vm601 = vcmp.eq.s32.totalorder %v598, 1
      %vm602 = vcmp.eq.s32.totalorder %v599, 1
      %v603 = vsel %vm600, %v591, 0.0
      %v604 = vsel %vm601, %v592, 0.0
      %v605 = vsel %vm602, %v593, 0.0
      %v606 = vsel %vm600, %v594, 0.0
      %v607 = vsel %vm601, %v595, 0.0
      %v608 = vsel %vm602, %v596, 0.0
      %v609 = vpack.c.bf16 %v606, %v603
      %v610 = vpack.c.bf16 %v607, %v604
      %v611 = vpack.c.bf16 %v608, %v605
      %616 = vrot.lane.b32.xlu0 0, 127
      %v617 = vpop.permute.xlu0 %616
      %618 = vrot.lane.b32.xlu0 %v609, 127
      %v619 = vpop.permute.xlu0 %618
      %620 = vrot.lane.b32.xlu0 %v610, 127
      %v621 = vpop.permute.xlu0 %620
      %622 = vrot.lane.b32.xlu0 %v611, 127
      %v623 = vpop.permute.xlu0 %622
      %v624 = vsel %vm243, %v617, %v619
      %v625 = vsel %vm243, %v619, %v621
      %v626 = vsel %vm243, %v621, %v623
      %627 = vrot.lane.b32.xlu0 0, 126
      %v628 = vpop.permute.xlu0 %627
      %629 = vrot.lane.b32.xlu0 %v609, 126
      %v630 = vpop.permute.xlu0 %629
      %631 = vrot.lane.b32.xlu0 %v610, 126
      %v632 = vpop.permute.xlu0 %631
      %633 = vrot.lane.b32.xlu0 %v611, 126
      %v634 = vpop.permute.xlu0 %633
      %v635 = vsel %vm255, %v628, %v630
      %v636 = vsel %vm255, %v630, %v632
      %v637 = vsel %vm255, %v632, %v634
      %638 = vrot.lane.b32.xlu0 0, 110
      %v639 = vpop.permute.xlu0 %638
      %640 = vrot.lane.b32.xlu0 %v609, 110
      %v641 = vpop.permute.xlu0 %640
      %642 = vrot.lane.b32.xlu0 %v610, 110
      %v643 = vpop.permute.xlu0 %642
      %644 = vrot.lane.b32.xlu0 %v611, 110
      %v645 = vpop.permute.xlu0 %644
      %v646 = vsel %vm267, %v639, %v641
      %v647 = vsel %vm267, %v641, %v643
      %v648 = vsel %vm267, %v643, %v645
      %649 = vrot.lane.b32.xlu0 %v609, 109
      %v650 = vpop.permute.xlu0 %649
      %651 = vrot.lane.b32.xlu0 %v610, 109
      %v652 = vpop.permute.xlu0 %651
      %653 = vrot.lane.b32.xlu0 %v611, 109
      %v654 = vpop.permute.xlu0 %653
      %v655 = vsel %vm277, %v650, %v652
      %v656 = vsel %vm277, %v652, %v654
      %657 = vrot.lane.b32.xlu0 %v609, 108
      %v658 = vpop.permute.xlu0 %657
      %659 = vrot.lane.b32.xlu0 %v610, 108
      %v660 = vpop.permute.xlu0 %659
      %661 = vrot.lane.b32.xlu0 %v611, 108
      %v662 = vpop.permute.xlu0 %661
      %663 = vrot.lane.b32.xlu0 0, 108
      %v664 = vpop.permute.xlu0 %663
      %v665 = vsel %vm293, %v658, %v660
      %v666 = vsel %vm293, %v660, %v662
      %v667 = vsel %vm293, %v662, %v664
      %668 = vrot.lane.b32.xlu0 %v609, 92
      %v669 = vpop.permute.xlu0 %668
      %670 = vrot.lane.b32.xlu0 %v610, 92
      %v671 = vpop.permute.xlu0 %670
      %672 = vrot.lane.b32.xlu0 %v611, 92
      %v673 = vpop.permute.xlu0 %672
      %674 = vrot.lane.b32.xlu0 0, 92
      %v675 = vpop.permute.xlu0 %674
      %v676 = vsel %vm305, %v669, %v671
      %v677 = vsel %vm305, %v671, %v673
      %v678 = vsel %vm305, %v673, %v675
      %679 = vrot.lane.b32.xlu0 %v609, 91
      %v680 = vpop.permute.xlu0 %679
      %681 = vrot.lane.b32.xlu0 %v610, 91
      %v682 = vpop.permute.xlu0 %681
      %683 = vrot.lane.b32.xlu0 %v611, 91
      %v684 = vpop.permute.xlu0 %683
      %685 = vrot.lane.b32.xlu0 0, 91
      %v686 = vpop.permute.xlu0 %685
      %v687 = vsel %vm317, %v680, %v682
      %v688 = vsel %vm317, %v682, %v684
      %v689 = vsel %vm317, %v684, %v686
      %690 = vrot.lane.b32.xlu0 %v609, 90
      %v691 = vpop.permute.xlu0 %690
      %692 = vrot.lane.b32.xlu0 %v610, 90
      %v693 = vpop.permute.xlu0 %692
      %694 = vrot.lane.b32.xlu0 %v611, 90
      %v695 = vpop.permute.xlu0 %694
      %696 = vrot.lane.b32.xlu0 0, 90
      %v697 = vpop.permute.xlu0 %696
      %v698 = vsel %vm329, %v691, %v693
      %v699 = vsel %vm329, %v693, %v695
      %v700 = vsel %vm329, %v695, %v697
      %s701 = scalar_lea.vmem %s1, 16
      %v702 = vld [vmem:[%s701] sm:$0xff]
      %v703 = vld [vmem:[%s701 + $0x8] sm:$0xff]
      %v706 = vunpack.c.l.b16 %v702
      %v707 = vunpack.c.h.b16 %v702
      %v708 = vunpack.c.l.b16 %v703
      %v709 = vunpack.c.h.b16 %v703
      %v710 = vpack.c.b16 %v708, %v706
      %v711 = vpack.c.b16 %v709, %v707
      %713 = vrot.lane.b32.xlu0 0, 19
      %v714 = vpop.permute.xlu0 %713
      %715 = vrot.lane.b32.xlu0 %v609, 19
      %v716 = vpop.permute.xlu0 %715
      %717 = vrot.lane.b32.xlu0 %v610, 19
      %v718 = vpop.permute.xlu0 %717
      %719 = vrot.lane.b32.xlu0 %v611, 19
      %v720 = vpop.permute.xlu0 %719
      %721 = vrot.lane.b32.xlu0 %v624, 19
      %v722 = vpop.permute.xlu0 %721
      %723 = vrot.lane.b32.xlu0 %v625, 19
      %v724 = vpop.permute.xlu0 %723
      %725 = vrot.lane.b32.xlu0 %v626, 19
      %v726 = vpop.permute.xlu0 %725
      %727 = vrot.lane.b32.xlu0 %v623, 19
      %v728 = vpop.permute.xlu0 %727
      %729 = vrot.lane.b32.xlu0 %v635, 19
      %v730 = vpop.permute.xlu0 %729
      %731 = vrot.lane.b32.xlu0 %v636, 19
      %v732 = vpop.permute.xlu0 %731
      %733 = vrot.lane.b32.xlu0 %v637, 19
      %v734 = vpop.permute.xlu0 %733
      %735 = vrot.lane.b32.xlu0 %v634, 19
      %v736 = vpop.permute.xlu0 %735
      %737 = vrot.lane.b32.xlu0 %v646, 19
      %v738 = vpop.permute.xlu0 %737
      %739 = vrot.lane.b32.xlu0 %v647, 19
      %v740 = vpop.permute.xlu0 %739
      %741 = vrot.lane.b32.xlu0 %v648, 19
      %v742 = vpop.permute.xlu0 %741
      %743 = vrot.lane.b32.xlu0 %v645, 19
      %v744 = vpop.permute.xlu0 %743
      %745 = vrot.lane.b32.xlu0 %v650, 19
      %v746 = vpop.permute.xlu0 %745
      %747 = vrot.lane.b32.xlu0 %v655, 19
      %v748 = vpop.permute.xlu0 %747
      %749 = vrot.lane.b32.xlu0 %v656, 19
      %v750 = vpop.permute.xlu0 %749
      %751 = vrot.lane.b32.xlu0 %v654, 19
      %v752 = vpop.permute.xlu0 %751
      %753 = vrot.lane.b32.xlu0 %v658, 19
      %v754 = vpop.permute.xlu0 %753
      %755 = vrot.lane.b32.xlu0 %v665, 19
      %v756 = vpop.permute.xlu0 %755
      %757 = vrot.lane.b32.xlu0 %v666, 19
      %v758 = vpop.permute.xlu0 %757
      %759 = vrot.lane.b32.xlu0 %v667, 19
      %v760 = vpop.permute.xlu0 %759
      %761 = vrot.lane.b32.xlu0 %v669, 19
      %v762 = vpop.permute.xlu0 %761
      %763 = vrot.lane.b32.xlu0 %v676, 19
      %v764 = vpop.permute.xlu0 %763
      %765 = vrot.lane.b32.xlu0 %v677, 19
      %v766 = vpop.permute.xlu0 %765
      %767 = vrot.lane.b32.xlu0 %v678, 19
      %v768 = vpop.permute.xlu0 %767
      %769 = vrot.lane.b32.xlu0 %v680, 19
      %v770 = vpop.permute.xlu0 %769
      %771 = vrot.lane.b32.xlu0 %v687, 19
      %v772 = vpop.permute.xlu0 %771
      %773 = vrot.lane.b32.xlu0 %v688, 19
      %v774 = vpop.permute.xlu0 %773
      %775 = vrot.lane.b32.xlu0 %v689, 19
      %v776 = vpop.permute.xlu0 %775
      %777 = vrot.lane.b32.xlu0 %v691, 19
      %v778 = vpop.permute.xlu0 %777
      %779 = vrot.lane.b32.xlu0 %v698, 19
      %v780 = vpop.permute.xlu0 %779
      %781 = vrot.lane.b32.xlu0 %v699, 19
      %v782 = vpop.permute.xlu0 %781
      %783 = vrot.lane.b32.xlu0 %v700, 19
      %v784 = vpop.permute.xlu0 %783
      %v785 = vsel %vm416, %v714, %v716
      %v786 = vsel %vm416, %v716, %v718
      %v787 = vsel %vm416, %v718, %v720
      %v788 = vsel %vm416, %v722, %v724
      %v789 = vsel %vm416, %v724, %v726
      %v790 = vsel %vm416, %v726, %v728
      %v791 = vsel %vm416, %v730, %v732
      %v792 = vsel %vm416, %v732, %v734
      %v793 = vsel %vm416, %v734, %v736
      %v794 = vsel %vm416, %v738, %v740
      %v795 = vsel %vm416, %v740, %v742
      %v796 = vsel %vm416, %v742, %v744
      %v797 = vsel %vm416, %v746, %v748
      %v798 = vsel %vm416, %v748, %v750
      %v799 = vsel %vm416, %v750, %v752
      %v800 = vsel %vm416, %v754, %v756
      %v801 = vsel %vm416, %v756, %v758
      %v802 = vsel %vm416, %v758, %v760
      %v803 = vsel %vm416, %v762, %v764
      %v804 = vsel %vm416, %v764, %v766
      %v805 = vsel %vm416, %v766, %v768
      %v806 = vsel %vm416, %v770, %v772
      %v807 = vsel %vm416, %v772, %v774
      %v808 = vsel %vm416, %v774, %v776
      %v809 = vsel %vm416, %v778, %v780
      %v810 = vsel %vm416, %v780, %v782
      %v811 = vsel %vm416, %v782, %v784
      %v840 = vsel %vm471, %v711, 0
      %842 = vmatprep.subr.bf16.mxu0 %v786
      %843 = vmatpush1.bf16.msra.mxu0 %v785
      %844 = vmatprep.subr.bf16.mxu0 %v789
      %845 = vmatpush1.bf16.msra.mxu0 %v788
      %846 = vmatprep.subr.bf16.mxu0 %v792
      %847 = vmatpush1.bf16.msra.mxu0 %v791
      %848 = vmatprep.subr.bf16.mxu0 %v795
      %849 = vmatpush1.bf16.msra.mxu0 %v794
      %850 = vmatprep.subr.bf16.mxu0 %v798
      %851 = vmatpush1.bf16.msra.mxu0 %v797
      %852 = vmatprep.subr.bf16.mxu0 %v801
      %853 = vmatpush1.bf16.msra.mxu0 %v800
      %854 = vmatprep.subr.bf16.mxu0 %v804
      %855 = vmatpush1.bf16.msra.mxu0 %v803
      %856 = vmatprep.subr.bf16.mxu0 %v807
      %857 = vmatpush1.bf16.msra.mxu0 %v806
      %858 = vmatprep.subr.bf16.mxu0 %v810
      %859 = vmatpush1.bf16.msra.mxu0 %v809
      %860 = vmatprep.subr.bf16.mxu0 0
      %861 = vmatpush1.bf16.msra.mxu0 0
      %862 = vmatprep.subr.bf16.mxu0 0
      %863 = vmatpush1.bf16.msra.mxu0 0
      %864 = vmatprep.subr.bf16.mxu0 0
      %865 = vmatpush1.bf16.msra.mxu0 0
      %866 = vmatprep.subr.bf16.mxu0 0
      %867 = vmatpush1.bf16.msra.mxu0 0
      %868 = vmatprep.subr.bf16.mxu0 0
      %869 = vmatpush1.bf16.msra.mxu0 0
      %870 = vmatprep.subr.bf16.mxu0 0
      %871 = vmatpush1.bf16.msra.mxu0 0
      %872 = vmatprep.subr.bf16.mxu0 0
      %873 = vmatpush1.bf16.msra.mxu0 0
      %874 = vmatprep.mubr.bf16.mxu0 %v840
      %875 = vmatmul.mubr.bf16.gmra.mrb[0].mxu0 %v710
      %v876 = vpop.f32.mrb[0].mxu0
      %v877 = vadd.f32 0.0, %v876
      %v878 = vpop.f32.mrb[0].mxu0
      %v879 = vadd.f32 0.0, %v878
      %v880 = vpop.f32.mrb[0].mxu0
      %v881 = vadd.f32 0.0, %v880
      %v882 = vpop.f32.mrb[0].mxu0
      %v883 = vadd.f32 0.0, %v882
      %884 = vdwg.mxu0
      %885 = vmatprep.subr.bf16.mxu0 0
      %886 = vmatpush1.bf16.msra.mxu0 %v787
      %887 = vmatprep.subr.bf16.mxu0 0
      %888 = vmatpush1.bf16.msra.mxu0 %v790
      %889 = vmatprep.subr.bf16.mxu0 0
      %890 = vmatpush1.bf16.msra.mxu0 %v793
      %891 = vmatprep.subr.bf16.mxu0 0
      %892 = vmatpush1.bf16.msra.mxu0 %v796
      %893 = vmatprep.subr.bf16.mxu0 0
      %894 = vmatpush1.bf16.msra.mxu0 %v799
      %895 = vmatprep.subr.bf16.mxu0 0
      %896 = vmatpush1.bf16.msra.mxu0 %v802
      %897 = vmatprep.subr.bf16.mxu0 0
      %898 = vmatpush1.bf16.msra.mxu0 %v805
      %899 = vmatprep.subr.bf16.mxu0 0
      %900 = vmatpush1.bf16.msra.mxu0 %v808
      %901 = vmatprep.subr.bf16.mxu0 0
      %902 = vmatpush1.bf16.msra.mxu0 %v811
      %903 = vmatprep.subr.bf16.mxu0 0
      %904 = vmatpush1.bf16.msra.mxu0 0
      %905 = vmatprep.subr.bf16.mxu0 0
      %906 = vmatpush1.bf16.msra.mxu0 0
      %907 = vmatprep.subr.bf16.mxu0 0
      %908 = vmatpush1.bf16.msra.mxu0 0
      %909 = vmatprep.subr.bf16.mxu0 0
      %910 = vmatpush1.bf16.msra.mxu0 0
      %911 = vmatprep.subr.bf16.mxu0 0
      %912 = vmatpush1.bf16.msra.mxu0 0
      %913 = vmatprep.subr.bf16.mxu0 0
      %914 = vmatpush1.bf16.msra.mxu0 0
      %915 = vmatprep.subr.bf16.mxu0 0
      %916 = vmatpush1.bf16.msra.mxu0 0
      %917 = vmatprep.mubr.bf16.mxu0 %v840
      %918 = vmatmul.mubr.bf16.gmra.mrb[0].mxu0 %v710
      %v919 = vpop.f32.mrb[0].mxu0
      %v920 = vadd.f32 0.0, %v919
      %v921 = vpop.f32.mrb[0].mxu0
      %v922 = vpop.f32.mrb[0].mxu0
      %v923 = vadd.f32 0.0, %v922
      %v924 = vpop.f32.mrb[0].mxu0
      %925 = vdwg.mxu0
      %s926 = scalar_lea.vmem %s2, 16
      %v927 = vld [vmem:[%s926] sm:$0xff]
      %v928 = vld [vmem:[%s926 + $0x8] sm:$0xff]
      %930 = vset.pattern.permute.xlu0 0
      %931 = vperm.xlu0 %930, %v927
      %v932 = vpop.permute.xlu0 %931
      %935 = vset.pattern.permute.xlu0 0
      %936 = vperm.xlu0 %935, %v928
      %v937 = vpop.permute.xlu0 %936
      %v939 = vmul.f32 %v877, %v932
      %v940 = vmul.f32 %v879, %v932
      %v941 = vmul.f32 %v920, %v932
      %v942 = vmul.f32 %v881, %v937
      %v943 = vmul.f32 %v883, %v937
      %v944 = vmul.f32 %v923, %v937
      %945 = vset.pattern.permute.xlu0 1
      %946 = vperm.xlu0 %945, %v927
      %v947 = vpop.permute.xlu0 %946
      %949 = vset.pattern.permute.xlu0 1
      %950 = vperm.xlu0 %949, %v928
      %v951 = vpop.permute.xlu0 %950
      %v953 = vadd.f32 %v939, %v947
      %v954 = vadd.f32 %v940, %v947
      %v955 = vadd.f32 %v941, %v947
      %v956 = vadd.f32 %v942, %v951
      %v957 = vadd.f32 %v943, %v951
      %v958 = vadd.f32 %v944, %v951
      %v959 = vmax.f32 %v953, 0.0
      %v960 = vmax.f32 %v954, 0.0
      %v961 = vmax.f32 %v955, 0.0
      %v962 = vmax.f32 %v956, 0.0
      %v963 = vmax.f32 %v957, 0.0
      %v964 = vmax.f32 %v958, 0.0
      %v965 = vsel %vm600, %v959, 0.0
      %v966 = vsel %vm601, %v960, 0.0
      %v967 = vsel %vm602, %v961, 0.0
      %v968 = vsel %vm600, %v962, 0.0
      %v969 = vsel %vm601, %v963, 0.0
      %v970 = vsel %vm602, %v964, 0.0
      %v971 = vpack.c.bf16 %v968, %v965
      %v972 = vpack.c.bf16 %v969, %v966
      %v973 = vpack.c.bf16 %v970, %v967
      %v977 = vunpack.c.l.b16 0
      %v978 = vunpack.c.l.b16 %v971
      %v979 = vunpack.c.l.b16 %v972
      %v980 = vunpack.c.l.b16 %v973
      %v981 = vunpack.c.h.b16 0
      %v982 = vunpack.c.h.b16 %v971
      %v983 = vunpack.c.h.b16 %v972
      %v984 = vunpack.c.h.b16 %v973
      %v985 = vpack.c.b16 %v978, %v977
      %v986 = vpack.c.b16 %v980, %v979
      %v987 = vpack.c.b16 %v977, %v977
      %v988 = vpack.c.b16 %v982, %v981
      %v989 = vpack.c.b16 %v984, %v983
      %v990 = vpack.c.b16 %v981, %v981
      %997 = vst [vmem:[%s170] sm:$0xff] %v985
      %998 = vst [vmem:[%s170 + $0x8] sm:$0xff] %v986
      %999 = vst [vmem:[%s170 + $0x10] sm:$0xf] %v987
      %1000 = vst [vmem:[%s170 + $0x14] sm:$0xff] %v988
      %1001 = vst [vmem:[%s170 + $0x1c] sm:$0xff] %v989
      %1002 = vst [vmem:[%s170 + $0x24] sm:$0xf] %v990
      %p1003 = scmp.lt.s32.totalorder %s14, 1
      %s1004 = scalar_select %p1003, %s14, 1
      %s1005 = smul.addr %s1004, 10
      %s1006 = smul.addr %s1005, 4
      %s1007 = scalar_lea.vmem %s3, %s1006
      // Predicated region
      $region33: #{a_call__.5} parent=31 // pred_check
        %p1008 = pneg %p100
      $region34: #{a_call__.5} parent=31 // pred_check_branch
        %1010 = sbr.rel (%p1008) target = $region36
      $region35: #{a_call__.5} parent=31 // pred_region
        _
      $region36: #{a_call__.5} parent=31 // pred_fallthru
        _
    $region32: #{a_call__.5} parent=5 // pred_fallthru
      _
    %p1011 = scmp.le.s32.totalorder 2, %s9
    // Predicated region
    $region37: #{a_call__.5} parent=5 // pred_check
      %p1012 = pneg %p1011
    $region38: #{a_call__.5} parent=5 // pred_check_branch
      %1014 = sbr.rel (%p1012) target = $region40
    $region39: #{a_call__.5} parent=5 // pred_region
      %s1015 = ssub.s32 %s9, 2
      // Predicated region
      $region41: #{a_call__.5} parent=39 // pred_check
        %p1016 = pneg %p106
      $region42: #{a_call__.5} parent=39 // pred_check_branch
        %1018 = sbr.rel (%p1016) target = $region44
      $region43: #{a_call__.5} parent=39 // pred_region
        %p1019 = scmp.lt.s32.totalorder %s15, 1
        %s1020 = scalar_select %p1019, %s15, 1
        %s1021 = smul.addr %s1020, 10
        %s1022 = smul.addr %s1021, 4
        %s1023 = scalar_lea.vmem %s3, %s1022
      $region44: #{a_call__.5} parent=39 // pred_fallthru
        _
    $region40: #{a_call__.5} parent=5 // pred_fallthru
      _
  $region6: #{a_call__.5} parent=0 // loop_footer
    %s13 = sadd.s32 1, %s9
  $region7: #{a_call__.5} parent=0 // loop_footer_branch
    %8 = sbr.rel target = $region3
  $region8: #{a_call__.5} parent=0 // loop_exit
    _

// kernel: a_call__.6
$region0: #{a_call__.6}
  #allocation0 [shape = 'u32[]', space=smem, size = 0x4, offset = 0x4, fixed_abs, tag = 'smem constant byte address 0x4 - core index']
  #allocation1 [shape = 'u32[144,128]{1,0:T(1,128)}', space=vmem, size = 0x12000, scoped, tag = 'internal scratch']
  %s0 = inlined_call_operand.vmem [shape: bf16[2,16,384], index: 0, kind: input, shape index: {}]
  %s1 = inlined_call_operand.vmem [shape: bf16[2,16,144], index: 1, kind: input, shape index: {}]
  %s2 = inlined_call_operand.vmem [shape: f32[2,16,2], index: 2, kind: input, shape index: {}]
  %s3 = inlined_call_operand.vmem [shape: bf16[2,16,384], index: 3, kind: output, shape index: {}]
  %s4 = sld [smem:[#allocation0]]
  $region45: #{a_call__.6} parent=0
    _
  %s6 = ssub.s32 1, %s4
  %s7 = scalar_select 0, %s6, %s4
  loop: start=0, step=1, limit=4
  $region2: #{a_call__.6} parent=0 // loop_pre_header
    _
  $region3: #{a_call__.6} parent=0 // loop_header
    %s9 = sphi 0, %s13
    %p10 = scmp.ge.s32.totalorder %s9, 4
    %s19 = sphi 0, %s21
    %s22 = sphi 0, %s19
    %s23 = sphi 0, %s22
    %s39 = sphi 0, %s23
    %s43 = sphi 0, %s43
    %s45 = sphi 0, %s43
    %s46 = sphi 0, %s45
    %s60 = sphi 0, %s46
    %s64 = sphi 0, %s64
    %s66 = sphi 0, %s64
    %s67 = sphi 0, %s66
    %s81 = sphi 0, %s67
    %s87 = sphi 0, %s89
    %s90 = sphi 0, %s87
    %s91 = sphi 0, %s90
    %s107 = sphi 0, %s91
  $region4: #{a_call__.6} parent=0 // loop_header_branch
    %12 = sbr.rel (%p10) target = $region8
  $region5: #{a_call__.6} parent=0 // loop_body
    %s14 = ssub.s32 %s9, 1
    %s15 = ssub.s32 %s9, 2
    %s16 = sadd.s32 %s9, 1
    %s17 = ssub.s32 %s9, %s16
    %p18 = scmp.eq.s32.totalorder %s17, 0
    %s20 = sadd.s32 %s19, 1
    %s21 = scalar_select %p18, %s19, %s20
    %p24 = pneg %p18
    %p25 = scmp.eq.s32.totalorder %s9, 1
    %p26 = por %p24, %p25
    %p27 = scmp.ne.s32.totalorder %s19, %s22
    %p28 = scmp.eq.s32.totalorder %s9, 0
    %p29 = por %p27, %p28
    %p30 = scmp.ne.s32.totalorder %s19, %s22
    %p31 = scmp.eq.s32.totalorder %s14, 1
    %p32 = por %p30, %p31
    %p33 = scmp.ne.s32.totalorder %s22, %s23
    %p34 = scmp.eq.s32.totalorder %s14, 0
    %p35 = por %p33, %p34
    %p36 = scmp.ne.s32.totalorder %s22, %s23
    %p37 = scmp.eq.s32.totalorder %s15, 1
    %p38 = por %p36, %p37
    %p40 = scmp.ne.s32.totalorder %s23, %s39
    %p41 = scmp.eq.s32.totalorder %s15, 0
    %p42 = por %p40, %p41
    %s44 = sadd.s32 %s43, 1
    %p47 = scmp.eq.s32.totalorder %s9, 1
    %p48 = scmp.ne.s32.totalorder %s43, %s45
    %p49 = scmp.eq.s32.totalorder %s9, 0
    %p50 = por %p48, %p49
    %p51 = scmp.ne.s32.totalorder %s43, %s45
    %p52 = scmp.eq.s32.totalorder %s14, 1
    %p53 = por %p51, %p52
    %p54 = scmp.ne.s32.totalorder %s45, %s46
    %p55 = scmp.eq.s32.totalorder %s14, 0
    %p56 = por %p54, %p55
    %p57 = scmp.ne.s32.totalorder %s45, %s46
    %p58 = scmp.eq.s32.totalorder %s15, 1
    %p59 = por %p57, %p58
    %p61 = scmp.ne.s32.totalorder %s46, %s60
    %p62 = scmp.eq.s32.totalorder %s15, 0
    %p63 = por %p61, %p62
    %s65 = sadd.s32 %s64, 1
    %p68 = scmp.eq.s32.totalorder %s9, 1
    %p69 = scmp.ne.s32.totalorder %s64, %s66
    %p70 = scmp.eq.s32.totalorder %s9, 0
    %p71 = por %p69, %p70
    %p72 = scmp.ne.s32.totalorder %s64, %s66
    %p73 = scmp.eq.s32.totalorder %s14, 1
    %p74 = por %p72, %p73
    %p75 = scmp.ne.s32.totalorder %s66, %s67
    %p76 = scmp.eq.s32.totalorder %s14, 0
    %p77 = por %p75, %p76
    %p78 = scmp.ne.s32.totalorder %s66, %s67
    %p79 = scmp.eq.s32.totalorder %s15, 1
    %p80 = por %p78, %p79
    %p82 = scmp.ne.s32.totalorder %s67, %s81
    %p83 = scmp.eq.s32.totalorder %s15, 0
    %p84 = por %p82, %p83
    %s85 = ssub.s32 %s9, %s16
    %p86 = scmp.eq.s32.totalorder %s85, 0
    %s88 = sadd.s32 %s87, 1
    %s89 = scalar_select %p86, %s87, %s88
    %p92 = pneg %p86
    %p93 = scmp.eq.s32.totalorder %s9, 1
    %p94 = por %p92, %p93
    %p95 = scmp.ne.s32.totalorder %s87, %s90
    %p96 = scmp.eq.s32.totalorder %s9, 0
    %p97 = por %p95, %p96
    %p98 = scmp.ne.s32.totalorder %s87, %s90
    %p99 = scmp.eq.s32.totalorder %s14, 1
    %p100 = por %p98, %p99
    %p101 = scmp.ne.s32.totalorder %s90, %s91
    %p102 = scmp.eq.s32.totalorder %s14, 0
    %p103 = por %p101, %p102
    %p104 = scmp.ne.s32.totalorder %s90, %s91
    %p105 = scmp.eq.s32.totalorder %s15, 1
    %p106 = por %p104, %p105
    %p108 = scmp.ne.s32.totalorder %s91, %s107
    %p109 = scmp.eq.s32.totalorder %s15, 0
    %p110 = por %p108, %p109
    %p111 = scmp.le.s32.totalorder 1, %s9
    %p112 = scmp.lt.s32.totalorder %s9, 3
    %p113 = pnand %p111, %p112
    %p114 = pneg %p113
    // Predicated region
    $region9: #{a_call__.6} parent=5 // pred_check
      _
    $region10: #{a_call__.6} parent=5 // pred_check_branch
      %116 = sbr.rel (%p113) target = $region12
    $region11: #{a_call__.6} parent=5 // pred_region
      %s117 = ssub.s32 %s9, 1
      // Predicated region
      $region13: #{a_call__.6} parent=11 // pred_check
        %p118 = pneg %p56
      $region14: #{a_call__.6} parent=11 // pred_check_branch
        %120 = sbr.rel (%p118) target = $region16
      $region15: #{a_call__.6} parent=11 // pred_region
        _
      $region16: #{a_call__.6} parent=11 // pred_fallthru
        _
      // Predicated region
      $region17: #{a_call__.6} parent=11 // pred_check
        %p121 = pneg %p77
      $region18: #{a_call__.6} parent=11 // pred_check_branch
        %123 = sbr.rel (%p121) target = $region20
      $region19: #{a_call__.6} parent=11 // pred_region
        _
      $region20: #{a_call__.6} parent=11 // pred_fallthru
        _
    $region12: #{a_call__.6} parent=5 // pred_fallthru
      _
    %p124 = scmp.lt.s32.totalorder %s9, 2
    // Predicated region
    $region21: #{a_call__.6} parent=5 // pred_check
      %p125 = pneg %p124
    $region22: #{a_call__.6} parent=5 // pred_check_branch
      %127 = sbr.rel (%p125) target = $region24
    $region23: #{a_call__.6} parent=5 // pred_region
      // Predicated region
      $region25: #{a_call__.6} parent=23 // pred_check
        %p128 = pneg %p29
      $region26: #{a_call__.6} parent=23 // pred_check_branch
        %130 = sbr.rel (%p128) target = $region28
      $region27: #{a_call__.6} parent=23 // pred_region
        %p131 = scmp.lt.s32.totalorder %s9, 1
        %s132 = scalar_select %p131, %s9, 1
        %s133 = smul.addr %s132, 6
        %s134 = smul.addr %s133, 4
        %s135 = scalar_lea.vmem %s0, %s134
      $region28: #{a_call__.6} parent=23 // pred_fallthru
        _
    $region24: #{a_call__.6} parent=5 // pred_fallthru
      _
    %p136 = scmp.le.s32.totalorder 1, %s9
    %p137 = scmp.lt.s32.totalorder %s9, 3
    %p138 = pnand %p136, %p137
    %p139 = pneg %p138
    // Predicated region
    $region29: #{a_call__.6} parent=5 // pred_check
      _
    $region30: #{a_call__.6} parent=5 // pred_check_branch
      %141 = sbr.rel (%p138) target = $region32
    $region31: #{a_call__.6} parent=5 // pred_region
      %s142 = ssub.s32 %s9, 1
      %p143 = scmp.lt.s32.totalorder %s14, 1
      %s144 = scalar_select %p143, %s14, 1
      %s145 = smul.addr %s144, 6
      %s146 = smul.addr %s145, 4
      %s147 = scalar_lea.vmem %s0, %s146
      %p148 = pneg %p35
      %p149 = pneg %p32
      %p150 = pneg %p56
      %p151 = pneg %p53
      %p152 = pneg %p77
      %p153 = pneg %p74
      %p154 = pneg %p103
      %p155 = pneg %p100
      %p156 = scmp.lt.s32.totalorder %s14, 1
      %s157 = scalar_select %p156, %s14, 1
      %s158 = smul.addr %s157, 6
      %s159 = smul.addr %s158, 4
      %s160 = scalar_lea.vmem %s3, %s159
      %p161 = scmp.lt.s32.totalorder %s14, 1
      %s162 = scalar_select %p161, %s14, 1
      %s163 = smul.addr %s162, 6
      %s164 = smul.addr %s163, 4
      %s165 = scalar_lea.vmem %s0, %s164
      %p166 = scmp.lt.s32.totalorder %s14, 1
      %s167 = scalar_select %p166, %s14, 1
      %s168 = smul.addr %s167, 6
      %s169 = smul.addr %s168, 4
      %s170 = scalar_lea.vmem %s3, %s169
      %v172 = vlaneseq
      %v173 = vand.u32 %v172, 127
      %v174 = vcvt.s32.f32 %v173
      %v175 = vrcp.pop 10.0
      %v176 = vmul.f32 %v174, %v175
      %v177 = vfloor.f32 %v176
      %v178 = vmul.f32 %v177, 10.0
      %v179 = vsub.f32 %v174, %v178
      %vm180 = vcmp.ge.f32.partialorder %v177, 1.0
      %vm181 = vcmp.lt.f32.partialorder %v177, 9.0
      %vm182 = vmand %vm180, %vm181
      %vm183 = vcmp.ge.f32.partialorder %v179, 1.0
      %vm184 = vmand %vm182, %vm183
      %vm185 = vcmp.lt.f32.partialorder %v179, 9.0
      %vm186 = vmand %vm184, %vm185
      %v187 = vld [vmem:[%s165] sm:$0xff]
      %v188 = vld [vmem:[%s165 + $0x8] sm:$0xf]
      %v189 = vld [vmem:[%s165 + $0xc] sm:$0xff]
      %v190 = vld [vmem:[%s165 + $0x14] sm:$0xf]
      %v193 = vunpack.c.l.b16 %v187
      %v194 = vunpack.c.h.b16 %v187
      %v195 = vunpack.c.l.b16 %v189
      %v196 = vunpack.c.h.b16 %v189
      %v197 = vpack.c.b16 %v195, %v193
      %v198 = vpack.c.b16 %v196, %v194
      %199 = vrot.lane.b32.xlu0 %v197, 127
      %v200 = vpop.permute.xlu0 %199
      %201 = vrot.lane.b32.xlu0 %v198, 127
      %v202 = vpop.permute.xlu0 %201
      %vm203 = vcmask 1039360
      %v204 = vsel %vm203, %v200, %v202
      %205 = vrot.lane.b32.xlu0 %v197, 126
      %v206 = vpop.permute.xlu0 %205
      %207 = vrot.lane.b32.xlu0 %v198, 126
      %v208 = vpop.permute.xlu0 %207
      %vm209 = vcmask 1031168
      %v210 = vsel %vm209, %v206, %v208
      %211 = vrot.lane.b32.xlu0 %v197, 118
      %v212 = vpop.permute.xlu0 %211
      %213 = vrot.lane.b32.xlu0 %v198, 118
      %v214 = vpop.permute.xlu0 %213
      %vm215 = vcmask 965632
      %v216 = vsel %vm215, %v212, %v214
      %217 = vrot.lane.b32.xlu0 %v198, 117
      %v218 = vpop.permute.xlu0 %217
      %v221 = vunpack.c.l.b16 %v188
      %v222 = vunpack.c.l.b16 %v190
      %v223 = vpack.c.b16 %v222, %v221
      %224 = vrot.lane.b32.xlu0 %v198, 116
      %v225 = vpop.permute.xlu0 %224
      %226 = vrot.lane.b32.xlu0 %v223, 116
      %v227 = vpop.permute.xlu0 %226
      %vm228 = vcmask 949248
      %v229 = vsel %vm228, %v225, %v227
      %230 = vrot.lane.b32.xlu0 %v198, 108
      %v231 = vpop.permute.xlu0 %230
      %232 = vrot.lane.b32.xlu0 %v223, 108
      %v233 = vpop.permute.xlu0 %232
      %vm234 = vcmask 883712
      %v235 = vsel %vm234, %v231, %v233
      %236 = vrot.lane.b32.xlu0 %v198, 107
      %v237 = vpop.permute.xlu0 %236
      %238 = vrot.lane.b32.xlu0 %v223, 107
      %v239 = vpop.permute.xlu0 %238
      %vm240 = vcmask 875520
      %v241 = vsel %vm240, %v237, %v239
      %242 = vrot.lane.b32.xlu0 %v198, 106
      %v243 = vpop.permute.xlu0 %242
      %244 = vrot.lane.b32.xlu0 %v223, 106
      %v245 = vpop.permute.xlu0 %244
      %vm246 = vcmask 867328
      %v247 = vsel %vm246, %v243, %v245
      %v248 = vld [vmem:[%s1] sm:$0xff]
      %v249 = vld [vmem:[%s1 + $0x8] sm:$0xff]
      %v252 = vunpack.c.l.b16 %v248
      %v253 = vunpack.c.h.b16 %v248
      %v254 = vunpack.c.l.b16 %v249
      %v255 = vunpack.c.h.b16 %v249
      %v256 = vpack.c.b16 %v254, %v252
      %v257 = vpack.c.b16 %v255, %v253
      %259 = vrot.lane.b32.xlu0 %v197, 11
      %v260 = vpop.permute.xlu0 %259
      %261 = vrot.lane.b32.xlu0 %v198, 11
      %v262 = vpop.permute.xlu0 %261
      %263 = vrot.lane.b32.xlu0 %v204, 11
      %v264 = vpop.permute.xlu0 %263
      %265 = vrot.lane.b32.xlu0 %v202, 11
      %v266 = vpop.permute.xlu0 %265
      %267 = vrot.lane.b32.xlu0 %v210, 11
      %v268 = vpop.permute.xlu0 %267
      %269 = vrot.lane.b32.xlu0 %v208, 11
      %v270 = vpop.permute.xlu0 %269
      %271 = vrot.lane.b32.xlu0 %v216, 11
      %v272 = vpop.permute.xlu0 %271
      %273 = vrot.lane.b32.xlu0 %v214, 11
      %v274 = vpop.permute.xlu0 %273
      %275 = vrot.lane.b32.xlu0 %v218, 11
      %v276 = vpop.permute.xlu0 %275
      %277 = vrot.lane.b32.xlu0 %v225, 11
      %v278 = vpop.permute.xlu0 %277
      %279 = vrot.lane.b32.xlu0 %v229, 11
      %v280 = vpop.permute.xlu0 %279
      %281 = vrot.lane.b32.xlu0 %v231, 11
      %v282 = vpop.permute.xlu0 %281
      %283 = vrot.lane.b32.xlu0 %v235, 11
      %v284 = vpop.permute.xlu0 %283
      %285 = vrot.lane.b32.xlu0 %v237, 11
      %v286 = vpop.permute.xlu0 %285
      %287 = vrot.lane.b32.xlu0 %v241, 11
      %v288 = vpop.permute.xlu0 %287
      %289 = vrot.lane.b32.xlu0 %v243, 11
      %v290 = vpop.permute.xlu0 %289
      %291 = vrot.lane.b32.xlu0 %v247, 11
      %v292 = vpop.permute.xlu0 %291
      %vm293 = vcmask 89088
      %v294 = vsel %vm293, %v260, %v262
      %v295 = vsel %vm293, %v264, %v266
      %v296 = vsel %vm293, %v268, %v270
      %v297 = vsel %vm293, %v272, %v274
      %v298 = vsel %vm293, %v278, %v280
      %v299 = vsel %vm293, %v282, %v284
      %v300 = vsel %vm293, %v286, %v288
      %v301 = vsel %vm293, %v290, %v292
      %vm311 = vcmask 130048
      %v313 = vsel %vm311, %v257, 0
      %315 = vmatprep.subr.bf16.mxu0 0
      %316 = vmatpush1.bf16.msra.mxu0 %v294
      %317 = vmatprep.subr.bf16.mxu0 0
      %318 = vmatpush1.bf16.msra.mxu0 %v295
      %319 = vmatprep.subr.bf16.mxu0 0
      %320 = vmatpush1.bf16.msra.mxu0 %v296
      %321 = vmatprep.subr.bf16.mxu0 0
      %322 = vmatpush1.bf16.msra.mxu0 %v297
      %323 = vmatprep.subr.bf16.mxu0 0
      %324 = vmatpush1.bf16.msra.mxu0 %v276
      %325 = vmatprep.subr.bf16.mxu0 0
      %326 = vmatpush1.bf16.msra.mxu0 %v298
      %327 = vmatprep.subr.bf16.mxu0 0
      %328 = vmatpush1.bf16.msra.mxu0 %v299
      %329 = vmatprep.subr.bf16.mxu0 0
      %330 = vmatpush1.bf16.msra.mxu0 %v300
      %331 = vmatprep.subr.bf16.mxu0 0
      %332 = vmatpush1.bf16.msra.mxu0 %v301
      %333 = vmatprep.subr.bf16.mxu0 0
      %334 = vmatpush1.bf16.msra.mxu0 0
      %335 = vmatprep.subr.bf16.mxu0 0
      %336 = vmatpush1.bf16.msra.mxu0 0
      %337 = vmatprep.subr.bf16.mxu0 0
      %338 = vmatpush1.bf16.msra.mxu0 0
      %339 = vmatprep.subr.bf16.mxu0 0
      %340 = vmatpush1.bf16.msra.mxu0 0
      %341 = vmatprep.subr.bf16.mxu0 0
      %342 = vmatpush1.bf16.msra.mxu0 0
      %343 = vmatprep.subr.bf16.mxu0 0
      %344 = vmatpush1.bf16.msra.mxu0 0
      %345 = vmatprep.subr.bf16.mxu0 0
      %346 = vmatpush1.bf16.msra.mxu0 0
      %347 = vmatprep.mubr.bf16.mxu0 %v313
      %348 = vmatmul.mubr.bf16.gmra.mrb[0].mxu0 %v256
      %v349 = vpop.f32.mrb[0].mxu0
      %v350 = vadd.f32 0.0, %v349
      %v351 = vpop.f32.mrb[0].mxu0
      %v352 = vpop.f32.mrb[0].mxu0
      %v353 = vadd.f32 0.0, %v352
      %v354 = vpop.f32.mrb[0].mxu0
      %355 = vdwg.mxu0
      %v356 = vld [vmem:[%s2] sm:$0xff]
      %v357 = vld [vmem:[%s2 + $0x8] sm:$0xff]
      %359 = vset.pattern.permute.xlu0 0
      %360 = vperm.xlu0 %359, %v356
      %v361 = vpop.permute.xlu0 %360
      %364 = vset.pattern.permute.xlu0 0
      %365 = vperm.xlu0 %364, %v357
      %v366 = vpop.permute.xlu0 %365
      %v368 = vmul.f32 %v350, %v361
      %v369 = vmul.f32 %v353, %v366
      %370 = vset.pattern.permute.xlu0 1
      %371 = vperm.xlu0 %370, %v356
      %v372 = vpop.permute.xlu0 %371
      %374 = vset.pattern.permute.xlu0 1
      %375 = vperm.xlu0 %374, %v357
      %v376 = vpop.permute.xlu0 %375
      %v378 = vadd.f32 %v368, %v372
      %v379 = vadd.f32 %v369, %v376
      %v380 = vmax.f32 %v378, 0.0
      %v381 = vmax.f32 %v379, 0.0
      %v382 = vsel %vm186, 1, 0
      %vm383 = vcmp.eq.s32.totalorder %v382, 1
      %v384 = vsel %vm383, %v380, 0.0
      %v385 = vsel %vm383, %v381, 0.0
      %v386 = vpack.c.bf16 %v385, %v384
      %389 = vrot.lane.b32.xlu0 0, 127
      %v390 = vpop.permute.xlu0 %389
      %391 = vrot.lane.b32.xlu0 %v386, 127
      %v392 = vpop.permute.xlu0 %391
      %v393 = vsel %vm203, %v390, %v392
      %394 = vrot.lane.b32.xlu0 0, 126
      %v395 = vpop.permute.xlu0 %394
      %396 = vrot.lane.b32.xlu0 %v386, 126
      %v397 = vpop.permute.xlu0 %396
      %v398 = vsel %vm209, %v395, %v397
      %399 = vrot.lane.b32.xlu0 0, 118
      %v400 = vpop.permute.xlu0 %399
      %401 = vrot.lane.b32.xlu0 %v386, 118
      %v402 = vpop.permute.xlu0 %401
      %v403 = vsel %vm215, %v400, %v402
      %404 = vrot.lane.b32.xlu0 %v386, 117
      %v405 = vpop.permute.xlu0 %404
      %406 = vrot.lane.b32.xlu0 %v386, 116
      %v407 = vpop.permute.xlu0 %406
      %408 = vrot.lane.b32.xlu0 0, 116
      %v409 = vpop.permute.xlu0 %408
      %v410 = vsel %vm228, %v407, %v409
      %411 = vrot.lane.b32.xlu0 %v386, 108
      %v412 = vpop.permute.xlu0 %411
      %413 = vrot.lane.b32.xlu0 0, 108
      %v414 = vpop.permute.xlu0 %413
      %v415 = vsel %vm234, %v412, %v414
      %416 = vrot.lane.b32.xlu0 %v386, 107
      %v417 = vpop.permute.xlu0 %416
      %418 = vrot.lane.b32.xlu0 0, 107
      %v419 = vpop.permute.xlu0 %418
      %v420 = vsel %vm240, %v417, %v419
      %421 = vrot.lane.b32.xlu0 %v386, 106
      %v422 = vpop.permute.xlu0 %421
      %423 = vrot.lane.b32.xlu0 0, 106
      %v424 = vpop.permute.xlu0 %423
      %v425 = vsel %vm246, %v422, %v424
      %s426 = scalar_lea.vmem %s1, 16
      %v427 = vld [vmem:[%s426] sm:$0xff]
      %v428 = vld [vmem:[%s426 + $0x8] sm:$0xff]
      %v431 = vunpack.c.l.b16 %v427
      %v432 = vunpack.c.h.b16 %v427
      %v433 = vunpack.c.l.b16 %v428
      %v434 = vunpack.c.h.b16 %v428
      %v435 = vpack.c.b16 %v433, %v431
      %v436 = vpack.c.b16 %v434, %v432
      %438 = vrot.lane.b32.xlu0 0, 11
      %v439 = vpop.permute.xlu0 %438
      %440 = vrot.lane.b32.xlu0 %v386, 11
      %v441 = vpop.permute.xlu0 %440
      %442 = vrot.lane.b32.xlu0 %v393, 11
      %v443 = vpop.permute.xlu0 %442
      %444 = vrot.lane.b32.xlu0 %v392, 11
      %v445 = vpop.permute.xlu0 %444
      %446 = vrot.lane.b32.xlu0 %v398, 11
      %v447 = vpop.permute.xlu0 %446
      %448 = vrot.lane.b32.xlu0 %v397, 11
      %v449 = vpop.permute.xlu0 %448
      %450 = vrot.lane.b32.xlu0 %v403, 11
      %v451 = vpop.permute.xlu0 %450
      %452 = vrot.lane.b32.xlu0 %v402, 11
      %v453 = vpop.permute.xlu0 %452
      %454 = vrot.lane.b32.xlu0 %v405, 11
      %v455 = vpop.permute.xlu0 %454
      %456 = vrot.lane.b32.xlu0 %v407, 11
      %v457 = vpop.permute.xlu0 %456
      %458 = vrot.lane.b32.xlu0 %v410, 11
      %v459 = vpop.permute.xlu0 %458
      %460 = vrot.lane.b32.xlu0 %v412, 11
      %v461 = vpop.permute.xlu0 %460
      %462 = vrot.lane.b32.xlu0 %v415, 11
      %v463 = vpop.permute.xlu0 %462
      %464 = vrot.lane.b32.xlu0 %v417, 11
      %v465 = vpop.permute.xlu0 %464
      %466 = vrot.lane.b32.xlu0 %v420, 11
      %v467 = vpop.permute.xlu0 %466
      %468 = vrot.lane.b32.xlu0 %v422, 11
      %v469 = vpop.permute.xlu0 %468
      %470 = vrot.lane.b32.xlu0 %v425, 11
      %v471 = vpop.permute.xlu0 %470
      %v472 = vsel %vm293, %v439, %v441
      %v473 = vsel %vm293, %v443, %v445
      %v474 = vsel %vm293, %v447, %v449
      %v475 = vsel %vm293, %v451, %v453
      %v476 = vsel %vm293, %v457, %v459
      %v477 = vsel %vm293, %v461, %v463
      %v478 = vsel %vm293, %v465, %v467
      %v479 = vsel %vm293, %v469, %v471
      %v490 = vsel %vm311, %v436, 0
      %492 = vmatprep.subr.bf16.mxu0 0
      %493 = vmatpush1.bf16.msra.mxu0 %v472
      %494 = vmatprep.subr.bf16.mxu0 0
      %495 = vmatpush1.bf16.msra.mxu0 %v473
      %496 = vmatprep.subr.bf16.mxu0 0
      %497 = vmatpush1.bf16.msra.mxu0 %v474
      %498 = vmatprep.subr.bf16.mxu0 0
      %499 = vmatpush1.bf16.msra.mxu0 %v475
      %500 = vmatprep.subr.bf16.mxu0 0
      %501 = vmatpush1.bf16.msra.mxu0 %v455
      %502 = vmatprep.subr.bf16.mxu0 0
      %503 = vmatpush1.bf16.msra.mxu0 %v476
      %504 = vmatprep.subr.bf16.mxu0 0
      %505 = vmatpush1.bf16.msra.mxu0 %v477
      %506 = vmatprep.subr.bf16.mxu0 0
      %507 = vmatpush1.bf16.msra.mxu0 %v478
      %508 = vmatprep.subr.bf16.mxu0 0
      %509 = vmatpush1.bf16.msra.mxu0 %v479
      %510 = vmatprep.subr.bf16.mxu0 0
      %511 = vmatpush1.bf16.msra.mxu0 0
      %512 = vmatprep.subr.bf16.mxu0 0
      %513 = vmatpush1.bf16.msra.mxu0 0
      %514 = vmatprep.subr.bf16.mxu0 0
      %515 = vmatpush1.bf16.msra.mxu0 0
      %516 = vmatprep.subr.bf16.mxu0 0
      %517 = vmatpush1.bf16.msra.mxu0 0
      %518 = vmatprep.subr.bf16.mxu0 0
      %519 = vmatpush1.bf16.msra.mxu0 0
      %520 = vmatprep.subr.bf16.mxu0 0
      %521 = vmatpush1.bf16.msra.mxu0 0
      %522 = vmatprep.subr.bf16.mxu0 0
      %523 = vmatpush1.bf16.msra.mxu0 0
      %524 = vmatprep.mubr.bf16.mxu0 %v490
      %525 = vmatmul.mubr.bf16.gmra.mrb[0].mxu0 %v435
      %v526 = vpop.f32.mrb[0].mxu0
      %v527 = vadd.f32 0.0, %v526
      %v528 = vpop.f32.mrb[0].mxu0
      %v529 = vpop.f32.mrb[0].mxu0
      %v530 = vadd.f32 0.0, %v529
      %v531 = vpop.f32.mrb[0].mxu0
      %532 = vdwg.mxu0
      %s533 = scalar_lea.vmem %s2, 16
      %v534 = vld [vmem:[%s533] sm:$0xff]
      %v535 = vld [vmem:[%s533 + $0x8] sm:$0xff]
      %537 = vset.pattern.permute.xlu0 0
      %538 = vperm.xlu0 %537, %v534
      %v539 = vpop.permute.xlu0 %538
      %542 = vset.pattern.permute.xlu0 0
      %543 = vperm.xlu0 %542, %v535
      %v544 = vpop.permute.xlu0 %543
      %v546 = vmul.f32 %v527, %v539
      %v547 = vmul.f32 %v530, %v544
      %548 = vset.pattern.permute.xlu0 1
      %549 = vperm.xlu0 %548, %v534
      %v550 = vpop.permute.xlu0 %549
      %552 = vset.pattern.permute.xlu0 1
      %553 = vperm.xlu0 %552, %v535
      %v554 = vpop.permute.xlu0 %553
      %v556 = vadd.f32 %v546, %v550
      %v557 = vadd.f32 %v547, %v554
      %v558 = vmax.f32 %v556, 0.0
      %v559 = vmax.f32 %v557, 0.0
      %v560 = vsel %vm383, %v558, 0.0
      %v561 = vsel %vm383, %v559, 0.0
      %v562 = vpack.c.bf16 %v561, %v560
      %v564 = vunpack.c.l.b16 0
      %v565 = vunpack.c.l.b16 %v562
      %v566 = vunpack.c.h.b16 0
      %v567 = vunpack.c.h.b16 %v562
      %v568 = vpack.c.b16 %v565, %v564
      %v569 = vpack.c.b16 %v564, %v564
      %v570 = vpack.c.b16 %v567, %v566
      %v571 = vpack.c.b16 %v566, %v566
      %576 = vst [vmem:[%s170] sm:$0xff] %v568
      %577 = vst [vmem:[%s170 + $0x8] sm:$0xf] %v569
      %578 = vst [vmem:[%s170 + $0xc] sm:$0xff] %v570
      %579 = vst [vmem:[%s170 + $0x14] sm:$0xf] %v571
      %p580 = scmp.lt.s32.totalorder %s14, 1
      %s581 = scalar_select %p580, %s14, 1
      %s582 = smul.addr %s581, 6
      %s583 = smul.addr %s582, 4
      %s584 = scalar_lea.vmem %s3, %s583
      // Predicated region
      $region33: #{a_call__.6} parent=31 // pred_check
        %p585 = pneg %p100
      $region34: #{a_call__.6} parent=31 // pred_check_branch
        %587 = sbr.rel (%p585) target = $region36
      $region35: #{a_call__.6} parent=31 // pred_region
        _
      $region36: #{a_call__.6} parent=31 // pred_fallthru
        _
    $region32: #{a_call__.6} parent=5 // pred_fallthru
      _
    %p588 = scmp.le.s32.totalorder 2, %s9
    // Predicated region
    $region37: #{a_call__.6} parent=5 // pred_check
      %p589 = pneg %p588
    $region38: #{a_call__.6} parent=5 // pred_check_branch
      %591 = sbr.rel (%p589) target = $region40
    $region39: #{a_call__.6} parent=5 // pred_region
      %s592 = ssub.s32 %s9, 2
      // Predicated region
      $region41: #{a_call__.6} parent=39 // pred_check
        %p593 = pneg %p106
      $region42: #{a_call__.6} parent=39 // pred_check_branch
        %595 = sbr.rel (%p593) target = $region44
      $region43: #{a_call__.6} parent=39 // pred_region
        %p596 = scmp.lt.s32.totalorder %s15, 1
        %s597 = scalar_select %p596, %s15, 1
        %s598 = smul.addr %s597, 6
        %s599 = smul.addr %s598, 4
        %s600 = scalar_lea.vmem %s3, %s599
      $region44: #{a_call__.6} parent=39 // pred_fallthru
        _
    $region40: #{a_call__.6} parent=5 // pred_fallthru
      _
  $region6: #{a_call__.6} parent=0 // loop_footer
    %s13 = sadd.s32 1, %s9
  $region7: #{a_call__.6} parent=0 // loop_footer_branch
    %8 = sbr.rel target = $region3
  $region8: #{a_call__.6} parent=0 // loop_exit
    _

// kernel: a_call__.7
$region0: #{a_call__.7}
  #allocation0 [shape = 'u32[]', space=smem, size = 0x4, offset = 0x4, fixed_abs, tag = 'smem constant byte address 0x4 - core index']
  #allocation1 [shape = 'u32[144,128]{1,0:T(1,128)}', space=vmem, size = 0x12000, scoped, tag = 'internal scratch']
  %s0 = inlined_call_operand.vmem [shape: bf16[2,32,384], index: 0, kind: input, shape index: {}]
  %s1 = inlined_call_operand.vmem [shape: bf16[2,32,288], index: 1, kind: input, shape index: {}]
  %s2 = inlined_call_operand.vmem [shape: f32[2,32,2], index: 2, kind: input, shape index: {}]
  %s3 = inlined_call_operand.vmem [shape: bf16[2,32,384], index: 3, kind: output, shape index: {}]
  %s4 = sld [smem:[#allocation0]]
  $region45: #{a_call__.7} parent=0
    _
  %s6 = ssub.s32 1, %s4
  %s7 = scalar_select 0, %s6, %s4
  loop: start=0, step=1, limit=4
  $region2: #{a_call__.7} parent=0 // loop_pre_header
    _
  $region3: #{a_call__.7} parent=0 // loop_header
    %s9 = sphi 0, %s13
    %p10 = scmp.ge.s32.totalorder %s9, 4
    %s19 = sphi 0, %s21
    %s22 = sphi 0, %s19
    %s23 = sphi 0, %s22
    %s39 = sphi 0, %s23
    %s43 = sphi 0, %s43
    %s45 = sphi 0, %s43
    %s46 = sphi 0, %s45
    %s60 = sphi 0, %s46
    %s64 = sphi 0, %s64
    %s66 = sphi 0, %s64
    %s67 = sphi 0, %s66
    %s81 = sphi 0, %s67
    %s87 = sphi 0, %s89
    %s90 = sphi 0, %s87
    %s91 = sphi 0, %s90
    %s107 = sphi 0, %s91
  $region4: #{a_call__.7} parent=0 // loop_header_branch
    %12 = sbr.rel (%p10) target = $region8
  $region5: #{a_call__.7} parent=0 // loop_body
    %s14 = ssub.s32 %s9, 1
    %s15 = ssub.s32 %s9, 2
    %s16 = sadd.s32 %s9, 1
    %s17 = ssub.s32 %s9, %s16
    %p18 = scmp.eq.s32.totalorder %s17, 0
    %s20 = sadd.s32 %s19, 1
    %s21 = scalar_select %p18, %s19, %s20
    %p24 = pneg %p18
    %p25 = scmp.eq.s32.totalorder %s9, 1
    %p26 = por %p24, %p25
    %p27 = scmp.ne.s32.totalorder %s19, %s22
    %p28 = scmp.eq.s32.totalorder %s9, 0
    %p29 = por %p27, %p28
    %p30 = scmp.ne.s32.totalorder %s19, %s22
    %p31 = scmp.eq.s32.totalorder %s14, 1
    %p32 = por %p30, %p31
    %p33 = scmp.ne.s32.totalorder %s22, %s23
    %p34 = scmp.eq.s32.totalorder %s14, 0
    %p35 = por %p33, %p34
    %p36 = scmp.ne.s32.totalorder %s22, %s23
    %p37 = scmp.eq.s32.totalorder %s15, 1
    %p38 = por %p36, %p37
    %p40 = scmp.ne.s32.totalorder %s23, %s39
    %p41 = scmp.eq.s32.totalorder %s15, 0
    %p42 = por %p40, %p41
    %s44 = sadd.s32 %s43, 1
    %p47 = scmp.eq.s32.totalorder %s9, 1
    %p48 = scmp.ne.s32.totalorder %s43, %s45
    %p49 = scmp.eq.s32.totalorder %s9, 0
    %p50 = por %p48, %p49
    %p51 = scmp.ne.s32.totalorder %s43, %s45
    %p52 = scmp.eq.s32.totalorder %s14, 1
    %p53 = por %p51, %p52
    %p54 = scmp.ne.s32.totalorder %s45, %s46
    %p55 = scmp.eq.s32.totalorder %s14, 0
    %p56 = por %p54, %p55
    %p57 = scmp.ne.s32.totalorder %s45, %s46
    %p58 = scmp.eq.s32.totalorder %s15, 1
    %p59 = por %p57, %p58
    %p61 = scmp.ne.s32.totalorder %s46, %s60
    %p62 = scmp.eq.s32.totalorder %s15, 0
    %p63 = por %p61, %p62
    %s65 = sadd.s32 %s64, 1
    %p68 = scmp.eq.s32.totalorder %s9, 1
    %p69 = scmp.ne.s32.totalorder %s64, %s66
    %p70 = scmp.eq.s32.totalorder %s9, 0
    %p71 = por %p69, %p70
    %p72 = scmp.ne.s32.totalorder %s64, %s66
    %p73 = scmp.eq.s32.totalorder %s14, 1
    %p74 = por %p72, %p73
    %p75 = scmp.ne.s32.totalorder %s66, %s67
    %p76 = scmp.eq.s32.totalorder %s14, 0
    %p77 = por %p75, %p76
    %p78 = scmp.ne.s32.totalorder %s66, %s67
    %p79 = scmp.eq.s32.totalorder %s15, 1
    %p80 = por %p78, %p79
    %p82 = scmp.ne.s32.totalorder %s67, %s81
    %p83 = scmp.eq.s32.totalorder %s15, 0
    %p84 = por %p82, %p83
    %s85 = ssub.s32 %s9, %s16
    %p86 = scmp.eq.s32.totalorder %s85, 0
    %s88 = sadd.s32 %s87, 1
    %s89 = scalar_select %p86, %s87, %s88
    %p92 = pneg %p86
    %p93 = scmp.eq.s32.totalorder %s9, 1
    %p94 = por %p92, %p93
    %p95 = scmp.ne.s32.totalorder %s87, %s90
    %p96 = scmp.eq.s32.totalorder %s9, 0
    %p97 = por %p95, %p96
    %p98 = scmp.ne.s32.totalorder %s87, %s90
    %p99 = scmp.eq.s32.totalorder %s14, 1
    %p100 = por %p98, %p99
    %p101 = scmp.ne.s32.totalorder %s90, %s91
    %p102 = scmp.eq.s32.totalorder %s14, 0
    %p103 = por %p101, %p102
    %p104 = scmp.ne.s32.totalorder %s90, %s91
    %p105 = scmp.eq.s32.totalorder %s15, 1
    %p106 = por %p104, %p105
    %p108 = scmp.ne.s32.totalorder %s91, %s107
    %p109 = scmp.eq.s32.totalorder %s15, 0
    %p110 = por %p108, %p109
    %p111 = scmp.le.s32.totalorder 1, %s9
    %p112 = scmp.lt.s32.totalorder %s9, 3
    %p113 = pnand %p111, %p112
    %p114 = pneg %p113
    // Predicated region
    $region9: #{a_call__.7} parent=5 // pred_check
      _
    $region10: #{a_call__.7} parent=5 // pred_check_branch
      %116 = sbr.rel (%p113) target = $region12
    $region11: #{a_call__.7} parent=5 // pred_region
      %s117 = ssub.s32 %s9, 1
      // Predicated region
      $region13: #{a_call__.7} parent=11 // pred_check
        %p118 = pneg %p56
      $region14: #{a_call__.7} parent=11 // pred_check_branch
        %120 = sbr.rel (%p118) target = $region16
      $region15: #{a_call__.7} parent=11 // pred_region
        _
      $region16: #{a_call__.7} parent=11 // pred_fallthru
        _
      // Predicated region
      $region17: #{a_call__.7} parent=11 // pred_check
        %p121 = pneg %p77
      $region18: #{a_call__.7} parent=11 // pred_check_branch
        %123 = sbr.rel (%p121) target = $region20
      $region19: #{a_call__.7} parent=11 // pred_region
        _
      $region20: #{a_call__.7} parent=11 // pred_fallthru
        _
    $region12: #{a_call__.7} parent=5 // pred_fallthru
      _
    %p124 = scmp.lt.s32.totalorder %s9, 2
    // Predicated region
    $region21: #{a_call__.7} parent=5 // pred_check
      %p125 = pneg %p124
    $region22: #{a_call__.7} parent=5 // pred_check_branch
      %127 = sbr.rel (%p125) target = $region24
    $region23: #{a_call__.7} parent=5 // pred_region
      // Predicated region
      $region25: #{a_call__.7} parent=23 // pred_check
        %p128 = pneg %p29
      $region26: #{a_call__.7} parent=23 // pred_check_branch
        %130 = sbr.rel (%p128) target = $region28
      $region27: #{a_call__.7} parent=23 // pred_region
        %p131 = scmp.lt.s32.totalorder %s9, 1
        %s132 = scalar_select %p131, %s9, 1
        %s133 = smul.addr %s132, 12
        %s134 = smul.addr %s133, 4
        %s135 = scalar_lea.vmem %s0, %s134
      $region28: #{a_call__.7} parent=23 // pred_fallthru
        _
    $region24: #{a_call__.7} parent=5 // pred_fallthru
      _
    %p136 = scmp.le.s32.totalorder 1, %s9
    %p137 = scmp.lt.s32.totalorder %s9, 3
    %p138 = pnand %p136, %p137
    %p139 = pneg %p138
    // Predicated region
    $region29: #{a_call__.7} parent=5 // pred_check
      _
    $region30: #{a_call__.7} parent=5 // pred_check_branch
      %141 = sbr.rel (%p138) target = $region32
    $region31: #{a_call__.7} parent=5 // pred_region
      %s142 = ssub.s32 %s9, 1
      %p143 = scmp.lt.s32.totalorder %s14, 1
      %s144 = scalar_select %p143, %s14, 1
      %s145 = smul.addr %s144, 12
      %s146 = smul.addr %s145, 4
      %s147 = scalar_lea.vmem %s0, %s146
      %p148 = pneg %p35
      %p149 = pneg %p32
      %p150 = pneg %p56
      %p151 = pneg %p53
      %p152 = pneg %p77
      %p153 = pneg %p74
      %p154 = pneg %p103
      %p155 = pneg %p100
      %p156 = scmp.lt.s32.totalorder %s14, 1
      %s157 = scalar_select %p156, %s14, 1
      %s158 = smul.addr %s157, 12
      %s159 = smul.addr %s158, 4
      %s160 = scalar_lea.vmem %s3, %s159
      %p161 = scmp.lt.s32.totalorder %s14, 1
      %s162 = scalar_select %p161, %s14, 1
      %s163 = smul.addr %s162, 12
      %s164 = smul.addr %s163, 4
      %s165 = scalar_lea.vmem %s0, %s164
      %p166 = scmp.lt.s32.totalorder %s14, 1
      %s167 = scalar_select %p166, %s14, 1
      %s168 = smul.addr %s167, 12
      %s169 = smul.addr %s168, 4
      %s170 = scalar_lea.vmem %s3, %s169
      %v172 = vlaneseq
      %v173 = vand.u32 %v172, 127
      %v174 = vcvt.s32.f32 %v173
      %v175 = vrcp.pop 6.0
      %v176 = vmul.f32 %v174, %v175
      %v177 = vfloor.f32 %v176
      %v178 = vmul.f32 %v177, 6.0
      %v179 = vsub.f32 %v174, %v178
      %vm180 = vcmp.ge.f32.partialorder %v177, 1.0
      %vm181 = vcmp.lt.f32.partialorder %v177, 5.0
      %vm182 = vmand %vm180, %vm181
      %vm183 = vcmp.ge.f32.partialorder %v179, 1.0
      %vm184 = vmand %vm182, %vm183
      %vm185 = vcmp.lt.f32.partialorder %v179, 5.0
      %vm186 = vmand %vm184, %vm185
      %v187 = vld [vmem:[%s165] sm:$0xff]
      %v188 = vld [vmem:[%s165 + $0x8] sm:$0xf]
      %v189 = vld [vmem:[%s165 + $0xc] sm:$0xff]
      %v190 = vld [vmem:[%s165 + $0x14] sm:$0xf]
      %v191 = vld [vmem:[%s165 + $0x18] sm:$0xff]
      %v192 = vld [vmem:[%s165 + $0x20] sm:$0xf]
      %v193 = vld [vmem:[%s165 + $0x24] sm:$0xff]
      %v194 = vld [vmem:[%s165 + $0x2c] sm:$0xf]
      %v199 = vunpack.c.l.b16 %v187
      %v200 = vunpack.c.h.b16 %v187
      %v201 = vunpack.c.l.b16 %v189
      %v202 = vunpack.c.h.b16 %v189
      %v203 = vunpack.c.l.b16 %v191
      %v204 = vunpack.c.h.b16 %v191
      %v205 = vunpack.c.l.b16 %v193
      %v206 = vunpack.c.h.b16 %v193
      %v207 = vpack.c.b16 %v201, %v199
      %v208 = vpack.c.b16 %v202, %v200
      %v209 = vpack.c.b16 %v205, %v203
      %v210 = vpack.c.b16 %v206, %v204
      %211 = vrot.lane.b32.xlu0 %v207, 127
      %v212 = vpop.permute.xlu0 %211
      %213 = vrot.lane.b32.xlu0 %v208, 127
      %v214 = vpop.permute.xlu0 %213
      %215 = vrot.lane.b32.xlu0 %v209, 127
      %v216 = vpop.permute.xlu0 %215
      %217 = vrot.lane.b32.xlu0 %v210, 127
      %v218 = vpop.permute.xlu0 %217
      %vm219 = vcmask 1039360
      %v220 = vsel %vm219, %v212, %v214
      %v221 = vsel %vm219, %v216, %v218
      %222 = vrot.lane.b32.xlu0 %v207, 126
      %v223 = vpop.permute.xlu0 %222
      %224 = vrot.lane.b32.xlu0 %v208, 126
      %v225 = vpop.permute.xlu0 %224
      %226 = vrot.lane.b32.xlu0 %v209, 126
      %v227 = vpop.permute.xlu0 %226
      %228 = vrot.lane.b32.xlu0 %v210, 126
      %v229 = vpop.permute.xlu0 %228
      %vm230 = vcmask 1031168
      %v231 = vsel %vm230, %v223, %v225
      %v232 = vsel %vm230, %v227, %v229
      %233 = vrot.lane.b32.xlu0 %v207, 122
      %v234 = vpop.permute.xlu0 %233
      %235 = vrot.lane.b32.xlu0 %v208, 122
      %v236 = vpop.permute.xlu0 %235
      %237 = vrot.lane.b32.xlu0 %v209, 122
      %v238 = vpop.permute.xlu0 %237
      %239 = vrot.lane.b32.xlu0 %v210, 122
      %v240 = vpop.permute.xlu0 %239
      %vm241 = vcmask 998400
      %v242 = vsel %vm241, %v234, %v236
      %v243 = vsel %vm241, %v238, %v240
      %244 = vrot.lane.b32.xlu0 %v208, 121
      %v245 = vpop.permute.xlu0 %244
      %246 = vrot.lane.b32.xlu0 %v210, 121
      %v247 = vpop.permute.xlu0 %246
      %v252 = vunpack.c.l.b16 %v188
      %v253 = vunpack.c.l.b16 %v190
      %v254 = vunpack.c.l.b16 %v192
      %v255 = vunpack.c.l.b16 %v194
      %v256 = vpack.c.b16 %v253, %v252
      %v257 = vpack.c.b16 %v255, %v254
      %258 = vrot.lane.b32.xlu0 %v208, 120
      %v259 = vpop.permute.xlu0 %258
      %260 = vrot.lane.b32.xlu0 %v256, 120
      %v261 = vpop.permute.xlu0 %260
      %262 = vrot.lane.b32.xlu0 %v210, 120
      %v263 = vpop.permute.xlu0 %262
      %264 = vrot.lane.b32.xlu0 %v257, 120
      %v265 = vpop.permute.xlu0 %264
      %vm266 = vcmask 982016
      %v267 = vsel %vm266, %v259, %v261
      %v268 = vsel %vm266, %v263, %v265
      %269 = vrot.lane.b32.xlu0 %v208, 116
      %v270 = vpop.permute.xlu0 %269
      %271 = vrot.lane.b32.xlu0 %v256, 116
      %v272 = vpop.permute.xlu0 %271
      %273 = vrot.lane.b32.xlu0 %v210, 116
      %v274 = vpop.permute.xlu0 %273
      %275 = vrot.lane.b32.xlu0 %v257, 116
      %v276 = vpop.permute.xlu0 %275
      %vm277 = vcmask 949248
      %v278 = vsel %vm277, %v270, %v272
      %v279 = vsel %vm277, %v274, %v276
      %280 = vrot.lane.b32.xlu0 %v208, 115
      %v281 = vpop.permute.xlu0 %280
      %282 = vrot.lane.b32.xlu0 %v256, 115
      %v283 = vpop.permute.xlu0 %282
      %284 = vrot.lane.b32.xlu0 %v210, 115
      %v285 = vpop.permute.xlu0 %284
      %286 = vrot.lane.b32.xlu0 %v257, 115
      %v287 = vpop.permute.xlu0 %286
      %vm288 = vcmask 941056
      %v289 = vsel %vm288, %v281, %v283
      %v290 = vsel %vm288, %v285, %v287
      %291 = vrot.lane.b32.xlu0 %v208, 114
      %v292 = vpop.permute.xlu0 %291
      %293 = vrot.lane.b32.xlu0 %v256, 114
      %v294 = vpop.permute.xlu0 %293
      %295 = vrot.lane.b32.xlu0 %v210, 114
      %v296 = vpop.permute.xlu0 %295
      %297 = vrot.lane.b32.xlu0 %v257, 114
      %v298 = vpop.permute.xlu0 %297
      %vm299 = vcmask 932864
      %v300 = vsel %vm299, %v292, %v294
      %v301 = vsel %vm299, %v296, %v298
      %v302 = vld [vmem:[%s1] sm:$0xff]
      %v303 = vld [vmem:[%s1 + $0x8] sm:$0xf]
      %v304 = vld [vmem:[%s1 + $0xc] sm:$0xff]
      %v305 = vld [vmem:[%s1 + $0x14] sm:$0xf]
      %v306 = vld [vmem:[%s1 + $0x18] sm:$0xff]
      %v307 = vld [vmem:[%s1 + $0x20] sm:$0xf]
      %v308 = vld [vmem:[%s1 + $0x24] sm:$0xff]
      %v309 = vld [vmem:[%s1 + $0x2c] sm:$0xf]
      %v318 = vunpack.c.l.b16 %v302
      %v319 = vunpack.c.h.b16 %v302
      %v320 = vunpack.c.l.b16 %v303
      %v321 = vunpack.c.l.b16 %v304
      %v322 = vunpack.c.h.b16 %v304
      %v323 = vunpack.c.l.b16 %v305
      %v324 = vunpack.c.l.b16 %v306
      %v325 = vunpack.c.h.b16 %v306
      %v326 = vunpack.c.l.b16 %v307
      %v327 = vunpack.c.l.b16 %v308
      %v328 = vunpack.c.h.b16 %v308
      %v329 = vunpack.c.l.b16 %v309
      %v330 = vpack.c.b16 %v321, %v318
      %v331 = vpack.c.b16 %v322, %v319
      %v332 = vpack.c.b16 %v323, %v320
      %v333 = vpack.c.b16 %v327, %v324
      %v334 = vpack.c.b16 %v328, %v325
      %v335 = vpack.c.b16 %v329, %v326
      %340 = vrot.lane.b32.xlu0 %v207, 7
      %v341 = vpop.permute.xlu0 %340
      %342 = vrot.lane.b32.xlu0 %v208, 7
      %v343 = vpop.permute.xlu0 %342
      %344 = vrot.lane.b32.xlu0 %v209, 7
      %v345 = vpop.permute.xlu0 %344
      %346 = vrot.lane.b32.xlu0 %v210, 7
      %v347 = vpop.permute.xlu0 %346
      %348 = vrot.lane.b32.xlu0 %v220, 7
      %v349 = vpop.permute.xlu0 %348
      %350 = vrot.lane.b32.xlu0 %v214, 7
      %v351 = vpop.permute.xlu0 %350
      %352 = vrot.lane.b32.xlu0 %v221, 7
      %v353 = vpop.permute.xlu0 %352
      %354 = vrot.lane.b32.xlu0 %v218, 7
      %v355 = vpop.permute.xlu0 %354
      %356 = vrot.lane.b32.xlu0 %v231, 7
      %v357 = vpop.permute.xlu0 %356
      %358 = vrot.lane.b32.xlu0 %v225, 7
      %v359 = vpop.permute.xlu0 %358
      %360 = vrot.lane.b32.xlu0 %v232, 7
      %v361 = vpop.permute.xlu0 %360
      %362 = vrot.lane.b32.xlu0 %v229, 7
      %v363 = vpop.permute.xlu0 %362
      %364 = vrot.lane.b32.xlu0 %v242, 7
      %v365 = vpop.permute.xlu0 %364
      %366 = vrot.lane.b32.xlu0 %v236, 7
      %v367 = vpop.permute.xlu0 %366
      %368 = vrot.lane.b32.xlu0 %v243, 7
      %v369 = vpop.permute.xlu0 %368
      %370 = vrot.lane.b32.xlu0 %v240, 7
      %v371 = vpop.permute.xlu0 %370
      %372 = vrot.lane.b32.xlu0 %v245, 7
      %v373 = vpop.permute.xlu0 %372
      %374 = vrot.lane.b32.xlu0 %v247, 7
      %v375 = vpop.permute.xlu0 %374
      %376 = vrot.lane.b32.xlu0 %v259, 7
      %v377 = vpop.permute.xlu0 %376
      %378 = vrot.lane.b32.xlu0 %v267, 7
      %v379 = vpop.permute.xlu0 %378
      %380 = vrot.lane.b32.xlu0 %v263, 7
      %v381 = vpop.permute.xlu0 %380
      %382 = vrot.lane.b32.xlu0 %v268, 7
      %v383 = vpop.permute.xlu0 %382
      %384 = vrot.lane.b32.xlu0 %v270, 7
      %v385 = vpop.permute.xlu0 %384
      %386 = vrot.lane.b32.xlu0 %v278, 7
      %v387 = vpop.permute.xlu0 %386
      %388 = vrot.lane.b32.xlu0 %v274, 7
      %v389 = vpop.permute.xlu0 %388
      %390 = vrot.lane.b32.xlu0 %v279, 7
      %v391 = vpop.permute.xlu0 %390
      %392 = vrot.lane.b32.xlu0 %v281, 7
      %v393 = vpop.permute.xlu0 %392
      %394 = vrot.lane.b32.xlu0 %v289, 7
      %v395 = vpop.permute.xlu0 %394
      %396 = vrot.lane.b32.xlu0 %v285, 7
      %v397 = vpop.permute.xlu0 %396
      %398 = vrot.lane.b32.xlu0 %v290, 7
      %v399 = vpop.permute.xlu0 %398
      %400 = vrot.lane.b32.xlu0 %v292, 7
      %v401 = vpop.permute.xlu0 %400
      %402 = vrot.lane.b32.xlu0 %v300, 7
      %v403 = vpop.permute.xlu0 %402
      %404 = vrot.lane.b32.xlu0 %v296, 7
      %v405 = vpop.permute.xlu0 %404
      %406 = vrot.lane.b32.xlu0 %v301, 7
      %v407 = vpop.permute.xlu0 %406
      %vm408 = vcmask 56320
      %v409 = vsel %vm408, %v341, %v343
      %v410 = vsel %vm408, %v345, %v347
      %v411 = vsel %vm408, %v349, %v351
      %v412 = vsel %vm408, %v353, %v355
      %v413 = vsel %vm408, %v357, %v359
      %v414 = vsel %vm408, %v361, %v363
      %v415 = vsel %vm408, %v365, %v367
      %v416 = vsel %vm408, %v369, %v371
      %v417 = vsel %vm408, %v377, %v379
      %v418 = vsel %vm408, %v381, %v383
      %v419 = vsel %vm408, %v385, %v387
      %v420 = vsel %vm408, %v389, %v391
      %v421 = vsel %vm408, %v393, %v395
      %v422 = vsel %vm408, %v397, %v399
      %v423 = vsel %vm408, %v401, %v403
      %v424 = vsel %vm408, %v405, %v407
      %vm443 = vcmask 261120
      %v445 = vsel %vm443, %v332, 0
      %v448 = vsel %vm443, %v335, 0
      %450 = vmatprep.subr.bf16.mxu0 0
      %451 = vmatpush1.bf16.msra.mxu0 %v409
      %452 = vmatprep.subr.bf16.mxu0 0
      %453 = vmatpush1.bf16.msra.mxu0 %v410
      %454 = vmatprep.subr.bf16.mxu0 0
      %455 = vmatpush1.bf16.msra.mxu0 %v411
      %456 = vmatprep.subr.bf16.mxu0 0
      %457 = vmatpush1.bf16.msra.mxu0 %v412
      %458 = vmatprep.subr.bf16.mxu0 0
      %459 = vmatpush1.bf16.msra.mxu0 %v413
      %460 = vmatprep.subr.bf16.mxu0 0
      %461 = vmatpush1.bf16.msra.mxu0 %v414
      %462 = vmatprep.subr.bf16.mxu0 0
      %463 = vmatpush1.bf16.msra.mxu0 %v415
      %464 = vmatprep.subr.bf16.mxu0 0
      %465 = vmatpush1.bf16.msra.mxu0 %v416
      %466 = vmatprep.subr.bf16.mxu0 0
      %467 = vmatpush1.bf16.msra.mxu0 %v373
      %468 = vmatprep.subr.bf16.mxu0 0
      %469 = vmatpush1.bf16.msra.mxu0 %v375
      %470 = vmatprep.subr.bf16.mxu0 0
      %471 = vmatpush1.bf16.msra.mxu0 %v417
      %472 = vmatprep.subr.bf16.mxu0 0
      %473 = vmatpush1.bf16.msra.mxu0 %v418
      %474 = vmatprep.subr.bf16.mxu0 0
      %475 = vmatpush1.bf16.msra.mxu0 %v419
      %476 = vmatprep.subr.bf16.mxu0 0
      %477 = vmatpush1.bf16.msra.mxu0 %v420
      %478 = vmatprep.subr.bf16.mxu0 0
      %479 = vmatpush1.bf16.msra.mxu0 %v421
      %480 = vmatprep.subr.bf16.mxu0 0
      %481 = vmatpush1.bf16.msra.mxu0 %v422
      %482 = vmatprep.mubr.bf16.mxu0 %v331
      %483 = vmatmul.mubr.bf16.gmra.mrb[0].mxu0 %v330
      %v484 = vpop.f32.mrb[0].mxu0
      %v485 = vadd.f32 0.0, %v484
      %v486 = vpop.f32.mrb[0].mxu0
      %v487 = vpop.f32.mrb[0].mxu0
      %v488 = vadd.f32 0.0, %v487
      %v489 = vpop.f32.mrb[0].mxu0
      %490 = vmatprep.mubr.bf16.mxu0 %v334
      %491 = vmatmul.mubr.bf16.gmra.mrb[0].mxu0 %v333
      %v492 = vpop.f32.mrb[0].mxu0
      %v493 = vadd.f32 0.0, %v492
      %v494 = vpop.f32.mrb[0].mxu0
      %v495 = vpop.f32.mrb[0].mxu0
      %v496 = vadd.f32 0.0, %v495
      %v497 = vpop.f32.mrb[0].mxu0
      %498 = vdwg.mxu0
      %499 = vmatprep.subr.bf16.mxu0 0
      %500 = vmatpush1.bf16.msra.mxu0 %v423
      %501 = vmatprep.subr.bf16.mxu0 0
      %502 = vmatpush1.bf16.msra.mxu0 %v424
      %503 = vmatprep.subr.bf16.mxu0 0
      %504 = vmatpush1.bf16.msra.mxu0 0
      %505 = vmatprep.subr.bf16.mxu0 0
      %506 = vmatpush1.bf16.msra.mxu0 0
      %507 = vmatprep.subr.bf16.mxu0 0
      %508 = vmatpush1.bf16.msra.mxu0 0
      %509 = vmatprep.subr.bf16.mxu0 0
      %510 = vmatpush1.bf16.msra.mxu0 0
      %511 = vmatprep.subr.bf16.mxu0 0
      %512 = vmatpush1.bf16.msra.mxu0 0
      %513 = vmatprep.subr.bf16.mxu0 0
      %514 = vmatpush1.bf16.msra.mxu0 0
      %515 = vmatprep.subr.bf16.mxu0 0
      %516 = vmatpush1.bf16.msra.mxu0 0
      %517 = vmatprep.subr.bf16.mxu0 0
      %518 = vmatpush1.bf16.msra.mxu0 0
      %519 = vmatprep.subr.bf16.mxu0 0
      %520 = vmatpush1.bf16.msra.mxu0 0
      %521 = vmatprep.subr.bf16.mxu0 0
      %522 = vmatpush1.bf16.msra.mxu0 0
      %523 = vmatprep.subr.bf16.mxu0 0
      %524 = vmatpush1.bf16.msra.mxu0 0
      %525 = vmatprep.subr.bf16.mxu0 0
      %526 = vmatpush1.bf16.msra.mxu0 0
      %527 = vmatprep.subr.bf16.mxu0 0
      %528 = vmatpush1.bf16.msra.mxu0 0
      %529 = vmatprep.subr.bf16.mxu0 0
      %530 = vmatpush1.bf16.msra.mxu0 0
      %531 = vmatprep.mubr.bf16.mxu0 0
      %532 = vmatmul.mubr.bf16.gmra.mrb[0].mxu0 %v445
      %v533 = vpop.f32.mrb[0].mxu0
      %v534 = vadd.f32 %v485, %v533
      %v535 = vpop.f32.mrb[0].mxu0
      %v536 = vpop.f32.mrb[0].mxu0
      %v537 = vadd.f32 %v488, %v536
      %v538 = vpop.f32.mrb[0].mxu0
      %539 = vmatprep.mubr.bf16.mxu0 0
      %540 = vmatmul.mubr.bf16.gmra.mrb[0].mxu0 %v448
      %v541 = vpop.f32.mrb[0].mxu0
      %v542 = vadd.f32 %v493, %v541
      %v543 = vpop.f32.mrb[0].mxu0
      %v544 = vpop.f32.mrb[0].mxu0
      %v545 = vadd.f32 %v496, %v544
      %v546 = vpop.f32.mrb[0].mxu0
      %547 = vdwg.mxu0
      %v548 = vld [vmem:[%s2] sm:$0xff]
      %v549 = vld [vmem:[%s2 + $0x8] sm:$0xff]
      %v550 = vld [vmem:[%s2 + $0x10] sm:$0xff]
      %v551 = vld [vmem:[%s2 + $0x18] sm:$0xff]
      %553 = vset.pattern.permute.xlu0 0
      %554 = vperm.xlu0 %553, %v548
      %v555 = vpop.permute.xlu0 %554
      %558 = vset.pattern.permute.xlu0 0
      %559 = vperm.xlu0 %558, %v549
      %v560 = vpop.permute.xlu0 %559
      %563 = vset.pattern.permute.xlu0 0
      %564 = vperm.xlu0 %563, %v550
      %v565 = vpop.permute.xlu0 %564
      %568 = vset.pattern.permute.xlu0 0
      %569 = vperm.xlu0 %568, %v551
      %v570 = vpop.permute.xlu0 %569
      %v572 = vmul.f32 %v534, %v555
      %v573 = vmul.f32 %v537, %v560
      %v574 = vmul.f32 %v542, %v565
      %v575 = vmul.f32 %v545, %v570
      %576 = vset.pattern.permute.xlu0 1
      %577 = vperm.xlu0 %576, %v548
      %v578 = vpop.permute.xlu0 %577
      %580 = vset.pattern.permute.xlu0 1
      %581 = vperm.xlu0 %580, %v549
      %v582 = vpop.permute.xlu0 %581
      %584 = vset.pattern.permute.xlu0 1
      %585 = vperm.xlu0 %584, %v550
      %v586 = vpop.permute.xlu0 %585
      %588 = vset.pattern.permute.xlu0 1
      %589 = vperm.xlu0 %588, %v551
      %v590 = vpop.permute.xlu0 %589
      %v592 = vadd.f32 %v572, %v578
      %v593 = vadd.f32 %v573, %v582
      %v594 = vadd.f32 %v574, %v586
      %v595 = vadd.f32 %v575, %v590
      %v596 = vmax.f32 %v592, 0.0
      %v597 = vmax.f32 %v593, 0.0
      %v598 = vmax.f32 %v594, 0.0
      %v599 = vmax.f32 %v595, 0.0
      %v600 = vsel %vm186, 1, 0
      %vm601 = vcmp.eq.s32.totalorder %v600, 1
      %v602 = vsel %vm601, %v596, 0.0
      %v603 = vsel %vm601, %v597, 0.0
      %v604 = vsel %vm601, %v598, 0.0
      %v605 = vsel %vm601, %v599, 0.0
      %v606 = vpack.c.bf16 %v603, %v602
      %v607 = vpack.c.bf16 %v605, %v604
      %611 = vrot.lane.b32.xlu0 0, 127
      %v612 = vpop.permute.xlu0 %611
      %613 = vrot.lane.b32.xlu0 %v606, 127
      %v614 = vpop.permute.xlu0 %613
      %615 = vrot.lane.b32.xlu0 %v607, 127
      %v616 = vpop.permute.xlu0 %615
      %v617 = vsel %vm219, %v612, %v614
      %v618 = vsel %vm219, %v612, %v616
      %619 = vrot.lane.b32.xlu0 0, 126
      %v620 = vpop.permute.xlu0 %619
      %621 = vrot.lane.b32.xlu0 %v606, 126
      %v622 = vpop.permute.xlu0 %621
      %623 = vrot.lane.b32.xlu0 %v607, 126
      %v624 = vpop.permute.xlu0 %623
      %v625 = vsel %vm230, %v620, %v622
      %v626 = vsel %vm230, %v620, %v624
      %627 = vrot.lane.b32.xlu0 0, 122
      %v628 = vpop.permute.xlu0 %627
      %629 = vrot.lane.b32.xlu0 %v606, 122
      %v630 = vpop.permute.xlu0 %629
      %631 = vrot.lane.b32.xlu0 %v607, 122
      %v632 = vpop.permute.xlu0 %631
      %v633 = vsel %vm241, %v628, %v630
      %v634 = vsel %vm241, %v628, %v632
      %635 = vrot.lane.b32.xlu0 %v606, 121
      %v636 = vpop.permute.xlu0 %635
      %637 = vrot.lane.b32.xlu0 %v607, 121
      %v638 = vpop.permute.xlu0 %637
      %639 = vrot.lane.b32.xlu0 %v606, 120
      %v640 = vpop.permute.xlu0 %639
      %641 = vrot.lane.b32.xlu0 0, 120
      %v642 = vpop.permute.xlu0 %641
      %643 = vrot.lane.b32.xlu0 %v607, 120
      %v644 = vpop.permute.xlu0 %643
      %v645 = vsel %vm266, %v640, %v642
      %v646 = vsel %vm266, %v644, %v642
      %647 = vrot.lane.b32.xlu0 %v606, 116
      %v648 = vpop.permute.xlu0 %647
      %649 = vrot.lane.b32.xlu0 0, 116
      %v650 = vpop.permute.xlu0 %649
      %651 = vrot.lane.b32.xlu0 %v607, 116
      %v652 = vpop.permute.xlu0 %651
      %v653 = vsel %vm277, %v648, %v650
      %v654 = vsel %vm277, %v652, %v650
      %655 = vrot.lane.b32.xlu0 %v606, 115
      %v656 = vpop.permute.xlu0 %655
      %657 = vrot.lane.b32.xlu0 0, 115
      %v658 = vpop.permute.xlu0 %657
      %659 = vrot.lane.b32.xlu0 %v607, 115
      %v660 = vpop.permute.xlu0 %659
      %v661 = vsel %vm288, %v656, %v658
      %v662 = vsel %vm288, %v660, %v658
      %663 = vrot.lane.b32.xlu0 %v606, 114
      %v664 = vpop.permute.xlu0 %663
      %665 = vrot.lane.b32.xlu0 0, 114
      %v666 = vpop.permute.xlu0 %665
      %667 = vrot.lane.b32.xlu0 %v607, 114
      %v668 = vpop.permute.xlu0 %667
      %v669 = vsel %vm299, %v664, %v666
      %v670 = vsel %vm299, %v668, %v666
      %s671 = scalar_lea.vmem %s1, 48
      %v672 = vld [vmem:[%s671] sm:$0xff]
      %v673 = vld [vmem:[%s671 + $0x8] sm:$0xf]
      %v674 = vld [vmem:[%s671 + $0xc] sm:$0xff]
      %v675 = vld [vmem:[%s671 + $0x14] sm:$0xf]
      %v676 = vld [vmem:[%s671 + $0x18] sm:$0xff]
      %v677 = vld [vmem:[%s671 + $0x20] sm:$0xf]
      %v678 = vld [vmem:[%s671 + $0x24] sm:$0xff]
      %v679 = vld [vmem:[%s671 + $0x2c] sm:$0xf]
      %v688 = vunpack.c.l.b16 %v672
      %v689 = vunpack.c.h.b16 %v672
      %v690 = vunpack.c.l.b16 %v673
      %v691 = vunpack.c.l.b16 %v674
      %v692 = vunpack.c.h.b16 %v674
      %v693 = vunpack.c.l.b16 %v675
      %v694 = vunpack.c.l.b16 %v676
      %v695 = vunpack.c.h.b16 %v676
      %v696 = vunpack.c.l.b16 %v677
      %v697 = vunpack.c.l.b16 %v678
      %v698 = vunpack.c.h.b16 %v678
      %v699 = vunpack.c.l.b16 %v679
      %v700 = vpack.c.b16 %v691, %v688
      %v701 = vpack.c.b16 %v692, %v689
      %v702 = vpack.c.b16 %v693, %v690
      %v703 = vpack.c.b16 %v697, %v694
      %v704 = vpack.c.b16 %v698, %v695
      %v705 = vpack.c.b16 %v699, %v696
      %710 = vrot.lane.b32.xlu0 0, 7
      %v711 = vpop.permute.xlu0 %710
      %712 = vrot.lane.b32.xlu0 %v606, 7
      %v713 = vpop.permute.xlu0 %712
      %714 = vrot.lane.b32.xlu0 %v607, 7
      %v715 = vpop.permute.xlu0 %714
      %716 = vrot.lane.b32.xlu0 %v617, 7
      %v717 = vpop.permute.xlu0 %716
      %718 = vrot.lane.b32.xlu0 %v614, 7
      %v719 = vpop.permute.xlu0 %718
      %720 = vrot.lane.b32.xlu0 %v618, 7
      %v721 = vpop.permute.xlu0 %720
      %722 = vrot.lane.b32.xlu0 %v616, 7
      %v723 = vpop.permute.xlu0 %722
      %724 = vrot.lane.b32.xlu0 %v625, 7
      %v725 = vpop.permute.xlu0 %724
      %726 = vrot.lane.b32.xlu0 %v622, 7
      %v727 = vpop.permute.xlu0 %726
      %728 = vrot.lane.b32.xlu0 %v626, 7
      %v729 = vpop.permute.xlu0 %728
      %730 = vrot.lane.b32.xlu0 %v624, 7
      %v731 = vpop.permute.xlu0 %730
      %732 = vrot.lane.b32.xlu0 %v633, 7
      %v733 = vpop.permute.xlu0 %732
      %734 = vrot.lane.b32.xlu0 %v630, 7
      %v735 = vpop.permute.xlu0 %734
      %736 = vrot.lane.b32.xlu0 %v634, 7
      %v737 = vpop.permute.xlu0 %736
      %738 = vrot.lane.b32.xlu0 %v632, 7
      %v739 = vpop.permute.xlu0 %738
      %740 = vrot.lane.b32.xlu0 %v636, 7
      %v741 = vpop.permute.xlu0 %740
      %742 = vrot.lane.b32.xlu0 %v638, 7
      %v743 = vpop.permute.xlu0 %742
      %744 = vrot.lane.b32.xlu0 %v640, 7
      %v745 = vpop.permute.xlu0 %744
      %746 = vrot.lane.b32.xlu0 %v645, 7
      %v747 = vpop.permute.xlu0 %746
      %748 = vrot.lane.b32.xlu0 %v644, 7
      %v749 = vpop.permute.xlu0 %748
      %750 = vrot.lane.b32.xlu0 %v646, 7
      %v751 = vpop.permute.xlu0 %750
      %752 = vrot.lane.b32.xlu0 %v648, 7
      %v753 = vpop.permute.xlu0 %752
      %754 = vrot.lane.b32.xlu0 %v653, 7
      %v755 = vpop.permute.xlu0 %754
      %756 = vrot.lane.b32.xlu0 %v652, 7
      %v757 = vpop.permute.xlu0 %756
      %758 = vrot.lane.b32.xlu0 %v654, 7
      %v759 = vpop.permute.xlu0 %758
      %760 = vrot.lane.b32.xlu0 %v656, 7
      %v761 = vpop.permute.xlu0 %760
      %762 = vrot.lane.b32.xlu0 %v661, 7
      %v763 = vpop.permute.xlu0 %762
      %764 = vrot.lane.b32.xlu0 %v660, 7
      %v765 = vpop.permute.xlu0 %764
      %766 = vrot.lane.b32.xlu0 %v662, 7
      %v767 = vpop.permute.xlu0 %766
      %768 = vrot.lane.b32.xlu0 %v664, 7
      %v769 = vpop.permute.xlu0 %768
      %770 = vrot.lane.b32.xlu0 %v669, 7
      %v771 = vpop.permute.xlu0 %770
      %772 = vrot.lane.b32.xlu0 %v668, 7
      %v773 = vpop.permute.xlu0 %772
      %774 = vrot.lane.b32.xlu0 %v670, 7
      %v775 = vpop.permute.xlu0 %774
      %v776 = vsel %vm408, %v711, %v713
      %v777 = vsel %vm408, %v711, %v715
      %v778 = vsel %vm408, %v717, %v719
      %v779 = vsel %vm408, %v721, %v723
      %v780 = vsel %vm408, %v725, %v727
      %v781 = vsel %vm408, %v729, %v731
      %v782 = vsel %vm408, %v733, %v735
      %v783 = vsel %vm408, %v737, %v739
      %v784 = vsel %vm408, %v745, %v747
      %v785 = vsel %vm408, %v749, %v751
      %v786 = vsel %vm408, %v753, %v755
      %v787 = vsel %vm408, %v757, %v759
      %v788 = vsel %vm408, %v761, %v763
      %v789 = vsel %vm408, %v765, %v767
      %v790 = vsel %vm408, %v769, %v771
      %v791 = vsel %vm408, %v773, %v775
      %v811 = vsel %vm443, %v702, 0
      %v814 = vsel %vm443, %v705, 0
      %816 = vmatprep.subr.bf16.mxu0 0
      %817 = vmatpush1.bf16.msra.mxu0 %v776
      %818 = vmatprep.subr.bf16.mxu0 0
      %819 = vmatpush1.bf16.msra.mxu0 %v777
      %820 = vmatprep.subr.bf16.mxu0 0
      %821 = vmatpush1.bf16.msra.mxu0 %v778
      %822 = vmatprep.subr.bf16.mxu0 0
      %823 = vmatpush1.bf16.msra.mxu0 %v779
      %824 = vmatprep.subr.bf16.mxu0 0
      %825 = vmatpush1.bf16.msra.mxu0 %v780
      %826 = vmatprep.subr.bf16.mxu0 0
      %827 = vmatpush1.bf16.msra.mxu0 %v781
      %828 = vmatprep.subr.bf16.mxu0 0
      %829 = vmatpush1.bf16.msra.mxu0 %v782
      %830 = vmatprep.subr.bf16.mxu0 0
      %831 = vmatpush1.bf16.msra.mxu0 %v783
      %832 = vmatprep.subr.bf16.mxu0 0
      %833 = vmatpush1.bf16.msra.mxu0 %v741
      %834 = vmatprep.subr.bf16.mxu0 0
      %835 = vmatpush1.bf16.msra.mxu0 %v743
      %836 = vmatprep.subr.bf16.mxu0 0
      %837 = vmatpush1.bf16.msra.mxu0 %v784
      %838 = vmatprep.subr.bf16.mxu0 0
      %839 = vmatpush1.bf16.msra.mxu0 %v785
      %840 = vmatprep.subr.bf16.mxu0 0
      %841 = vmatpush1.bf16.msra.mxu0 %v786
      %842 = vmatprep.subr.bf16.mxu0 0
      %843 = vmatpush1.bf16.msra.mxu0 %v787
      %844 = vmatprep.subr.bf16.mxu0 0
      %845 = vmatpush1.bf16.msra.mxu0 %v788
      %846 = vmatprep.subr.bf16.mxu0 0
      %847 = vmatpush1.bf16.msra.mxu0 %v789
      %848 = vmatprep.mubr.bf16.mxu0 %v701
      %849 = vmatmul.mubr.bf16.gmra.mrb[0].mxu0 %v700
      %v850 = vpop.f32.mrb[0].mxu0
      %v851 = vadd.f32 0.0, %v850
      %v852 = vpop.f32.mrb[0].mxu0
      %v853 = vpop.f32.mrb[0].mxu0
      %v854 = vadd.f32 0.0, %v853
      %v855 = vpop.f32.mrb[0].mxu0
      %856 = vmatprep.mubr.bf16.mxu0 %v704
      %857 = vmatmul.mubr.bf16.gmra.mrb[0].mxu0 %v703
      %v858 = vpop.f32.mrb[0].mxu0
      %v859 = vadd.f32 0.0, %v858
      %v860 = vpop.f32.mrb[0].mxu0
      %v861 = vpop.f32.mrb[0].mxu0
      %v862 = vadd.f32 0.0, %v861
      %v863 = vpop.f32.mrb[0].mxu0
      %864 = vdwg.mxu0
      %865 = vmatprep.subr.bf16.mxu0 0
      %866 = vmatpush1.bf16.msra.mxu0 %v790
      %867 = vmatprep.subr.bf16.mxu0 0
      %868 = vmatpush1.bf16.msra.mxu0 %v791
      %869 = vmatprep.subr.bf16.mxu0 0
      %870 = vmatpush1.bf16.msra.mxu0 0
      %871 = vmatprep.subr.bf16.mxu0 0
      %872 = vmatpush1.bf16.msra.mxu0 0
      %873 = vmatprep.subr.bf16.mxu0 0
      %874 = vmatpush1.bf16.msra.mxu0 0
      %875 = vmatprep.subr.bf16.mxu0 0
      %876 = vmatpush1.bf16.msra.mxu0 0
      %877 = vmatprep.subr.bf16.mxu0 0
      %878 = vmatpush1.bf16.msra.mxu0 0
      %879 = vmatprep.subr.bf16.mxu0 0
      %880 = vmatpush1.bf16.msra.mxu0 0
      %881 = vmatprep.subr.bf16.mxu0 0
      %882 = vmatpush1.bf16.msra.mxu0 0
      %883 = vmatprep.subr.bf16.mxu0 0
      %884 = vmatpush1.bf16.msra.mxu0 0
      %885 = vmatprep.subr.bf16.mxu0 0
      %886 = vmatpush1.bf16.msra.mxu0 0
      %887 = vmatprep.subr.bf16.mxu0 0
      %888 = vmatpush1.bf16.msra.mxu0 0
      %889 = vmatprep.subr.bf16.mxu0 0
      %890 = vmatpush1.bf16.msra.mxu0 0
      %891 = vmatprep.subr.bf16.mxu0 0
      %892 = vmatpush1.bf16.msra.mxu0 0
      %893 = vmatprep.subr.bf16.mxu0 0
      %894 = vmatpush1.bf16.msra.mxu0 0
      %895 = vmatprep.subr.bf16.mxu0 0
      %896 = vmatpush1.bf16.msra.mxu0 0
      %897 = vmatprep.mubr.bf16.mxu0 0
      %898 = vmatmul.mubr.bf16.gmra.mrb[0].mxu0 %v811
      %v899 = vpop.f32.mrb[0].mxu0
      %v900 = vadd.f32 %v851, %v899
      %v901 = vpop.f32.mrb[0].mxu0
      %v902 = vpop.f32.mrb[0].mxu0
      %v903 = vadd.f32 %v854, %v902
      %v904 = vpop.f32.mrb[0].mxu0
      %905 = vmatprep.mubr.bf16.mxu0 0
      %906 = vmatmul.mubr.bf16.gmra.mrb[0].mxu0 %v814
      %v907 = vpop.f32.mrb[0].mxu0
      %v908 = vadd.f32 %v859, %v907
      %v909 = vpop.f32.mrb[0].mxu0
      %v910 = vpop.f32.mrb[0].mxu0
      %v911 = vadd.f32 %v862, %v910
      %v912 = vpop.f32.mrb[0].mxu0
      %913 = vdwg.mxu0
      %s914 = scalar_lea.vmem %s2, 32
      %v915 = vld [vmem:[%s914] sm:$0xff]
      %v916 = vld [vmem:[%s914 + $0x8] sm:$0xff]
      %v917 = vld [vmem:[%s914 + $0x10] sm:$0xff]
      %v918 = vld [vmem:[%s914 + $0x18] sm:$0xff]
      %920 = vset.pattern.permute.xlu0 0
      %921 = vperm.xlu0 %920, %v915
      %v922 = vpop.permute.xlu0 %921
      %925 = vset.pattern.permute.xlu0 0
      %926 = vperm.xlu0 %925, %v916
      %v927 = vpop.permute.xlu0 %926
      %930 = vset.pattern.permute.xlu0 0
      %931 = vperm.xlu0 %930, %v917
      %v932 = vpop.permute.xlu0 %931
      %935 = vset.pattern.permute.xlu0 0
      %936 = vperm.xlu0 %935, %v918
      %v937 = vpop.permute.xlu0 %936
      %v939 = vmul.f32 %v900, %v922
      %v940 = vmul.f32 %v903, %v927
      %v941 = vmul.f32 %v908, %v932
      %v942 = vmul.f32 %v911, %v937
      %943 = vset.pattern.permute.xlu0 1
      %944 = vperm.xlu0 %943, %v915
      %v945 = vpop.permute.xlu0 %944
      %947 = vset.pattern.permute.xlu0 1
      %948 = vperm.xlu0 %947, %v916
      %v949 = vpop.permute.xlu0 %948
      %951 = vset.pattern.permute.xlu0 1
      %952 = vperm.xlu0 %951, %v917
      %v953 = vpop.permute.xlu0 %952
      %955 = vset.pattern.permute.xlu0 1
      %956 = vperm.xlu0 %955, %v918
      %v957 = vpop.permute.xlu0 %956
      %v959 = vadd.f32 %v939, %v945
      %v960 = vadd.f32 %v940, %v949
      %v961 = vadd.f32 %v941, %v953
      %v962 = vadd.f32 %v942, %v957
      %v963 = vmax.f32 %v959, 0.0
      %v964 = vmax.f32 %v960, 0.0
      %v965 = vmax.f32 %v961, 0.0
      %v966 = vmax.f32 %v962, 0.0
      %v967 = vsel %vm601, %v963, 0.0
      %v968 = vsel %vm601, %v964, 0.0
      %v969 = vsel %vm601, %v965, 0.0
      %v970 = vsel %vm601, %v966, 0.0
      %v971 = vpack.c.bf16 %v968, %v967
      %v972 = vpack.c.bf16 %v970, %v969
      %v975 = vunpack.c.l.b16 0
      %v976 = vunpack.c.l.b16 %v971
      %v977 = vunpack.c.h.b16 0
      %v978 = vunpack.c.h.b16 %v971
      %v979 = vunpack.c.l.b16 %v972
      %v980 = vunpack.c.h.b16 %v972
      %v981 = vpack.c.b16 %v976, %v975
      %v982 = vpack.c.b16 %v975, %v975
      %v983 = vpack.c.b16 %v978, %v977
      %v984 = vpack.c.b16 %v977, %v977
      %v985 = vpack.c.b16 %v979, %v975
      %v986 = vpack.c.b16 %v980, %v977
      %993 = vst [vmem:[%s170] sm:$0xff] %v981
      %994 = vst [vmem:[%s170 + $0x8] sm:$0xf] %v982
      %995 = vst [vmem:[%s170 + $0xc] sm:$0xff] %v983
      %996 = vst [vmem:[%s170 + $0x14] sm:$0xf] %v984
      %997 = vst [vmem:[%s170 + $0x18] sm:$0xff] %v985
      %998 = vst [vmem:[%s170 + $0x20] sm:$0xf] %v982
      %999 = vst [vmem:[%s170 + $0x24] sm:$0xff] %v986
      %1000 = vst [vmem:[%s170 + $0x2c] sm:$0xf] %v984
      %p1001 = scmp.lt.s32.totalorder %s14, 1
      %s1002 = scalar_select %p1001, %s14, 1
      %s1003 = smul.addr %s1002, 12
      %s1004 = smul.addr %s1003, 4
      %s1005 = scalar_lea.vmem %s3, %s1004
      // Predicated region
      $region33: #{a_call__.7} parent=31 // pred_check
        %p1006 = pneg %p100
      $region34: #{a_call__.7} parent=31 // pred_check_branch
        %1008 = sbr.rel (%p1006) target = $region36
      $region35: #{a_call__.7} parent=31 // pred_region
        _
      $region36: #{a_call__.7} parent=31 // pred_fallthru
        _
    $region32: #{a_call__.7} parent=5 // pred_fallthru
      _
    %p1009 = scmp.le.s32.totalorder 2, %s9
    // Predicated region
    $region37: #{a_call__.7} parent=5 // pred_check
      %p1010 = pneg %p1009
    $region38: #{a_call__.7} parent=5 // pred_check_branch
      %1012 = sbr.rel (%p1010) target = $region40
    $region39: #{a_call__.7} parent=5 // pred_region
      %s1013 = ssub.s32 %s9, 2
      // Predicated region
      $region41: #{a_call__.7} parent=39 // pred_check
        %p1014 = pneg %p106
      $region42: #{a_call__.7} parent=39 // pred_check_branch
        %1016 = sbr.rel (%p1014) target = $region44
      $region43: #{a_call__.7} parent=39 // pred_region
        %p1017 = scmp.lt.s32.totalorder %s15, 1
        %s1018 = scalar_select %p1017, %s15, 1
        %s1019 = smul.addr %s1018, 12
        %s1020 = smul.addr %s1019, 4
        %s1021 = scalar_lea.vmem %s3, %s1020
      $region44: #{a_call__.7} parent=39 // pred_fallthru
        _
    $region40: #{a_call__.7} parent=5 // pred_fallthru
      _
  $region6: #{a_call__.7} parent=0 // loop_footer
    %s13 = sadd.s32 1, %s9
  $region7: #{a_call__.7} parent=0 // loop_footer_branch
    %8 = sbr.rel target = $region3
  $region8: #{a_call__.7} parent=0 // loop_exit
    _

// kernel: a_call__.8
$region0: #{a_call__.8}
  #allocation0 [shape = 'u32[]', space=smem, size = 0x4, offset = 0x4, fixed_abs, tag = 'smem constant byte address 0x4 - core index']
  #allocation1 [shape = 'u32[144,128]{1,0:T(1,128)}', space=vmem, size = 0x12000, scoped, tag = 'internal scratch']
  %s0 = inlined_call_operand.vmem [shape: bf16[2,32,384], index: 0, kind: input, shape index: {}]
  %s1 = inlined_call_operand.vmem [shape: bf16[2,32,288], index: 1, kind: input, shape index: {}]
  %s2 = inlined_call_operand.vmem [shape: f32[2,32,2], index: 2, kind: input, shape index: {}]
  %s3 = inlined_call_operand.vmem [shape: bf16[2,32,384], index: 3, kind: output, shape index: {}]
  %s4 = sld [smem:[#allocation0]]
  $region45: #{a_call__.8} parent=0
    _
  %s6 = ssub.s32 1, %s4
  %s7 = scalar_select 0, %s6, %s4
  loop: start=0, step=1, limit=4
  $region2: #{a_call__.8} parent=0 // loop_pre_header
    _
  $region3: #{a_call__.8} parent=0 // loop_header
    %s9 = sphi 0, %s13
    %p10 = scmp.ge.s32.totalorder %s9, 4
    %s19 = sphi 0, %s21
    %s22 = sphi 0, %s19
    %s23 = sphi 0, %s22
    %s39 = sphi 0, %s23
    %s43 = sphi 0, %s43
    %s45 = sphi 0, %s43
    %s46 = sphi 0, %s45
    %s60 = sphi 0, %s46
    %s64 = sphi 0, %s64
    %s66 = sphi 0, %s64
    %s67 = sphi 0, %s66
    %s81 = sphi 0, %s67
    %s87 = sphi 0, %s89
    %s90 = sphi 0, %s87
    %s91 = sphi 0, %s90
    %s107 = sphi 0, %s91
  $region4: #{a_call__.8} parent=0 // loop_header_branch
    %12 = sbr.rel (%p10) target = $region8
  $region5: #{a_call__.8} parent=0 // loop_body
    %s14 = ssub.s32 %s9, 1
    %s15 = ssub.s32 %s9, 2
    %s16 = sadd.s32 %s9, 1
    %s17 = ssub.s32 %s9, %s16
    %p18 = scmp.eq.s32.totalorder %s17, 0
    %s20 = sadd.s32 %s19, 1
    %s21 = scalar_select %p18, %s19, %s20
    %p24 = pneg %p18
    %p25 = scmp.eq.s32.totalorder %s9, 1
    %p26 = por %p24, %p25
    %p27 = scmp.ne.s32.totalorder %s19, %s22
    %p28 = scmp.eq.s32.totalorder %s9, 0
    %p29 = por %p27, %p28
    %p30 = scmp.ne.s32.totalorder %s19, %s22
    %p31 = scmp.eq.s32.totalorder %s14, 1
    %p32 = por %p30, %p31
    %p33 = scmp.ne.s32.totalorder %s22, %s23
    %p34 = scmp.eq.s32.totalorder %s14, 0
    %p35 = por %p33, %p34
    %p36 = scmp.ne.s32.totalorder %s22, %s23
    %p37 = scmp.eq.s32.totalorder %s15, 1
    %p38 = por %p36, %p37
    %p40 = scmp.ne.s32.totalorder %s23, %s39
    %p41 = scmp.eq.s32.totalorder %s15, 0
    %p42 = por %p40, %p41
    %s44 = sadd.s32 %s43, 1
    %p47 = scmp.eq.s32.totalorder %s9, 1
    %p48 = scmp.ne.s32.totalorder %s43, %s45
    %p49 = scmp.eq.s32.totalorder %s9, 0
    %p50 = por %p48, %p49
    %p51 = scmp.ne.s32.totalorder %s43, %s45
    %p52 = scmp.eq.s32.totalorder %s14, 1
    %p53 = por %p51, %p52
    %p54 = scmp.ne.s32.totalorder %s45, %s46
    %p55 = scmp.eq.s32.totalorder %s14, 0
    %p56 = por %p54, %p55
    %p57 = scmp.ne.s32.totalorder %s45, %s46
    %p58 = scmp.eq.s32.totalorder %s15, 1
    %p59 = por %p57, %p58
    %p61 = scmp.ne.s32.totalorder %s46, %s60
    %p62 = scmp.eq.s32.totalorder %s15, 0
    %p63 = por %p61, %p62
    %s65 = sadd.s32 %s64, 1
    %p68 = scmp.eq.s32.totalorder %s9, 1
    %p69 = scmp.ne.s32.totalorder %s64, %s66
    %p70 = scmp.eq.s32.totalorder %s9, 0
    %p71 = por %p69, %p70
    %p72 = scmp.ne.s32.totalorder %s64, %s66
    %p73 = scmp.eq.s32.totalorder %s14, 1
    %p74 = por %p72, %p73
    %p75 = scmp.ne.s32.totalorder %s66, %s67
    %p76 = scmp.eq.s32.totalorder %s14, 0
    %p77 = por %p75, %p76
    %p78 = scmp.ne.s32.totalorder %s66, %s67
    %p79 = scmp.eq.s32.totalorder %s15, 1
    %p80 = por %p78, %p79
    %p82 = scmp.ne.s32.totalorder %s67, %s81
    %p83 = scmp.eq.s32.totalorder %s15, 0
    %p84 = por %p82, %p83
    %s85 = ssub.s32 %s9, %s16
    %p86 = scmp.eq.s32.totalorder %s85, 0
    %s88 = sadd.s32 %s87, 1
    %s89 = scalar_select %p86, %s87, %s88
    %p92 = pneg %p86
    %p93 = scmp.eq.s32.totalorder %s9, 1
    %p94 = por %p92, %p93
    %p95 = scmp.ne.s32.totalorder %s87, %s90
    %p96 = scmp.eq.s32.totalorder %s9, 0
    %p97 = por %p95, %p96
    %p98 = scmp.ne.s32.totalorder %s87, %s90
    %p99 = scmp.eq.s32.totalorder %s14, 1
    %p100 = por %p98, %p99
    %p101 = scmp.ne.s32.totalorder %s90, %s91
    %p102 = scmp.eq.s32.totalorder %s14, 0
    %p103 = por %p101, %p102
    %p104 = scmp.ne.s32.totalorder %s90, %s91
    %p105 = scmp.eq.s32.totalorder %s15, 1
    %p106 = por %p104, %p105
    %p108 = scmp.ne.s32.totalorder %s91, %s107
    %p109 = scmp.eq.s32.totalorder %s15, 0
    %p110 = por %p108, %p109
    %p111 = scmp.le.s32.totalorder 1, %s9
    %p112 = scmp.lt.s32.totalorder %s9, 3
    %p113 = pnand %p111, %p112
    %p114 = pneg %p113
    // Predicated region
    $region9: #{a_call__.8} parent=5 // pred_check
      _
    $region10: #{a_call__.8} parent=5 // pred_check_branch
      %116 = sbr.rel (%p113) target = $region12
    $region11: #{a_call__.8} parent=5 // pred_region
      %s117 = ssub.s32 %s9, 1
      // Predicated region
      $region13: #{a_call__.8} parent=11 // pred_check
        %p118 = pneg %p56
      $region14: #{a_call__.8} parent=11 // pred_check_branch
        %120 = sbr.rel (%p118) target = $region16
      $region15: #{a_call__.8} parent=11 // pred_region
        _
      $region16: #{a_call__.8} parent=11 // pred_fallthru
        _
      // Predicated region
      $region17: #{a_call__.8} parent=11 // pred_check
        %p121 = pneg %p77
      $region18: #{a_call__.8} parent=11 // pred_check_branch
        %123 = sbr.rel (%p121) target = $region20
      $region19: #{a_call__.8} parent=11 // pred_region
        _
      $region20: #{a_call__.8} parent=11 // pred_fallthru
        _
    $region12: #{a_call__.8} parent=5 // pred_fallthru
      _
    %p124 = scmp.lt.s32.totalorder %s9, 2
    // Predicated region
    $region21: #{a_call__.8} parent=5 // pred_check
      %p125 = pneg %p124
    $region22: #{a_call__.8} parent=5 // pred_check_branch
      %127 = sbr.rel (%p125) target = $region24
    $region23: #{a_call__.8} parent=5 // pred_region
      // Predicated region
      $region25: #{a_call__.8} parent=23 // pred_check
        %p128 = pneg %p29
      $region26: #{a_call__.8} parent=23 // pred_check_branch
        %130 = sbr.rel (%p128) target = $region28
      $region27: #{a_call__.8} parent=23 // pred_region
        %p131 = scmp.lt.s32.totalorder %s9, 1
        %s132 = scalar_select %p131, %s9, 1
        %s133 = smul.addr %s132, 12
        %s134 = smul.addr %s133, 4
        %s135 = scalar_lea.vmem %s0, %s134
      $region28: #{a_call__.8} parent=23 // pred_fallthru
        _
    $region24: #{a_call__.8} parent=5 // pred_fallthru
      _
    %p136 = scmp.le.s32.totalorder 1, %s9
    %p137 = scmp.lt.s32.totalorder %s9, 3
    %p138 = pnand %p136, %p137
    %p139 = pneg %p138
    // Predicated region
    $region29: #{a_call__.8} parent=5 // pred_check
      _
    $region30: #{a_call__.8} parent=5 // pred_check_branch
      %141 = sbr.rel (%p138) target = $region32
    $region31: #{a_call__.8} parent=5 // pred_region
      %s142 = ssub.s32 %s9, 1
      %p143 = scmp.lt.s32.totalorder %s14, 1
      %s144 = scalar_select %p143, %s14, 1
      %s145 = smul.addr %s144, 12
      %s146 = smul.addr %s145, 4
      %s147 = scalar_lea.vmem %s0, %s146
      %p148 = pneg %p35
      %p149 = pneg %p32
      %p150 = pneg %p56
      %p151 = pneg %p53
      %p152 = pneg %p77
      %p153 = pneg %p74
      %p154 = pneg %p103
      %p155 = pneg %p100
      %p156 = scmp.lt.s32.totalorder %s14, 1
      %s157 = scalar_select %p156, %s14, 1
      %s158 = smul.addr %s157, 12
      %s159 = smul.addr %s158, 4
      %s160 = scalar_lea.vmem %s3, %s159
      %p161 = scmp.lt.s32.totalorder %s14, 1
      %s162 = scalar_select %p161, %s14, 1
      %s163 = smul.addr %s162, 12
      %s164 = smul.addr %s163, 4
      %s165 = scalar_lea.vmem %s0, %s164
      %p166 = scmp.lt.s32.totalorder %s14, 1
      %s167 = scalar_select %p166, %s14, 1
      %s168 = smul.addr %s167, 12
      %s169 = smul.addr %s168, 4
      %s170 = scalar_lea.vmem %s3, %s169
      %v172 = vlaneseq
      %v173 = vand.u32 %v172, 127
      %v174 = vcvt.s32.f32 %v173
      %v175 = vrcp.pop 10.0
      %v176 = vmul.f32 %v174, %v175
      %v177 = vfloor.f32 %v176
      %v178 = vmul.f32 %v177, 10.0
      %v179 = vsub.f32 %v174, %v178
      %vm180 = vcmp.ge.f32.partialorder %v177, 1.0
      %vm181 = vcmp.lt.f32.partialorder %v177, 9.0
      %vm182 = vmand %vm180, %vm181
      %vm183 = vcmp.ge.f32.partialorder %v179, 1.0
      %vm184 = vmand %vm182, %vm183
      %vm185 = vcmp.lt.f32.partialorder %v179, 9.0
      %vm186 = vmand %vm184, %vm185
      %v187 = vld [vmem:[%s165] sm:$0xff]
      %v188 = vld [vmem:[%s165 + $0x8] sm:$0xf]
      %v189 = vld [vmem:[%s165 + $0xc] sm:$0xff]
      %v190 = vld [vmem:[%s165 + $0x14] sm:$0xf]
      %v191 = vld [vmem:[%s165 + $0x18] sm:$0xff]
      %v192 = vld [vmem:[%s165 + $0x20] sm:$0xf]
      %v193 = vld [vmem:[%s165 + $0x24] sm:$0xff]
      %v194 = vld [vmem:[%s165 + $0x2c] sm:$0xf]
      %v199 = vunpack.c.l.b16 %v187
      %v200 = vunpack.c.h.b16 %v187
      %v201 = vunpack.c.l.b16 %v189
      %v202 = vunpack.c.h.b16 %v189
      %v203 = vunpack.c.l.b16 %v191
      %v204 = vunpack.c.h.b16 %v191
      %v205 = vunpack.c.l.b16 %v193
      %v206 = vunpack.c.h.b16 %v193
      %v207 = vpack.c.b16 %v201, %v199
      %v208 = vpack.c.b16 %v202, %v200
      %v209 = vpack.c.b16 %v205, %v203
      %v210 = vpack.c.b16 %v206, %v204
      %211 = vrot.lane.b32.xlu0 %v207, 127
      %v212 = vpop.permute.xlu0 %211
      %213 = vrot.lane.b32.xlu0 %v208, 127
      %v214 = vpop.permute.xlu0 %213
      %215 = vrot.lane.b32.xlu0 %v209, 127
      %v216 = vpop.permute.xlu0 %215
      %217 = vrot.lane.b32.xlu0 %v210, 127
      %v218 = vpop.permute.xlu0 %217
      %vm219 = vcmask 1039360
      %v220 = vsel %vm219, %v212, %v214
      %v221 = vsel %vm219, %v216, %v218
      %222 = vrot.lane.b32.xlu0 %v207, 126
      %v223 = vpop.permute.xlu0 %222
      %224 = vrot.lane.b32.xlu0 %v208, 126
      %v225 = vpop.permute.xlu0 %224
      %226 = vrot.lane.b32.xlu0 %v209, 126
      %v227 = vpop.permute.xlu0 %226
      %228 = vrot.lane.b32.xlu0 %v210, 126
      %v229 = vpop.permute.xlu0 %228
      %vm230 = vcmask 1031168
      %v231 = vsel %vm230, %v223, %v225
      %v232 = vsel %vm230, %v227, %v229
      %233 = vrot.lane.b32.xlu0 %v207, 118
      %v234 = vpop.permute.xlu0 %233
      %235 = vrot.lane.b32.xlu0 %v208, 118
      %v236 = vpop.permute.xlu0 %235
      %237 = vrot.lane.b32.xlu0 %v209, 118
      %v238 = vpop.permute.xlu0 %237
      %239 = vrot.lane.b32.xlu0 %v210, 118
      %v240 = vpop.permute.xlu0 %239
      %vm241 = vcmask 965632
      %v242 = vsel %vm241, %v234, %v236
      %v243 = vsel %vm241, %v238, %v240
      %244 = vrot.lane.b32.xlu0 %v208, 117
      %v245 = vpop.permute.xlu0 %244
      %246 = vrot.lane.b32.xlu0 %v210, 117
      %v247 = vpop.permute.xlu0 %246
      %v252 = vunpack.c.l.b16 %v188
      %v253 = vunpack.c.l.b16 %v190
      %v254 = vunpack.c.l.b16 %v192
      %v255 = vunpack.c.l.b16 %v194
      %v256 = vpack.c.b16 %v253, %v252
      %v257 = vpack.c.b16 %v255, %v254
      %258 = vrot.lane.b32.xlu0 %v208, 116
      %v259 = vpop.permute.xlu0 %258
      %260 = vrot.lane.b32.xlu0 %v256, 116
      %v261 = vpop.permute.xlu0 %260
      %262 = vrot.lane.b32.xlu0 %v210, 116
      %v263 = vpop.permute.xlu0 %262
      %264 = vrot.lane.b32.xlu0 %v257, 116
      %v265 = vpop.permute.xlu0 %264
      %vm266 = vcmask 949248
      %v267 = vsel %vm266, %v259, %v261
      %v268 = vsel %vm266, %v263, %v265
      %269 = vrot.lane.b32.xlu0 %v208, 108
      %v270 = vpop.permute.xlu0 %269
      %271 = vrot.lane.b32.xlu0 %v256, 108
      %v272 = vpop.permute.xlu0 %271
      %273 = vrot.lane.b32.xlu0 %v210, 108
      %v274 = vpop.permute.xlu0 %273
      %275 = vrot.lane.b32.xlu0 %v257, 108
      %v276 = vpop.permute.xlu0 %275
      %vm277 = vcmask 883712
      %v278 = vsel %vm277, %v270, %v272
      %v279 = vsel %vm277, %v274, %v276
      %280 = vrot.lane.b32.xlu0 %v208, 107
      %v281 = vpop.permute.xlu0 %280
      %282 = vrot.lane.b32.xlu0 %v256, 107
      %v283 = vpop.permute.xlu0 %282
      %284 = vrot.lane.b32.xlu0 %v210, 107
      %v285 = vpop.permute.xlu0 %284
      %286 = vrot.lane.b32.xlu0 %v257, 107
      %v287 = vpop.permute.xlu0 %286
      %vm288 = vcmask 875520
      %v289 = vsel %vm288, %v281, %v283
      %v290 = vsel %vm288, %v285, %v287
      %291 = vrot.lane.b32.xlu0 %v208, 106
      %v292 = vpop.permute.xlu0 %291
      %293 = vrot.lane.b32.xlu0 %v256, 106
      %v294 = vpop.permute.xlu0 %293
      %295 = vrot.lane.b32.xlu0 %v210, 106
      %v296 = vpop.permute.xlu0 %295
      %297 = vrot.lane.b32.xlu0 %v257, 106
      %v298 = vpop.permute.xlu0 %297
      %vm299 = vcmask 867328
      %v300 = vsel %vm299, %v292, %v294
      %v301 = vsel %vm299, %v296, %v298
      %v302 = vld [vmem:[%s1] sm:$0xff]
      %v303 = vld [vmem:[%s1 + $0x8] sm:$0xf]
      %v304 = vld [vmem:[%s1 + $0xc] sm:$0xff]
      %v305 = vld [vmem:[%s1 + $0x14] sm:$0xf]
      %v306 = vld [vmem:[%s1 + $0x18] sm:$0xff]
      %v307 = vld [vmem:[%s1 + $0x20] sm:$0xf]
      %v308 = vld [vmem:[%s1 + $0x24] sm:$0xff]
      %v309 = vld [vmem:[%s1 + $0x2c] sm:$0xf]
      %v318 = vunpack.c.l.b16 %v302
      %v319 = vunpack.c.h.b16 %v302
      %v320 = vunpack.c.l.b16 %v303
      %v321 = vunpack.c.l.b16 %v304
      %v322 = vunpack.c.h.b16 %v304
      %v323 = vunpack.c.l.b16 %v305
      %v324 = vunpack.c.l.b16 %v306
      %v325 = vunpack.c.h.b16 %v306
      %v326 = vunpack.c.l.b16 %v307
      %v327 = vunpack.c.l.b16 %v308
      %v328 = vunpack.c.h.b16 %v308
      %v329 = vunpack.c.l.b16 %v309
      %v330 = vpack.c.b16 %v321, %v318
      %v331 = vpack.c.b16 %v322, %v319
      %v332 = vpack.c.b16 %v323, %v320
      %v333 = vpack.c.b16 %v327, %v324
      %v334 = vpack.c.b16 %v328, %v325
      %v335 = vpack.c.b16 %v329, %v326
      %340 = vrot.lane.b32.xlu0 %v207, 11
      %v341 = vpop.permute.xlu0 %340
      %342 = vrot.lane.b32.xlu0 %v208, 11
      %v343 = vpop.permute.xlu0 %342
      %344 = vrot.lane.b32.xlu0 %v209, 11
      %v345 = vpop.permute.xlu0 %344
      %346 = vrot.lane.b32.xlu0 %v210, 11
      %v347 = vpop.permute.xlu0 %346
      %348 = vrot.lane.b32.xlu0 %v220, 11
      %v349 = vpop.permute.xlu0 %348
      %350 = vrot.lane.b32.xlu0 %v214, 11
      %v351 = vpop.permute.xlu0 %350
      %352 = vrot.lane.b32.xlu0 %v221, 11
      %v353 = vpop.permute.xlu0 %352
      %354 = vrot.lane.b32.xlu0 %v218, 11
      %v355 = vpop.permute.xlu0 %354
      %356 = vrot.lane.b32.xlu0 %v231, 11
      %v357 = vpop.permute.xlu0 %356
      %358 = vrot.lane.b32.xlu0 %v225, 11
      %v359 = vpop.permute.xlu0 %358
      %360 = vrot.lane.b32.xlu0 %v232, 11
      %v361 = vpop.permute.xlu0 %360
      %362 = vrot.lane.b32.xlu0 %v229, 11
      %v363 = vpop.permute.xlu0 %362
      %364 = vrot.lane.b32.xlu0 %v242, 11
      %v365 = vpop.permute.xlu0 %364
      %366 = vrot.lane.b32.xlu0 %v236, 11
      %v367 = vpop.permute.xlu0 %366
      %368 = vrot.lane.b32.xlu0 %v243, 11
      %v369 = vpop.permute.xlu0 %368
      %370 = vrot.lane.b32.xlu0 %v240, 11
      %v371 = vpop.permute.xlu0 %370
      %372 = vrot.lane.b32.xlu0 %v245, 11
      %v373 = vpop.permute.xlu0 %372
      %374 = vrot.lane.b32.xlu0 %v247, 11
      %v375 = vpop.permute.xlu0 %374
      %376 = vrot.lane.b32.xlu0 %v259, 11
      %v377 = vpop.permute.xlu0 %376
      %378 = vrot.lane.b32.xlu0 %v267, 11
      %v379 = vpop.permute.xlu0 %378
      %380 = vrot.lane.b32.xlu0 %v263, 11
      %v381 = vpop.permute.xlu0 %380
      %382 = vrot.lane.b32.xlu0 %v268, 11
      %v383 = vpop.permute.xlu0 %382
      %384 = vrot.lane.b32.xlu0 %v270, 11
      %v385 = vpop.permute.xlu0 %384
      %386 = vrot.lane.b32.xlu0 %v278, 11
      %v387 = vpop.permute.xlu0 %386
      %388 = vrot.lane.b32.xlu0 %v274, 11
      %v389 = vpop.permute.xlu0 %388
      %390 = vrot.lane.b32.xlu0 %v279, 11
      %v391 = vpop.permute.xlu0 %390
      %392 = vrot.lane.b32.xlu0 %v281, 11
      %v393 = vpop.permute.xlu0 %392
      %394 = vrot.lane.b32.xlu0 %v289, 11
      %v395 = vpop.permute.xlu0 %394
      %396 = vrot.lane.b32.xlu0 %v285, 11
      %v397 = vpop.permute.xlu0 %396
      %398 = vrot.lane.b32.xlu0 %v290, 11
      %v399 = vpop.permute.xlu0 %398
      %400 = vrot.lane.b32.xlu0 %v292, 11
      %v401 = vpop.permute.xlu0 %400
      %402 = vrot.lane.b32.xlu0 %v300, 11
      %v403 = vpop.permute.xlu0 %402
      %404 = vrot.lane.b32.xlu0 %v296, 11
      %v405 = vpop.permute.xlu0 %404
      %406 = vrot.lane.b32.xlu0 %v301, 11
      %v407 = vpop.permute.xlu0 %406
      %vm408 = vcmask 89088
      %v409 = vsel %vm408, %v341, %v343
      %v410 = vsel %vm408, %v345, %v347
      %v411 = vsel %vm408, %v349, %v351
      %v412 = vsel %vm408, %v353, %v355
      %v413 = vsel %vm408, %v357, %v359
      %v414 = vsel %vm408, %v361, %v363
      %v415 = vsel %vm408, %v365, %v367
      %v416 = vsel %vm408, %v369, %v371
      %v417 = vsel %vm408, %v377, %v379
      %v418 = vsel %vm408, %v381, %v383
      %v419 = vsel %vm408, %v385, %v387
      %v420 = vsel %vm408, %v389, %v391
      %v421 = vsel %vm408, %v393, %v395
      %v422 = vsel %vm408, %v397, %v399
      %v423 = vsel %vm408, %v401, %v403
      %v424 = vsel %vm408, %v405, %v407
      %vm443 = vcmask 261120
      %v445 = vsel %vm443, %v332, 0
      %v448 = vsel %vm443, %v335, 0
      %450 = vmatprep.subr.bf16.mxu0 0
      %451 = vmatpush1.bf16.msra.mxu0 %v409
      %452 = vmatprep.subr.bf16.mxu0 0
      %453 = vmatpush1.bf16.msra.mxu0 %v410
      %454 = vmatprep.subr.bf16.mxu0 0
      %455 = vmatpush1.bf16.msra.mxu0 %v411
      %456 = vmatprep.subr.bf16.mxu0 0
      %457 = vmatpush1.bf16.msra.mxu0 %v412
      %458 = vmatprep.subr.bf16.mxu0 0
      %459 = vmatpush1.bf16.msra.mxu0 %v413
      %460 = vmatprep.subr.bf16.mxu0 0
      %461 = vmatpush1.bf16.msra.mxu0 %v414
      %462 = vmatprep.subr.bf16.mxu0 0
      %463 = vmatpush1.bf16.msra.mxu0 %v415
      %464 = vmatprep.subr.bf16.mxu0 0
      %465 = vmatpush1.bf16.msra.mxu0 %v416
      %466 = vmatprep.subr.bf16.mxu0 0
      %467 = vmatpush1.bf16.msra.mxu0 %v373
      %468 = vmatprep.subr.bf16.mxu0 0
      %469 = vmatpush1.bf16.msra.mxu0 %v375
      %470 = vmatprep.subr.bf16.mxu0 0
      %471 = vmatpush1.bf16.msra.mxu0 %v417
      %472 = vmatprep.subr.bf16.mxu0 0
      %473 = vmatpush1.bf16.msra.mxu0 %v418
      %474 = vmatprep.subr.bf16.mxu0 0
      %475 = vmatpush1.bf16.msra.mxu0 %v419
      %476 = vmatprep.subr.bf16.mxu0 0
      %477 = vmatpush1.bf16.msra.mxu0 %v420
      %478 = vmatprep.subr.bf16.mxu0 0
      %479 = vmatpush1.bf16.msra.mxu0 %v421
      %480 = vmatprep.subr.bf16.mxu0 0
      %481 = vmatpush1.bf16.msra.mxu0 %v422
      %482 = vmatprep.mubr.bf16.mxu0 %v331
      %483 = vmatmul.mubr.bf16.gmra.mrb[0].mxu0 %v330
      %v484 = vpop.f32.mrb[0].mxu0
      %v485 = vadd.f32 0.0, %v484
      %v486 = vpop.f32.mrb[0].mxu0
      %v487 = vpop.f32.mrb[0].mxu0
      %v488 = vadd.f32 0.0, %v487
      %v489 = vpop.f32.mrb[0].mxu0
      %490 = vmatprep.mubr.bf16.mxu0 %v334
      %491 = vmatmul.mubr.bf16.gmra.mrb[0].mxu0 %v333
      %v492 = vpop.f32.mrb[0].mxu0
      %v493 = vadd.f32 0.0, %v492
      %v494 = vpop.f32.mrb[0].mxu0
      %v495 = vpop.f32.mrb[0].mxu0
      %v496 = vadd.f32 0.0, %v495
      %v497 = vpop.f32.mrb[0].mxu0
      %498 = vdwg.mxu0
      %499 = vmatprep.subr.bf16.mxu0 0
      %500 = vmatpush1.bf16.msra.mxu0 %v423
      %501 = vmatprep.subr.bf16.mxu0 0
      %502 = vmatpush1.bf16.msra.mxu0 %v424
      %503 = vmatprep.subr.bf16.mxu0 0
      %504 = vmatpush1.bf16.msra.mxu0 0
      %505 = vmatprep.subr.bf16.mxu0 0
      %506 = vmatpush1.bf16.msra.mxu0 0
      %507 = vmatprep.subr.bf16.mxu0 0
      %508 = vmatpush1.bf16.msra.mxu0 0
      %509 = vmatprep.subr.bf16.mxu0 0
      %510 = vmatpush1.bf16.msra.mxu0 0
      %511 = vmatprep.subr.bf16.mxu0 0
      %512 = vmatpush1.bf16.msra.mxu0 0
      %513 = vmatprep.subr.bf16.mxu0 0
      %514 = vmatpush1.bf16.msra.mxu0 0
      %515 = vmatprep.subr.bf16.mxu0 0
      %516 = vmatpush1.bf16.msra.mxu0 0
      %517 = vmatprep.subr.bf16.mxu0 0
      %518 = vmatpush1.bf16.msra.mxu0 0
      %519 = vmatprep.subr.bf16.mxu0 0
      %520 = vmatpush1.bf16.msra.mxu0 0
      %521 = vmatprep.subr.bf16.mxu0 0
      %522 = vmatpush1.bf16.msra.mxu0 0
      %523 = vmatprep.subr.bf16.mxu0 0
      %524 = vmatpush1.bf16.msra.mxu0 0
      %525 = vmatprep.subr.bf16.mxu0 0
      %526 = vmatpush1.bf16.msra.mxu0 0
      %527 = vmatprep.subr.bf16.mxu0 0
      %528 = vmatpush1.bf16.msra.mxu0 0
      %529 = vmatprep.subr.bf16.mxu0 0
      %530 = vmatpush1.bf16.msra.mxu0 0
      %531 = vmatprep.mubr.bf16.mxu0 0
      %532 = vmatmul.mubr.bf16.gmra.mrb[0].mxu0 %v445
      %v533 = vpop.f32.mrb[0].mxu0
      %v534 = vadd.f32 %v485, %v533
      %v535 = vpop.f32.mrb[0].mxu0
      %v536 = vpop.f32.mrb[0].mxu0
      %v537 = vadd.f32 %v488, %v536
      %v538 = vpop.f32.mrb[0].mxu0
      %539 = vmatprep.mubr.bf16.mxu0 0
      %540 = vmatmul.mubr.bf16.gmra.mrb[0].mxu0 %v448
      %v541 = vpop.f32.mrb[0].mxu0
      %v542 = vadd.f32 %v493, %v541
      %v543 = vpop.f32.mrb[0].mxu0
      %v544 = vpop.f32.mrb[0].mxu0
      %v545 = vadd.f32 %v496, %v544
      %v546 = vpop.f32.mrb[0].mxu0
      %547 = vdwg.mxu0
      %v548 = vld [vmem:[%s2] sm:$0xff]
      %v549 = vld [vmem:[%s2 + $0x8] sm:$0xff]
      %v550 = vld [vmem:[%s2 + $0x10] sm:$0xff]
      %v551 = vld [vmem:[%s2 + $0x18] sm:$0xff]
      %553 = vset.pattern.permute.xlu0 0
      %554 = vperm.xlu0 %553, %v548
      %v555 = vpop.permute.xlu0 %554
      %558 = vset.pattern.permute.xlu0 0
      %559 = vperm.xlu0 %558, %v549
      %v560 = vpop.permute.xlu0 %559
      %563 = vset.pattern.permute.xlu0 0
      %564 = vperm.xlu0 %563, %v550
      %v565 = vpop.permute.xlu0 %564
      %568 = vset.pattern.permute.xlu0 0
      %569 = vperm.xlu0 %568, %v551
      %v570 = vpop.permute.xlu0 %569
      %v572 = vmul.f32 %v534, %v555
      %v573 = vmul.f32 %v537, %v560
      %v574 = vmul.f32 %v542, %v565
      %v575 = vmul.f32 %v545, %v570
      %576 = vset.pattern.permute.xlu0 1
      %577 = vperm.xlu0 %576, %v548
      %v578 = vpop.permute.xlu0 %577
      %580 = vset.pattern.permute.xlu0 1
      %581 = vperm.xlu0 %580, %v549
      %v582 = vpop.permute.xlu0 %581
      %584 = vset.pattern.permute.xlu0 1
      %585 = vperm.xlu0 %584, %v550
      %v586 = vpop.permute.xlu0 %585
      %588 = vset.pattern.permute.xlu0 1
      %589 = vperm.xlu0 %588, %v551
      %v590 = vpop.permute.xlu0 %589
      %v592 = vadd.f32 %v572, %v578
      %v593 = vadd.f32 %v573, %v582
      %v594 = vadd.f32 %v574, %v586
      %v595 = vadd.f32 %v575, %v590
      %v596 = vmax.f32 %v592, 0.0
      %v597 = vmax.f32 %v593, 0.0
      %v598 = vmax.f32 %v594, 0.0
      %v599 = vmax.f32 %v595, 0.0
      %v600 = vsel %vm186, 1, 0
      %vm601 = vcmp.eq.s32.totalorder %v600, 1
      %v602 = vsel %vm601, %v596, 0.0
      %v603 = vsel %vm601, %v597, 0.0
      %v604 = vsel %vm601, %v598, 0.0
      %v605 = vsel %vm601, %v599, 0.0
      %v606 = vpack.c.bf16 %v603, %v602
      %v607 = vpack.c.bf16 %v605, %v604
      %611 = vrot.lane.b32.xlu0 0, 127
      %v612 = vpop.permute.xlu0 %611
      %613 = vrot.lane.b32.xlu0 %v606, 127
      %v614 = vpop.permute.xlu0 %613
      %615 = vrot.lane.b32.xlu0 %v607, 127
      %v616 = vpop.permute.xlu0 %615
      %v617 = vsel %vm219, %v612, %v614
      %v618 = vsel %vm219, %v612, %v616
      %619 = vrot.lane.b32.xlu0 0, 126
      %v620 = vpop.permute.xlu0 %619
      %621 = vrot.lane.b32.xlu0 %v606, 126
      %v622 = vpop.permute.xlu0 %621
      %623 = vrot.lane.b32.xlu0 %v607, 126
      %v624 = vpop.permute.xlu0 %623
      %v625 = vsel %vm230, %v620, %v622
      %v626 = vsel %vm230, %v620, %v624
      %627 = vrot.lane.b32.xlu0 0, 118
      %v628 = vpop.permute.xlu0 %627
      %629 = vrot.lane.b32.xlu0 %v606, 118
      %v630 = vpop.permute.xlu0 %629
      %631 = vrot.lane.b32.xlu0 %v607, 118
      %v632 = vpop.permute.xlu0 %631
      %v633 = vsel %vm241, %v628, %v630
      %v634 = vsel %vm241, %v628, %v632
      %635 = vrot.lane.b32.xlu0 %v606, 117
      %v636 = vpop.permute.xlu0 %635
      %637 = vrot.lane.b32.xlu0 %v607, 117
      %v638 = vpop.permute.xlu0 %637
      %639 = vrot.lane.b32.xlu0 %v606, 116
      %v640 = vpop.permute.xlu0 %639
      %641 = vrot.lane.b32.xlu0 0, 116
      %v642 = vpop.permute.xlu0 %641
      %643 = vrot.lane.b32.xlu0 %v607, 116
      %v644 = vpop.permute.xlu0 %643
      %v645 = vsel %vm266, %v640, %v642
      %v646 = vsel %vm266, %v644, %v642
      %647 = vrot.lane.b32.xlu0 %v606, 108
      %v648 = vpop.permute.xlu0 %647
      %649 = vrot.lane.b32.xlu0 0, 108
      %v650 = vpop.permute.xlu0 %649
      %651 = vrot.lane.b32.xlu0 %v607, 108
      %v652 = vpop.permute.xlu0 %651
      %v653 = vsel %vm277, %v648, %v650
      %v654 = vsel %vm277, %v652, %v650
      %655 = vrot.lane.b32.xlu0 %v606, 107
      %v656 = vpop.permute.xlu0 %655
      %657 = vrot.lane.b32.xlu0 0, 107
      %v658 = vpop.permute.xlu0 %657
      %659 = vrot.lane.b32.xlu0 %v607, 107
      %v660 = vpop.permute.xlu0 %659
      %v661 = vsel %vm288, %v656, %v658
      %v662 = vsel %vm288, %v660, %v658
      %663 = vrot.lane.b32.xlu0 %v606, 106
      %v664 = vpop.permute.xlu0 %663
      %665 = vrot.lane.b32.xlu0 0, 106
      %v666 = vpop.permute.xlu0 %665
      %667 = vrot.lane.b32.xlu0 %v607, 106
      %v668 = vpop.permute.xlu0 %667
      %v669 = vsel %vm299, %v664, %v666
      %v670 = vsel %vm299, %v668, %v666
      %s671 = scalar_lea.vmem %s1, 48
      %v672 = vld [vmem:[%s671] sm:$0xff]
      %v673 = vld [vmem:[%s671 + $0x8] sm:$0xf]
      %v674 = vld [vmem:[%s671 + $0xc] sm:$0xff]
      %v675 = vld [vmem:[%s671 + $0x14] sm:$0xf]
      %v676 = vld [vmem:[%s671 + $0x18] sm:$0xff]
      %v677 = vld [vmem:[%s671 + $0x20] sm:$0xf]
      %v678 = vld [vmem:[%s671 + $0x24] sm:$0xff]
      %v679 = vld [vmem:[%s671 + $0x2c] sm:$0xf]
      %v688 = vunpack.c.l.b16 %v672
      %v689 = vunpack.c.h.b16 %v672
      %v690 = vunpack.c.l.b16 %v673
      %v691 = vunpack.c.l.b16 %v674
      %v692 = vunpack.c.h.b16 %v674
      %v693 = vunpack.c.l.b16 %v675
      %v694 = vunpack.c.l.b16 %v676
      %v695 = vunpack.c.h.b16 %v676
      %v696 = vunpack.c.l.b16 %v677
      %v697 = vunpack.c.l.b16 %v678
      %v698 = vunpack.c.h.b16 %v678
      %v699 = vunpack.c.l.b16 %v679
      %v700 = vpack.c.b16 %v691, %v688
      %v701 = vpack.c.b16 %v692, %v689
      %v702 = vpack.c.b16 %v693, %v690
      %v703 = vpack.c.b16 %v697, %v694
      %v704 = vpack.c.b16 %v698, %v695
      %v705 = vpack.c.b16 %v699, %v696
      %710 = vrot.lane.b32.xlu0 0, 11
      %v711 = vpop.permute.xlu0 %710
      %712 = vrot.lane.b32.xlu0 %v606, 11
      %v713 = vpop.permute.xlu0 %712
      %714 = vrot.lane.b32.xlu0 %v607, 11
      %v715 = vpop.permute.xlu0 %714
      %716 = vrot.lane.b32.xlu0 %v617, 11
      %v717 = vpop.permute.xlu0 %716
      %718 = vrot.lane.b32.xlu0 %v614, 11
      %v719 = vpop.permute.xlu0 %718
      %720 = vrot.lane.b32.xlu0 %v618, 11
      %v721 = vpop.permute.xlu0 %720
      %722 = vrot.lane.b32.xlu0 %v616, 11
      %v723 = vpop.permute.xlu0 %722
      %724 = vrot.lane.b32.xlu0 %v625, 11
      %v725 = vpop.permute.xlu0 %724
      %726 = vrot.lane.b32.xlu0 %v622, 11
      %v727 = vpop.permute.xlu0 %726
      %728 = vrot.lane.b32.xlu0 %v626, 11
      %v729 = vpop.permute.xlu0 %728
      %730 = vrot.lane.b32.xlu0 %v624, 11
      %v731 = vpop.permute.xlu0 %730
      %732 = vrot.lane.b32.xlu0 %v633, 11
      %v733 = vpop.permute.xlu0 %732
      %734 = vrot.lane.b32.xlu0 %v630, 11
      %v735 = vpop.permute.xlu0 %734
      %736 = vrot.lane.b32.xlu0 %v634, 11
      %v737 = vpop.permute.xlu0 %736
      %738 = vrot.lane.b32.xlu0 %v632, 11
      %v739 = vpop.permute.xlu0 %738
      %740 = vrot.lane.b32.xlu0 %v636, 11
      %v741 = vpop.permute.xlu0 %740
      %742 = vrot.lane.b32.xlu0 %v638, 11
      %v743 = vpop.permute.xlu0 %742
      %744 = vrot.lane.b32.xlu0 %v640, 11
      %v745 = vpop.permute.xlu0 %744
      %746 = vrot.lane.b32.xlu0 %v645, 11
      %v747 = vpop.permute.xlu0 %746
      %748 = vrot.lane.b32.xlu0 %v644, 11
      %v749 = vpop.permute.xlu0 %748
      %750 = vrot.lane.b32.xlu0 %v646, 11
      %v751 = vpop.permute.xlu0 %750
      %752 = vrot.lane.b32.xlu0 %v648, 11
      %v753 = vpop.permute.xlu0 %752
      %754 = vrot.lane.b32.xlu0 %v653, 11
      %v755 = vpop.permute.xlu0 %754
      %756 = vrot.lane.b32.xlu0 %v652, 11
      %v757 = vpop.permute.xlu0 %756
      %758 = vrot.lane.b32.xlu0 %v654, 11
      %v759 = vpop.permute.xlu0 %758
      %760 = vrot.lane.b32.xlu0 %v656, 11
      %v761 = vpop.permute.xlu0 %760
      %762 = vrot.lane.b32.xlu0 %v661, 11
      %v763 = vpop.permute.xlu0 %762
      %764 = vrot.lane.b32.xlu0 %v660, 11
      %v765 = vpop.permute.xlu0 %764
      %766 = vrot.lane.b32.xlu0 %v662, 11
      %v767 = vpop.permute.xlu0 %766
      %768 = vrot.lane.b32.xlu0 %v664, 11
      %v769 = vpop.permute.xlu0 %768
      %770 = vrot.lane.b32.xlu0 %v669, 11
      %v771 = vpop.permute.xlu0 %770
      %772 = vrot.lane.b32.xlu0 %v668, 11
      %v773 = vpop.permute.xlu0 %772
      %774 = vrot.lane.b32.xlu0 %v670, 11
      %v775 = vpop.permute.xlu0 %774
      %v776 = vsel %vm408, %v711, %v713
      %v777 = vsel %vm408, %v711, %v715
      %v778 = vsel %vm408, %v717, %v719
      %v779 = vsel %vm408, %v721, %v723
      %v780 = vsel %vm408, %v725, %v727
      %v781 = vsel %vm408, %v729, %v731
      %v782 = vsel %vm408, %v733, %v735
      %v783 = vsel %vm408, %v737, %v739
      %v784 = vsel %vm408, %v745, %v747
      %v785 = vsel %vm408, %v749, %v751
      %v786 = vsel %vm408, %v753, %v755
      %v787 = vsel %vm408, %v757, %v759
      %v788 = vsel %vm408, %v761, %v763
      %v789 = vsel %vm408, %v765, %v767
      %v790 = vsel %vm408, %v769, %v771
      %v791 = vsel %vm408, %v773, %v775
      %v811 = vsel %vm443, %v702, 0
      %v814 = vsel %vm443, %v705, 0
      %816 = vmatprep.subr.bf16.mxu0 0
      %817 = vmatpush1.bf16.msra.mxu0 %v776
      %818 = vmatprep.subr.bf16.mxu0 0
      %819 = vmatpush1.bf16.msra.mxu0 %v777
      %820 = vmatprep.subr.bf16.mxu0 0
      %821 = vmatpush1.bf16.msra.mxu0 %v778
      %822 = vmatprep.subr.bf16.mxu0 0
      %823 = vmatpush1.bf16.msra.mxu0 %v779
      %824 = vmatprep.subr.bf16.mxu0 0
      %825 = vmatpush1.bf16.msra.mxu0 %v780
      %826 = vmatprep.subr.bf16.mxu0 0
      %827 = vmatpush1.bf16.msra.mxu0 %v781
      %828 = vmatprep.subr.bf16.mxu0 0
      %829 = vmatpush1.bf16.msra.mxu0 %v782
      %830 = vmatprep.subr.bf16.mxu0 0
      %831 = vmatpush1.bf16.msra.mxu0 %v783
      %832 = vmatprep.subr.bf16.mxu0 0
      %833 = vmatpush1.bf16.msra.mxu0 %v741
      %834 = vmatprep.subr.bf16.mxu0 0
      %835 = vmatpush1.bf16.msra.mxu0 %v743
      %836 = vmatprep.subr.bf16.mxu0 0
      %837 = vmatpush1.bf16.msra.mxu0 %v784
      %838 = vmatprep.subr.bf16.mxu0 0
      %839 = vmatpush1.bf16.msra.mxu0 %v785
      %840 = vmatprep.subr.bf16.mxu0 0
      %841 = vmatpush1.bf16.msra.mxu0 %v786
      %842 = vmatprep.subr.bf16.mxu0 0
      %843 = vmatpush1.bf16.msra.mxu0 %v787
      %844 = vmatprep.subr.bf16.mxu0 0
      %845 = vmatpush1.bf16.msra.mxu0 %v788
      %846 = vmatprep.subr.bf16.mxu0 0
      %847 = vmatpush1.bf16.msra.mxu0 %v789
      %848 = vmatprep.mubr.bf16.mxu0 %v701
      %849 = vmatmul.mubr.bf16.gmra.mrb[0].mxu0 %v700
      %v850 = vpop.f32.mrb[0].mxu0
      %v851 = vadd.f32 0.0, %v850
      %v852 = vpop.f32.mrb[0].mxu0
      %v853 = vpop.f32.mrb[0].mxu0
      %v854 = vadd.f32 0.0, %v853
      %v855 = vpop.f32.mrb[0].mxu0
      %856 = vmatprep.mubr.bf16.mxu0 %v704
      %857 = vmatmul.mubr.bf16.gmra.mrb[0].mxu0 %v703
      %v858 = vpop.f32.mrb[0].mxu0
      %v859 = vadd.f32 0.0, %v858
      %v860 = vpop.f32.mrb[0].mxu0
      %v861 = vpop.f32.mrb[0].mxu0
      %v862 = vadd.f32 0.0, %v861
      %v863 = vpop.f32.mrb[0].mxu0
      %864 = vdwg.mxu0
      %865 = vmatprep.subr.bf16.mxu0 0
      %866 = vmatpush1.bf16.msra.mxu0 %v790
      %867 = vmatprep.subr.bf16.mxu0 0
      %868 = vmatpush1.bf16.msra.mxu0 %v791
      %869 = vmatprep.subr.bf16.mxu0 0
      %870 = vmatpush1.bf16.msra.mxu0 0
      %871 = vmatprep.subr.bf16.mxu0 0
      %872 = vmatpush1.bf16.msra.mxu0 0
      %873 = vmatprep.subr.bf16.mxu0 0
      %874 = vmatpush1.bf16.msra.mxu0 0
      %875 = vmatprep.subr.bf16.mxu0 0
      %876 = vmatpush1.bf16.msra.mxu0 0
      %877 = vmatprep.subr.bf16.mxu0 0
      %878 = vmatpush1.bf16.msra.mxu0 0
      %879 = vmatprep.subr.bf16.mxu0 0
      %880 = vmatpush1.bf16.msra.mxu0 0
      %881 = vmatprep.subr.bf16.mxu0 0
      %882 = vmatpush1.bf16.msra.mxu0 0
      %883 = vmatprep.subr.bf16.mxu0 0
      %884 = vmatpush1.bf16.msra.mxu0 0
      %885 = vmatprep.subr.bf16.mxu0 0
      %886 = vmatpush1.bf16.msra.mxu0 0
      %887 = vmatprep.subr.bf16.mxu0 0
      %888 = vmatpush1.bf16.msra.mxu0 0
      %889 = vmatprep.subr.bf16.mxu0 0
      %890 = vmatpush1.bf16.msra.mxu0 0
      %891 = vmatprep.subr.bf16.mxu0 0
      %892 = vmatpush1.bf16.msra.mxu0 0
      %893 = vmatprep.subr.bf16.mxu0 0
      %894 = vmatpush1.bf16.msra.mxu0 0
      %895 = vmatprep.subr.bf16.mxu0 0
      %896 = vmatpush1.bf16.msra.mxu0 0
      %897 = vmatprep.mubr.bf16.mxu0 0
      %898 = vmatmul.mubr.bf16.gmra.mrb[0].mxu0 %v811
      %v899 = vpop.f32.mrb[0].mxu0
      %v900 = vadd.f32 %v851, %v899
      %v901 = vpop.f32.mrb[0].mxu0
      %v902 = vpop.f32.mrb[0].mxu0
      %v903 = vadd.f32 %v854, %v902
      %v904 = vpop.f32.mrb[0].mxu0
      %905 = vmatprep.mubr.bf16.mxu0 0
      %906 = vmatmul.mubr.bf16.gmra.mrb[0].mxu0 %v814
      %v907 = vpop.f32.mrb[0].mxu0
      %v908 = vadd.f32 %v859, %v907
      %v909 = vpop.f32.mrb[0].mxu0
      %v910 = vpop.f32.mrb[0].mxu0
      %v911 = vadd.f32 %v862, %v910
      %v912 = vpop.f32.mrb[0].mxu0
      %913 = vdwg.mxu0
      %s914 = scalar_lea.vmem %s2, 32
      %v915 = vld [vmem:[%s914] sm:$0xff]
      %v916 = vld [vmem:[%s914 + $0x8] sm:$0xff]
      %v917 = vld [vmem:[%s914 + $0x10] sm:$0xff]
      %v918 = vld [vmem:[%s914 + $0x18] sm:$0xff]
      %920 = vset.pattern.permute.xlu0 0
      %921 = vperm.xlu0 %920, %v915
      %v922 = vpop.permute.xlu0 %921
      %925 = vset.pattern.permute.xlu0 0
      %926 = vperm.xlu0 %925, %v916
      %v927 = vpop.permute.xlu0 %926
      %930 = vset.pattern.permute.xlu0 0
      %931 = vperm.xlu0 %930, %v917
      %v932 = vpop.permute.xlu0 %931
      %935 = vset.pattern.permute.xlu0 0
      %936 = vperm.xlu0 %935, %v918
      %v937 = vpop.permute.xlu0 %936
      %v939 = vmul.f32 %v900, %v922
      %v940 = vmul.f32 %v903, %v927
      %v941 = vmul.f32 %v908, %v932
      %v942 = vmul.f32 %v911, %v937
      %943 = vset.pattern.permute.xlu0 1
      %944 = vperm.xlu0 %943, %v915
      %v945 = vpop.permute.xlu0 %944
      %947 = vset.pattern.permute.xlu0 1
      %948 = vperm.xlu0 %947, %v916
      %v949 = vpop.permute.xlu0 %948
      %951 = vset.pattern.permute.xlu0 1
      %952 = vperm.xlu0 %951, %v917
      %v953 = vpop.permute.xlu0 %952
      %955 = vset.pattern.permute.xlu0 1
      %956 = vperm.xlu0 %955, %v918
      %v957 = vpop.permute.xlu0 %956
      %v959 = vadd.f32 %v939, %v945
      %v960 = vadd.f32 %v940, %v949
      %v961 = vadd.f32 %v941, %v953
      %v962 = vadd.f32 %v942, %v957
      %v963 = vmax.f32 %v959, 0.0
      %v964 = vmax.f32 %v960, 0.0
      %v965 = vmax.f32 %v961, 0.0
      %v966 = vmax.f32 %v962, 0.0
      %v967 = vsel %vm601, %v963, 0.0
      %v968 = vsel %vm601, %v964, 0.0
      %v969 = vsel %vm601, %v965, 0.0
      %v970 = vsel %vm601, %v966, 0.0
      %v971 = vpack.c.bf16 %v968, %v967
      %v972 = vpack.c.bf16 %v970, %v969
      %v975 = vunpack.c.l.b16 0
      %v976 = vunpack.c.l.b16 %v971
      %v977 = vunpack.c.h.b16 0
      %v978 = vunpack.c.h.b16 %v971
      %v979 = vunpack.c.l.b16 %v972
      %v980 = vunpack.c.h.b16 %v972
      %v981 = vpack.c.b16 %v976, %v975
      %v982 = vpack.c.b16 %v975, %v975
      %v983 = vpack.c.b16 %v978, %v977
      %v984 = vpack.c.b16 %v977, %v977
      %v985 = vpack.c.b16 %v979, %v975
      %v986 = vpack.c.b16 %v980, %v977
      %993 = vst [vmem:[%s170] sm:$0xff] %v981
      %994 = vst [vmem:[%s170 + $0x8] sm:$0xf] %v982
      %995 = vst [vmem:[%s170 + $0xc] sm:$0xff] %v983
      %996 = vst [vmem:[%s170 + $0x14] sm:$0xf] %v984
      %997 = vst [vmem:[%s170 + $0x18] sm:$0xff] %v985
      %998 = vst [vmem:[%s170 + $0x20] sm:$0xf] %v982
      %999 = vst [vmem:[%s170 + $0x24] sm:$0xff] %v986
      %1000 = vst [vmem:[%s170 + $0x2c] sm:$0xf] %v984
      %p1001 = scmp.lt.s32.totalorder %s14, 1
      %s1002 = scalar_select %p1001, %s14, 1
      %s1003 = smul.addr %s1002, 12
      %s1004 = smul.addr %s1003, 4
      %s1005 = scalar_lea.vmem %s3, %s1004
      // Predicated region
      $region33: #{a_call__.8} parent=31 // pred_check
        %p1006 = pneg %p100
      $region34: #{a_call__.8} parent=31 // pred_check_branch
        %1008 = sbr.rel (%p1006) target = $region36
      $region35: #{a_call__.8} parent=31 // pred_region
        _
      $region36: #{a_call__.8} parent=31 // pred_fallthru
        _
    $region32: #{a_call__.8} parent=5 // pred_fallthru
      _
    %p1009 = scmp.le.s32.totalorder 2, %s9
    // Predicated region
    $region37: #{a_call__.8} parent=5 // pred_check
      %p1010 = pneg %p1009
    $region38: #{a_call__.8} parent=5 // pred_check_branch
      %1012 = sbr.rel (%p1010) target = $region40
    $region39: #{a_call__.8} parent=5 // pred_region
      %s1013 = ssub.s32 %s9, 2
      // Predicated region
      $region41: #{a_call__.8} parent=39 // pred_check
        %p1014 = pneg %p106
      $region42: #{a_call__.8} parent=39 // pred_check_branch
        %1016 = sbr.rel (%p1014) target = $region44
      $region43: #{a_call__.8} parent=39 // pred_region
        %p1017 = scmp.lt.s32.totalorder %s15, 1
        %s1018 = scalar_select %p1017, %s15, 1
        %s1019 = smul.addr %s1018, 12
        %s1020 = smul.addr %s1019, 4
        %s1021 = scalar_lea.vmem %s3, %s1020
      $region44: #{a_call__.8} parent=39 // pred_fallthru
        _
    $region40: #{a_call__.8} parent=5 // pred_fallthru
      _
  $region6: #{a_call__.8} parent=0 // loop_footer
    %s13 = sadd.s32 1, %s9
  $region7: #{a_call__.8} parent=0 // loop_footer_branch
    %8 = sbr.rel target = $region3
  $region8: #{a_call__.8} parent=0 // loop_exit
    _

// kernel: a_call__.9
$region0: #{a_call__.9}
  #allocation0 [shape = 'u32[]', space=smem, size = 0x4, offset = 0x4, fixed_abs, tag = 'smem constant byte address 0x4 - core index']
  #allocation1 [shape = 'u32[144,128]{1,0:T(1,128)}', space=vmem, size = 0x12000, scoped, tag = 'internal scratch']
  %s0 = inlined_call_operand.vmem [shape: bf16[2,16,640], index: 0, kind: input, shape index: {}]
  %s1 = inlined_call_operand.vmem [shape: bf16[2,16,144], index: 1, kind: input, shape index: {}]
  %s2 = inlined_call_operand.vmem [shape: f32[2,16,2], index: 2, kind: input, shape index: {}]
  %s3 = inlined_call_operand.vmem [shape: bf16[2,16,640], index: 3, kind: output, shape index: {}]
  %s4 = sld [smem:[#allocation0]]
  $region45: #{a_call__.9} parent=0
    _
  %s6 = ssub.s32 1, %s4
  %s7 = scalar_select 0, %s6, %s4
  loop: start=0, step=1, limit=4
  $region2: #{a_call__.9} parent=0 // loop_pre_header
    _
  $region3: #{a_call__.9} parent=0 // loop_header
    %s9 = sphi 0, %s13
    %p10 = scmp.ge.s32.totalorder %s9, 4
    %s19 = sphi 0, %s21
    %s22 = sphi 0, %s19
    %s23 = sphi 0, %s22
    %s39 = sphi 0, %s23
    %s43 = sphi 0, %s43
    %s45 = sphi 0, %s43
    %s46 = sphi 0, %s45
    %s60 = sphi 0, %s46
    %s64 = sphi 0, %s64
    %s66 = sphi 0, %s64
    %s67 = sphi 0, %s66
    %s81 = sphi 0, %s67
    %s87 = sphi 0, %s89
    %s90 = sphi 0, %s87
    %s91 = sphi 0, %s90
    %s107 = sphi 0, %s91
  $region4: #{a_call__.9} parent=0 // loop_header_branch
    %12 = sbr.rel (%p10) target = $region8
  $region5: #{a_call__.9} parent=0 // loop_body
    %s14 = ssub.s32 %s9, 1
    %s15 = ssub.s32 %s9, 2
    %s16 = sadd.s32 %s9, 1
    %s17 = ssub.s32 %s9, %s16
    %p18 = scmp.eq.s32.totalorder %s17, 0
    %s20 = sadd.s32 %s19, 1
    %s21 = scalar_select %p18, %s19, %s20
    %p24 = pneg %p18
    %p25 = scmp.eq.s32.totalorder %s9, 1
    %p26 = por %p24, %p25
    %p27 = scmp.ne.s32.totalorder %s19, %s22
    %p28 = scmp.eq.s32.totalorder %s9, 0
    %p29 = por %p27, %p28
    %p30 = scmp.ne.s32.totalorder %s19, %s22
    %p31 = scmp.eq.s32.totalorder %s14, 1
    %p32 = por %p30, %p31
    %p33 = scmp.ne.s32.totalorder %s22, %s23
    %p34 = scmp.eq.s32.totalorder %s14, 0
    %p35 = por %p33, %p34
    %p36 = scmp.ne.s32.totalorder %s22, %s23
    %p37 = scmp.eq.s32.totalorder %s15, 1
    %p38 = por %p36, %p37
    %p40 = scmp.ne.s32.totalorder %s23, %s39
    %p41 = scmp.eq.s32.totalorder %s15, 0
    %p42 = por %p40, %p41
    %s44 = sadd.s32 %s43, 1
    %p47 = scmp.eq.s32.totalorder %s9, 1
    %p48 = scmp.ne.s32.totalorder %s43, %s45
    %p49 = scmp.eq.s32.totalorder %s9, 0
    %p50 = por %p48, %p49
    %p51 = scmp.ne.s32.totalorder %s43, %s45
    %p52 = scmp.eq.s32.totalorder %s14, 1
    %p53 = por %p51, %p52
    %p54 = scmp.ne.s32.totalorder %s45, %s46
    %p55 = scmp.eq.s32.totalorder %s14, 0
    %p56 = por %p54, %p55
    %p57 = scmp.ne.s32.totalorder %s45, %s46
    %p58 = scmp.eq.s32.totalorder %s15, 1
    %p59 = por %p57, %p58
    %p61 = scmp.ne.s32.totalorder %s46, %s60
    %p62 = scmp.eq.s32.totalorder %s15, 0
    %p63 = por %p61, %p62
    %s65 = sadd.s32 %s64, 1
    %p68 = scmp.eq.s32.totalorder %s9, 1
    %p69 = scmp.ne.s32.totalorder %s64, %s66
    %p70 = scmp.eq.s32.totalorder %s9, 0
    %p71 = por %p69, %p70
    %p72 = scmp.ne.s32.totalorder %s64, %s66
    %p73 = scmp.eq.s32.totalorder %s14, 1
    %p74 = por %p72, %p73
    %p75 = scmp.ne.s32.totalorder %s66, %s67
    %p76 = scmp.eq.s32.totalorder %s14, 0
    %p77 = por %p75, %p76
    %p78 = scmp.ne.s32.totalorder %s66, %s67
    %p79 = scmp.eq.s32.totalorder %s15, 1
    %p80 = por %p78, %p79
    %p82 = scmp.ne.s32.totalorder %s67, %s81
    %p83 = scmp.eq.s32.totalorder %s15, 0
    %p84 = por %p82, %p83
    %s85 = ssub.s32 %s9, %s16
    %p86 = scmp.eq.s32.totalorder %s85, 0
    %s88 = sadd.s32 %s87, 1
    %s89 = scalar_select %p86, %s87, %s88
    %p92 = pneg %p86
    %p93 = scmp.eq.s32.totalorder %s9, 1
    %p94 = por %p92, %p93
    %p95 = scmp.ne.s32.totalorder %s87, %s90
    %p96 = scmp.eq.s32.totalorder %s9, 0
    %p97 = por %p95, %p96
    %p98 = scmp.ne.s32.totalorder %s87, %s90
    %p99 = scmp.eq.s32.totalorder %s14, 1
    %p100 = por %p98, %p99
    %p101 = scmp.ne.s32.totalorder %s90, %s91
    %p102 = scmp.eq.s32.totalorder %s14, 0
    %p103 = por %p101, %p102
    %p104 = scmp.ne.s32.totalorder %s90, %s91
    %p105 = scmp.eq.s32.totalorder %s15, 1
    %p106 = por %p104, %p105
    %p108 = scmp.ne.s32.totalorder %s91, %s107
    %p109 = scmp.eq.s32.totalorder %s15, 0
    %p110 = por %p108, %p109
    %p111 = scmp.le.s32.totalorder 1, %s9
    %p112 = scmp.lt.s32.totalorder %s9, 3
    %p113 = pnand %p111, %p112
    %p114 = pneg %p113
    // Predicated region
    $region9: #{a_call__.9} parent=5 // pred_check
      _
    $region10: #{a_call__.9} parent=5 // pred_check_branch
      %116 = sbr.rel (%p113) target = $region12
    $region11: #{a_call__.9} parent=5 // pred_region
      %s117 = ssub.s32 %s9, 1
      // Predicated region
      $region13: #{a_call__.9} parent=11 // pred_check
        %p118 = pneg %p56
      $region14: #{a_call__.9} parent=11 // pred_check_branch
        %120 = sbr.rel (%p118) target = $region16
      $region15: #{a_call__.9} parent=11 // pred_region
        _
      $region16: #{a_call__.9} parent=11 // pred_fallthru
        _
      // Predicated region
      $region17: #{a_call__.9} parent=11 // pred_check
        %p121 = pneg %p77
      $region18: #{a_call__.9} parent=11 // pred_check_branch
        %123 = sbr.rel (%p121) target = $region20
      $region19: #{a_call__.9} parent=11 // pred_region
        _
      $region20: #{a_call__.9} parent=11 // pred_fallthru
        _
    $region12: #{a_call__.9} parent=5 // pred_fallthru
      _
    %p124 = scmp.lt.s32.totalorder %s9, 2
    // Predicated region
    $region21: #{a_call__.9} parent=5 // pred_check
      %p125 = pneg %p124
    $region22: #{a_call__.9} parent=5 // pred_check_branch
      %127 = sbr.rel (%p125) target = $region24
    $region23: #{a_call__.9} parent=5 // pred_region
      // Predicated region
      $region25: #{a_call__.9} parent=23 // pred_check
        %p128 = pneg %p29
      $region26: #{a_call__.9} parent=23 // pred_check_branch
        %130 = sbr.rel (%p128) target = $region28
      $region27: #{a_call__.9} parent=23 // pred_region
        %p131 = scmp.lt.s32.totalorder %s9, 1
        %s132 = scalar_select %p131, %s9, 1
        %s133 = smul.addr %s132, 10
        %s134 = smul.addr %s133, 4
        %s135 = scalar_lea.vmem %s0, %s134
      $region28: #{a_call__.9} parent=23 // pred_fallthru
        _
    $region24: #{a_call__.9} parent=5 // pred_fallthru
      _
    %p136 = scmp.le.s32.totalorder 1, %s9
    %p137 = scmp.lt.s32.totalorder %s9, 3
    %p138 = pnand %p136, %p137
    %p139 = pneg %p138
    // Predicated region
    $region29: #{a_call__.9} parent=5 // pred_check
      _
    $region30: #{a_call__.9} parent=5 // pred_check_branch
      %141 = sbr.rel (%p138) target = $region32
    $region31: #{a_call__.9} parent=5 // pred_region
      %s142 = ssub.s32 %s9, 1
      %p143 = scmp.lt.s32.totalorder %s14, 1
      %s144 = scalar_select %p143, %s14, 1
      %s145 = smul.addr %s144, 10
      %s146 = smul.addr %s145, 4
      %s147 = scalar_lea.vmem %s0, %s146
      %p148 = pneg %p35
      %p149 = pneg %p32
      %p150 = pneg %p56
      %p151 = pneg %p53
      %p152 = pneg %p77
      %p153 = pneg %p74
      %p154 = pneg %p103
      %p155 = pneg %p100
      %p156 = scmp.lt.s32.totalorder %s14, 1
      %s157 = scalar_select %p156, %s14, 1
      %s158 = smul.addr %s157, 10
      %s159 = smul.addr %s158, 4
      %s160 = scalar_lea.vmem %s3, %s159
      %p161 = scmp.lt.s32.totalorder %s14, 1
      %s162 = scalar_select %p161, %s14, 1
      %s163 = smul.addr %s162, 10
      %s164 = smul.addr %s163, 4
      %s165 = scalar_lea.vmem %s0, %s164
      %p166 = scmp.lt.s32.totalorder %s14, 1
      %s167 = scalar_select %p166, %s14, 1
      %s168 = smul.addr %s167, 10
      %s169 = smul.addr %s168, 4
      %s170 = scalar_lea.vmem %s3, %s169
      %v172 = vlaneseq
      %v173 = vand.u32 %v172, 127
      %v174 = vadd.s32 %v173, 128
      %v175 = vadd.s32 %v173, 256
      %v176 = vcvt.s32.f32 %v173
      %v177 = vcvt.s32.f32 %v174
      %v178 = vcvt.s32.f32 %v175
      %v179 = vrcp.pop 18.0
      %v180 = vmul.f32 %v176, %v179
      %v181 = vmul.f32 %v177, %v179
      %v182 = vmul.f32 %v178, %v179
      %v183 = vfloor.f32 %v180
      %v184 = vfloor.f32 %v181
      %v185 = vfloor.f32 %v182
      %v186 = vmul.f32 %v183, 18.0
      %v187 = vmul.f32 %v184, 18.0
      %v188 = vmul.f32 %v185, 18.0
      %v189 = vsub.f32 %v176, %v186
      %v190 = vsub.f32 %v177, %v187
      %v191 = vsub.f32 %v178, %v188
      %vm192 = vcmp.ge.f32.partialorder %v183, 1.0
      %vm193 = vcmp.ge.f32.partialorder %v184, 1.0
      %vm194 = vcmp.ge.f32.partialorder %v185, 1.0
      %vm195 = vcmp.lt.f32.partialorder %v183, 17.0
      %vm196 = vcmp.lt.f32.partialorder %v184, 17.0
      %vm197 = vcmp.lt.f32.partialorder %v185, 17.0
      %vm198 = vmand %vm192, %vm195
      %vm199 = vmand %vm193, %vm196
      %vm200 = vmand %vm194, %vm197
      %vm201 = vcmp.ge.f32.partialorder %v189, 1.0
      %vm202 = vcmp.ge.f32.partialorder %v190, 1.0
      %vm203 = vcmp.ge.f32.partialorder %v191, 1.0
      %vm204 = vmand %vm198, %vm201
      %vm205 = vmand %vm199, %vm202
      %vm206 = vmand %vm200, %vm203
      %vm207 = vcmp.lt.f32.partialorder %v189, 17.0
      %vm208 = vcmp.lt.f32.partialorder %v190, 17.0
      %vm209 = vcmp.lt.f32.partialorder %v191, 17.0
      %vm210 = vmand %vm204, %vm207
      %vm211 = vmand %vm205, %vm208
      %vm212 = vmand %vm206, %vm209
      %v213 = vld [vmem:[%s165] sm:$0xff]
      %v214 = vld [vmem:[%s165 + $0x8] sm:$0xff]
      %v215 = vld [vmem:[%s165 + $0x10] sm:$0xf]
      %v216 = vld [vmem:[%s165 + $0x14] sm:$0xff]
      %v217 = vld [vmem:[%s165 + $0x1c] sm:$0xff]
      %v218 = vld [vmem:[%s165 + $0x24] sm:$0xf]
      %v223 = vunpack.c.l.b16 %v213
      %v224 = vunpack.c.h.b16 %v213
      %v225 = vunpack.c.l.b16 %v214
      %v226 = vunpack.c.h.b16 %v214
      %v227 = vunpack.c.l.b16 %v216
      %v228 = vunpack.c.h.b16 %v216
      %v229 = vunpack.c.l.b16 %v217
      %v230 = vunpack.c.h.b16 %v217
      %v231 = vpack.c.b16 %v227, %v223
      %v232 = vpack.c.b16 %v228, %v224
      %v233 = vpack.c.b16 %v229, %v225
      %v234 = vpack.c.b16 %v230, %v226
      %235 = vrot.lane.b32.xlu0 %v231, 127
      %v236 = vpop.permute.xlu0 %235
      %237 = vrot.lane.b32.xlu0 %v232, 127
      %v238 = vpop.permute.xlu0 %237
      %239 = vrot.lane.b32.xlu0 %v233, 127
      %v240 = vpop.permute.xlu0 %239
      %241 = vrot.lane.b32.xlu0 %v234, 127
      %v242 = vpop.permute.xlu0 %241
      %vm243 = vcmask 1039360
      %v244 = vsel %vm243, %v236, %v238
      %v245 = vsel %vm243, %v238, %v240
      %v246 = vsel %vm243, %v240, %v242
      %247 = vrot.lane.b32.xlu0 %v231, 126
      %v248 = vpop.permute.xlu0 %247
      %249 = vrot.lane.b32.xlu0 %v232, 126
      %v250 = vpop.permute.xlu0 %249
      %251 = vrot.lane.b32.xlu0 %v233, 126
      %v252 = vpop.permute.xlu0 %251
      %253 = vrot.lane.b32.xlu0 %v234, 126
      %v254 = vpop.permute.xlu0 %253
      %vm255 = vcmask 1031168
      %v256 = vsel %vm255, %v248, %v250
      %v257 = vsel %vm255, %v250, %v252
      %v258 = vsel %vm255, %v252, %v254
      %259 = vrot.lane.b32.xlu0 %v231, 110
      %v260 = vpop.permute.xlu0 %259
      %261 = vrot.lane.b32.xlu0 %v232, 110
      %v262 = vpop.permute.xlu0 %261
      %263 = vrot.lane.b32.xlu0 %v233, 110
      %v264 = vpop.permute.xlu0 %263
      %265 = vrot.lane.b32.xlu0 %v234, 110
      %v266 = vpop.permute.xlu0 %265
      %vm267 = vcmask 900096
      %v268 = vsel %vm267, %v260, %v262
      %v269 = vsel %vm267, %v262, %v264
      %v270 = vsel %vm267, %v264, %v266
      %271 = vrot.lane.b32.xlu0 %v232, 109
      %v272 = vpop.permute.xlu0 %271
      %273 = vrot.lane.b32.xlu0 %v233, 109
      %v274 = vpop.permute.xlu0 %273
      %275 = vrot.lane.b32.xlu0 %v234, 109
      %v276 = vpop.permute.xlu0 %275
      %vm277 = vcmask 891904
      %v278 = vsel %vm277, %v272, %v274
      %v279 = vsel %vm277, %v274, %v276
      %v282 = vunpack.c.l.b16 %v215
      %v283 = vunpack.c.l.b16 %v218
      %v284 = vpack.c.b16 %v283, %v282
      %285 = vrot.lane.b32.xlu0 %v232, 108
      %v286 = vpop.permute.xlu0 %285
      %287 = vrot.lane.b32.xlu0 %v233, 108
      %v288 = vpop.permute.xlu0 %287
      %289 = vrot.lane.b32.xlu0 %v234, 108
      %v290 = vpop.permute.xlu0 %289
      %291 = vrot.lane.b32.xlu0 %v284, 108
      %v292 = vpop.permute.xlu0 %291
      %vm293 = vcmask 883712
      %v294 = vsel %vm293, %v286, %v288
      %v295 = vsel %vm293, %v288, %v290
      %v296 = vsel %vm293, %v290, %v292
      %297 = vrot.lane.b32.xlu0 %v232, 92
      %v298 = vpop.permute.xlu0 %297
      %299 = vrot.lane.b32.xlu0 %v233, 92
      %v300 = vpop.permute.xlu0 %299
      %301 = vrot.lane.b32.xlu0 %v234, 92
      %v302 = vpop.permute.xlu0 %301
      %303 = vrot.lane.b32.xlu0 %v284, 92
      %v304 = vpop.permute.xlu0 %303
      %vm305 = vcmask 752640
      %v306 = vsel %vm305, %v298, %v300
      %v307 = vsel %vm305, %v300, %v302
      %v308 = vsel %vm305, %v302, %v304
      %309 = vrot.lane.b32.xlu0 %v232, 91
      %v310 = vpop.permute.xlu0 %309
      %311 = vrot.lane.b32.xlu0 %v233, 91
      %v312 = vpop.permute.xlu0 %311
      %313 = vrot.lane.b32.xlu0 %v234, 91
      %v314 = vpop.permute.xlu0 %313
      %315 = vrot.lane.b32.xlu0 %v284, 91
      %v316 = vpop.permute.xlu0 %315
      %vm317 = vcmask 744448
      %v318 = vsel %vm317, %v310, %v312
      %v319 = vsel %vm317, %v312, %v314
      %v320 = vsel %vm317, %v314, %v316
      %321 = vrot.lane.b32.xlu0 %v232, 90
      %v322 = vpop.permute.xlu0 %321
      %323 = vrot.lane.b32.xlu0 %v233, 90
      %v324 = vpop.permute.xlu0 %323
      %325 = vrot.lane.b32.xlu0 %v234, 90
      %v326 = vpop.permute.xlu0 %325
      %327 = vrot.lane.b32.xlu0 %v284, 90
      %v328 = vpop.permute.xlu0 %327
      %vm329 = vcmask 736256
      %v330 = vsel %vm329, %v322, %v324
      %v331 = vsel %vm329, %v324, %v326
      %v332 = vsel %vm329, %v326, %v328
      %v333 = vld [vmem:[%s1] sm:$0xff]
      %v334 = vld [vmem:[%s1 + $0x8] sm:$0xff]
      %v337 = vunpack.c.l.b16 %v333
      %v338 = vunpack.c.h.b16 %v333
      %v339 = vunpack.c.l.b16 %v334
      %v340 = vunpack.c.h.b16 %v334
      %v341 = vpack.c.b16 %v339, %v337
      %v342 = vpack.c.b16 %v340, %v338
      %344 = vrot.lane.b32.xlu0 %v231, 19
      %v345 = vpop.permute.xlu0 %344
      %346 = vrot.lane.b32.xlu0 %v232, 19
      %v347 = vpop.permute.xlu0 %346
      %348 = vrot.lane.b32.xlu0 %v233, 19
      %v349 = vpop.permute.xlu0 %348
      %350 = vrot.lane.b32.xlu0 %v234, 19
      %v351 = vpop.permute.xlu0 %350
      %352 = vrot.lane.b32.xlu0 %v244, 19
      %v353 = vpop.permute.xlu0 %352
      %354 = vrot.lane.b32.xlu0 %v245, 19
      %v355 = vpop.permute.xlu0 %354
      %356 = vrot.lane.b32.xlu0 %v246, 19
      %v357 = vpop.permute.xlu0 %356
      %358 = vrot.lane.b32.xlu0 %v242, 19
      %v359 = vpop.permute.xlu0 %358
      %360 = vrot.lane.b32.xlu0 %v256, 19
      %v361 = vpop.permute.xlu0 %360
      %362 = vrot.lane.b32.xlu0 %v257, 19
      %v363 = vpop.permute.xlu0 %362
      %364 = vrot.lane.b32.xlu0 %v258, 19
      %v365 = vpop.permute.xlu0 %364
      %366 = vrot.lane.b32.xlu0 %v254, 19
      %v367 = vpop.permute.xlu0 %366
      %368 = vrot.lane.b32.xlu0 %v268, 19
      %v369 = vpop.permute.xlu0 %368
      %370 = vrot.lane.b32.xlu0 %v269, 19
      %v371 = vpop.permute.xlu0 %370
      %372 = vrot.lane.b32.xlu0 %v270, 19
      %v373 = vpop.permute.xlu0 %372
      %374 = vrot.lane.b32.xlu0 %v266, 19
      %v375 = vpop.permute.xlu0 %374
      %376 = vrot.lane.b32.xlu0 %v272, 19
      %v377 = vpop.permute.xlu0 %376
      %378 = vrot.lane.b32.xlu0 %v278, 19
      %v379 = vpop.permute.xlu0 %378
      %380 = vrot.lane.b32.xlu0 %v279, 19
      %v381 = vpop.permute.xlu0 %380
      %382 = vrot.lane.b32.xlu0 %v276, 19
      %v383 = vpop.permute.xlu0 %382
      %384 = vrot.lane.b32.xlu0 %v286, 19
      %v385 = vpop.permute.xlu0 %384
      %386 = vrot.lane.b32.xlu0 %v294, 19
      %v387 = vpop.permute.xlu0 %386
      %388 = vrot.lane.b32.xlu0 %v295, 19
      %v389 = vpop.permute.xlu0 %388
      %390 = vrot.lane.b32.xlu0 %v296, 19
      %v391 = vpop.permute.xlu0 %390
      %392 = vrot.lane.b32.xlu0 %v298, 19
      %v393 = vpop.permute.xlu0 %392
      %394 = vrot.lane.b32.xlu0 %v306, 19
      %v395 = vpop.permute.xlu0 %394
      %396 = vrot.lane.b32.xlu0 %v307, 19
      %v397 = vpop.permute.xlu0 %396
      %398 = vrot.lane.b32.xlu0 %v308, 19
      %v399 = vpop.permute.xlu0 %398
      %400 = vrot.lane.b32.xlu0 %v310, 19
      %v401 = vpop.permute.xlu0 %400
      %402 = vrot.lane.b32.xlu0 %v318, 19
      %v403 = vpop.permute.xlu0 %402
      %404 = vrot.lane.b32.xlu0 %v319, 19
      %v405 = vpop.permute.xlu0 %404
      %406 = vrot.lane.b32.xlu0 %v320, 19
      %v407 = vpop.permute.xlu0 %406
      %408 = vrot.lane.b32.xlu0 %v322, 19
      %v409 = vpop.permute.xlu0 %408
      %410 = vrot.lane.b32.xlu0 %v330, 19
      %v411 = vpop.permute.xlu0 %410
      %412 = vrot.lane.b32.xlu0 %v331, 19
      %v413 = vpop.permute.xlu0 %412
      %414 = vrot.lane.b32.xlu0 %v332, 19
      %v415 = vpop.permute.xlu0 %414
      %vm416 = vcmask 154624
      %v417 = vsel %vm416, %v345, %v347
      %v418 = vsel %vm416, %v347, %v349
      %v419 = vsel %vm416, %v349, %v351
      %v420 = vsel %vm416, %v353, %v355
      %v421 = vsel %vm416, %v355, %v357
      %v422 = vsel %vm416, %v357, %v359
      %v423 = vsel %vm416, %v361, %v363
      %v424 = vsel %vm416, %v363, %v365
      %v425 = vsel %vm416, %v365, %v367
      %v426 = vsel %vm416, %v369, %v371
      %v427 = vsel %vm416, %v371, %v373
      %v428 = vsel %vm416, %v373, %v375
      %v429 = vsel %vm416, %v377, %v379
      %v430 = vsel %vm416, %v379, %v381
      %v431 = vsel %vm416, %v381, %v383
      %v432 = vsel %vm416, %v385, %v387
      %v433 = vsel %vm416, %v387, %v389
      %v434 = vsel %vm416, %v389, %v391
      %v435 = vsel %vm416, %v393, %v395
      %v436 = vsel %vm416, %v395, %v397
      %v437 = vsel %vm416, %v397, %v399
      %v438 = vsel %vm416, %v401, %v403
      %v439 = vsel %vm416, %v403, %v405
      %v440 = vsel %vm416, %v405, %v407
      %v441 = vsel %vm416, %v409, %v411
      %v442 = vsel %vm416, %v411, %v413
      %v443 = vsel %vm416, %v413, %v415
      %vm471 = vcmask 130048
      %v473 = vsel %vm471, %v342, 0
      %475 = vmatprep.subr.bf16.mxu0 %v418
      %476 = vmatpush1.bf16.msra.mxu0 %v417
      %477 = vmatprep.subr.bf16.mxu0 %v421
      %478 = vmatpush1.bf16.msra.mxu0 %v420
      %479 = vmatprep.subr.bf16.mxu0 %v424
      %480 = vmatpush1.bf16.msra.mxu0 %v423
      %481 = vmatprep.subr.bf16.mxu0 %v427
      %482 = vmatpush1.bf16.msra.mxu0 %v426
      %483 = vmatprep.subr.bf16.mxu0 %v430
      %484 = vmatpush1.bf16.msra.mxu0 %v429
      %485 = vmatprep.subr.bf16.mxu0 %v433
      %486 = vmatpush1.bf16.msra.mxu0 %v432
      %487 = vmatprep.subr.bf16.mxu0 %v436
      %488 = vmatpush1.bf16.msra.mxu0 %v435
      %489 = vmatprep.subr.bf16.mxu0 %v439
      %490 = vmatpush1.bf16.msra.mxu0 %v438
      %491 = vmatprep.subr.bf16.mxu0 %v442
      %492 = vmatpush1.bf16.msra.mxu0 %v441
      %493 = vmatprep.subr.bf16.mxu0 0
      %494 = vmatpush1.bf16.msra.mxu0 0
      %495 = vmatprep.subr.bf16.mxu0 0
      %496 = vmatpush1.bf16.msra.mxu0 0
      %497 = vmatprep.subr.bf16.mxu0 0
      %498 = vmatpush1.bf16.msra.mxu0 0
      %499 = vmatprep.subr.bf16.mxu0 0
      %500 = vmatpush1.bf16.msra.mxu0 0
      %501 = vmatprep.subr.bf16.mxu0 0
      %502 = vmatpush1.bf16.msra.mxu0 0
      %503 = vmatprep.subr.bf16.mxu0 0
      %504 = vmatpush1.bf16.msra.mxu0 0
      %505 = vmatprep.subr.bf16.mxu0 0
      %506 = vmatpush1.bf16.msra.mxu0 0
      %507 = vmatprep.mubr.bf16.mxu0 %v473
      %508 = vmatmul.mubr.bf16.gmra.mrb[0].mxu0 %v341
      %v509 = vpop.f32.mrb[0].mxu0
      %v510 = vadd.f32 0.0, %v509
      %v511 = vpop.f32.mrb[0].mxu0
      %v512 = vadd.f32 0.0, %v511
      %v513 = vpop.f32.mrb[0].mxu0
      %v514 = vadd.f32 0.0, %v513
      %v515 = vpop.f32.mrb[0].mxu0
      %v516 = vadd.f32 0.0, %v515
      %517 = vdwg.mxu0
      %518 = vmatprep.subr.bf16.mxu0 0
      %519 = vmatpush1.bf16.msra.mxu0 %v419
      %520 = vmatprep.subr.bf16.mxu0 0
      %521 = vmatpush1.bf16.msra.mxu0 %v422
      %522 = vmatprep.subr.bf16.mxu0 0
      %523 = vmatpush1.bf16.msra.mxu0 %v425
      %524 = vmatprep.subr.bf16.mxu0 0
      %525 = vmatpush1.bf16.msra.mxu0 %v428
      %526 = vmatprep.subr.bf16.mxu0 0
      %527 = vmatpush1.bf16.msra.mxu0 %v431
      %528 = vmatprep.subr.bf16.mxu0 0
      %529 = vmatpush1.bf16.msra.mxu0 %v434
      %530 = vmatprep.subr.bf16.mxu0 0
      %531 = vmatpush1.bf16.msra.mxu0 %v437
      %532 = vmatprep.subr.bf16.mxu0 0
      %533 = vmatpush1.bf16.msra.mxu0 %v440
      %534 = vmatprep.subr.bf16.mxu0 0
      %535 = vmatpush1.bf16.msra.mxu0 %v443
      %536 = vmatprep.subr.bf16.mxu0 0
      %537 = vmatpush1.bf16.msra.mxu0 0
      %538 = vmatprep.subr.bf16.mxu0 0
      %539 = vmatpush1.bf16.msra.mxu0 0
      %540 = vmatprep.subr.bf16.mxu0 0
      %541 = vmatpush1.bf16.msra.mxu0 0
      %542 = vmatprep.subr.bf16.mxu0 0
      %543 = vmatpush1.bf16.msra.mxu0 0
      %544 = vmatprep.subr.bf16.mxu0 0
      %545 = vmatpush1.bf16.msra.mxu0 0
      %546 = vmatprep.subr.bf16.mxu0 0
      %547 = vmatpush1.bf16.msra.mxu0 0
      %548 = vmatprep.subr.bf16.mxu0 0
      %549 = vmatpush1.bf16.msra.mxu0 0
      %550 = vmatprep.mubr.bf16.mxu0 %v473
      %551 = vmatmul.mubr.bf16.gmra.mrb[0].mxu0 %v341
      %v552 = vpop.f32.mrb[0].mxu0
      %v553 = vadd.f32 0.0, %v552
      %v554 = vpop.f32.mrb[0].mxu0
      %v555 = vpop.f32.mrb[0].mxu0
      %v556 = vadd.f32 0.0, %v555
      %v557 = vpop.f32.mrb[0].mxu0
      %558 = vdwg.mxu0
      %v559 = vld [vmem:[%s2] sm:$0xff]
      %v560 = vld [vmem:[%s2 + $0x8] sm:$0xff]
      %562 = vset.pattern.permute.xlu0 0
      %563 = vperm.xlu0 %562, %v559
      %v564 = vpop.permute.xlu0 %563
      %567 = vset.pattern.permute.xlu0 0
      %568 = vperm.xlu0 %567, %v560
      %v569 = vpop.permute.xlu0 %568
      %v571 = vmul.f32 %v510, %v564
      %v572 = vmul.f32 %v512, %v564
      %v573 = vmul.f32 %v553, %v564
      %v574 = vmul.f32 %v514, %v569
      %v575 = vmul.f32 %v516, %v569
      %v576 = vmul.f32 %v556, %v569
      %577 = vset.pattern.permute.xlu0 1
      %578 = vperm.xlu0 %577, %v559
      %v579 = vpop.permute.xlu0 %578
      %581 = vset.pattern.permute.xlu0 1
      %582 = vperm.xlu0 %581, %v560
      %v583 = vpop.permute.xlu0 %582
      %v585 = vadd.f32 %v571, %v579
      %v586 = vadd.f32 %v572, %v579
      %v587 = vadd.f32 %v573, %v579
      %v588 = vadd.f32 %v574, %v583
      %v589 = vadd.f32 %v575, %v583
      %v590 = vadd.f32 %v576, %v583
      %v591 = vmax.f32 %v585, 0.0
      %v592 = vmax.f32 %v586, 0.0
      %v593 = vmax.f32 %v587, 0.0
      %v594 = vmax.f32 %v588, 0.0
      %v595 = vmax.f32 %v589, 0.0
      %v596 = vmax.f32 %v590, 0.0
      %v597 = vsel %vm210, 1, 0
      %v598 = vsel %vm211, 1, 0
      %v599 = vsel %vm212, 1, 0
      %vm600 = vcmp.eq.s32.totalorder %v597, 1
      %vm601 = vcmp.eq.s32.totalorder %v598, 1
      %vm602 = vcmp.eq.s32.totalorder %v599, 1
      %v603 = vsel %vm600, %v591, 0.0
      %v604 = vsel %vm601, %v592, 0.0
      %v605 = vsel %vm602, %v593, 0.0
      %v606 = vsel %vm600, %v594, 0.0
      %v607 = vsel %vm601, %v595, 0.0
      %v608 = vsel %vm602, %v596, 0.0
      %v609 = vpack.c.bf16 %v606, %v603
      %v610 = vpack.c.bf16 %v607, %v604
      %v611 = vpack.c.bf16 %v608, %v605
      %616 = vrot.lane.b32.xlu0 0, 127
      %v617 = vpop.permute.xlu0 %616
      %618 = vrot.lane.b32.xlu0 %v609, 127
      %v619 = vpop.permute.xlu0 %618
      %620 = vrot.lane.b32.xlu0 %v610, 127
      %v621 = vpop.permute.xlu0 %620
      %622 = vrot.lane.b32.xlu0 %v611, 127
      %v623 = vpop.permute.xlu0 %622
      %v624 = vsel %vm243, %v617, %v619
      %v625 = vsel %vm243, %v619, %v621
      %v626 = vsel %vm243, %v621, %v623
      %627 = vrot.lane.b32.xlu0 0, 126
      %v628 = vpop.permute.xlu0 %627
      %629 = vrot.lane.b32.xlu0 %v609, 126
      %v630 = vpop.permute.xlu0 %629
      %631 = vrot.lane.b32.xlu0 %v610, 126
      %v632 = vpop.permute.xlu0 %631
      %633 = vrot.lane.b32.xlu0 %v611, 126
      %v634 = vpop.permute.xlu0 %633
      %v635 = vsel %vm255, %v628, %v630
      %v636 = vsel %vm255, %v630, %v632
      %v637 = vsel %vm255, %v632, %v634
      %638 = vrot.lane.b32.xlu0 0, 110
      %v639 = vpop.permute.xlu0 %638
      %640 = vrot.lane.b32.xlu0 %v609, 110
      %v641 = vpop.permute.xlu0 %640
      %642 = vrot.lane.b32.xlu0 %v610, 110
      %v643 = vpop.permute.xlu0 %642
      %644 = vrot.lane.b32.xlu0 %v611, 110
      %v645 = vpop.permute.xlu0 %644
      %v646 = vsel %vm267, %v639, %v641
      %v647 = vsel %vm267, %v641, %v643
      %v648 = vsel %vm267, %v643, %v645
      %649 = vrot.lane.b32.xlu0 %v609, 109
      %v650 = vpop.permute.xlu0 %649
      %651 = vrot.lane.b32.xlu0 %v610, 109
      %v652 = vpop.permute.xlu0 %651
      %653 = vrot.lane.b32.xlu0 %v611, 109
      %v654 = vpop.permute.xlu0 %653
      %v655 = vsel %vm277, %v650, %v652
      %v656 = vsel %vm277, %v652, %v654
      %657 = vrot.lane.b32.xlu0 %v609, 108
      %v658 = vpop.permute.xlu0 %657
      %659 = vrot.lane.b32.xlu0 %v610, 108
      %v660 = vpop.permute.xlu0 %659
      %661 = vrot.lane.b32.xlu0 %v611, 108
      %v662 = vpop.permute.xlu0 %661
      %663 = vrot.lane.b32.xlu0 0, 108
      %v664 = vpop.permute.xlu0 %663
      %v665 = vsel %vm293, %v658, %v660
      %v666 = vsel %vm293, %v660, %v662
      %v667 = vsel %vm293, %v662, %v664
      %668 = vrot.lane.b32.xlu0 %v609, 92
      %v669 = vpop.permute.xlu0 %668
      %670 = vrot.lane.b32.xlu0 %v610, 92
      %v671 = vpop.permute.xlu0 %670
      %672 = vrot.lane.b32.xlu0 %v611, 92
      %v673 = vpop.permute.xlu0 %672
      %674 = vrot.lane.b32.xlu0 0, 92
      %v675 = vpop.permute.xlu0 %674
      %v676 = vsel %vm305, %v669, %v671
      %v677 = vsel %vm305, %v671, %v673
      %v678 = vsel %vm305, %v673, %v675
      %679 = vrot.lane.b32.xlu0 %v609, 91
      %v680 = vpop.permute.xlu0 %679
      %681 = vrot.lane.b32.xlu0 %v610, 91
      %v682 = vpop.permute.xlu0 %681
      %683 = vrot.lane.b32.xlu0 %v611, 91
      %v684 = vpop.permute.xlu0 %683
      %685 = vrot.lane.b32.xlu0 0, 91
      %v686 = vpop.permute.xlu0 %685
      %v687 = vsel %vm317, %v680, %v682
      %v688 = vsel %vm317, %v682, %v684
      %v689 = vsel %vm317, %v684, %v686
      %690 = vrot.lane.b32.xlu0 %v609, 90
      %v691 = vpop.permute.xlu0 %690
      %692 = vrot.lane.b32.xlu0 %v610, 90
      %v693 = vpop.permute.xlu0 %692
      %694 = vrot.lane.b32.xlu0 %v611, 90
      %v695 = vpop.permute.xlu0 %694
      %696 = vrot.lane.b32.xlu0 0, 90
      %v697 = vpop.permute.xlu0 %696
      %v698 = vsel %vm329, %v691, %v693
      %v699 = vsel %vm329, %v693, %v695
      %v700 = vsel %vm329, %v695, %v697
      %s701 = scalar_lea.vmem %s1, 16
      %v702 = vld [vmem:[%s701] sm:$0xff]
      %v703 = vld [vmem:[%s701 + $0x8] sm:$0xff]
      %v706 = vunpack.c.l.b16 %v702
      %v707 = vunpack.c.h.b16 %v702
      %v708 = vunpack.c.l.b16 %v703
      %v709 = vunpack.c.h.b16 %v703
      %v710 = vpack.c.b16 %v708, %v706
      %v711 = vpack.c.b16 %v709, %v707
      %713 = vrot.lane.b32.xlu0 0, 19
      %v714 = vpop.permute.xlu0 %713
      %715 = vrot.lane.b32.xlu0 %v609, 19
      %v716 = vpop.permute.xlu0 %715
      %717 = vrot.lane.b32.xlu0 %v610, 19
      %v718 = vpop.permute.xlu0 %717
      %719 = vrot.lane.b32.xlu0 %v611, 19
      %v720 = vpop.permute.xlu0 %719
      %721 = vrot.lane.b32.xlu0 %v624, 19
      %v722 = vpop.permute.xlu0 %721
      %723 = vrot.lane.b32.xlu0 %v625, 19
      %v724 = vpop.permute.xlu0 %723
      %725 = vrot.lane.b32.xlu0 %v626, 19
      %v726 = vpop.permute.xlu0 %725
      %727 = vrot.lane.b32.xlu0 %v623, 19
      %v728 = vpop.permute.xlu0 %727
      %729 = vrot.lane.b32.xlu0 %v635, 19
      %v730 = vpop.permute.xlu0 %729
      %731 = vrot.lane.b32.xlu0 %v636, 19
      %v732 = vpop.permute.xlu0 %731
      %733 = vrot.lane.b32.xlu0 %v637, 19
      %v734 = vpop.permute.xlu0 %733
      %735 = vrot.lane.b32.xlu0 %v634, 19
      %v736 = vpop.permute.xlu0 %735
      %737 = vrot.lane.b32.xlu0 %v646, 19
      %v738 = vpop.permute.xlu0 %737
      %739 = vrot.lane.b32.xlu0 %v647, 19
      %v740 = vpop.permute.xlu0 %739
      %741 = vrot.lane.b32.xlu0 %v648, 19
      %v742 = vpop.permute.xlu0 %741
      %743 = vrot.lane.b32.xlu0 %v645, 19
      %v744 = vpop.permute.xlu0 %743
      %745 = vrot.lane.b32.xlu0 %v650, 19
      %v746 = vpop.permute.xlu0 %745
      %747 = vrot.lane.b32.xlu0 %v655, 19
      %v748 = vpop.permute.xlu0 %747
      %749 = vrot.lane.b32.xlu0 %v656, 19
      %v750 = vpop.permute.xlu0 %749
      %751 = vrot.lane.b32.xlu0 %v654, 19
      %v752 = vpop.permute.xlu0 %751
      %753 = vrot.lane.b32.xlu0 %v658, 19
      %v754 = vpop.permute.xlu0 %753
      %755 = vrot.lane.b32.xlu0 %v665, 19
      %v756 = vpop.permute.xlu0 %755
      %757 = vrot.lane.b32.xlu0 %v666, 19
      %v758 = vpop.permute.xlu0 %757
      %759 = vrot.lane.b32.xlu0 %v667, 19
      %v760 = vpop.permute.xlu0 %759
      %761 = vrot.lane.b32.xlu0 %v669, 19
      %v762 = vpop.permute.xlu0 %761
      %763 = vrot.lane.b32.xlu0 %v676, 19
      %v764 = vpop.permute.xlu0 %763
      %765 = vrot.lane.b32.xlu0 %v677, 19
      %v766 = vpop.permute.xlu0 %765
      %767 = vrot.lane.b32.xlu0 %v678, 19
      %v768 = vpop.permute.xlu0 %767
      %769 = vrot.lane.b32.xlu0 %v680, 19
      %v770 = vpop.permute.xlu0 %769
      %771 = vrot.lane.b32.xlu0 %v687, 19
      %v772 = vpop.permute.xlu0 %771
      %773 = vrot.lane.b32.xlu0 %v688, 19
      %v774 = vpop.permute.xlu0 %773
      %775 = vrot.lane.b32.xlu0 %v689, 19
      %v776 = vpop.permute.xlu0 %775
      %777 = vrot.lane.b32.xlu0 %v691, 19
      %v778 = vpop.permute.xlu0 %777
      %779 = vrot.lane.b32.xlu0 %v698, 19
      %v780 = vpop.permute.xlu0 %779
      %781 = vrot.lane.b32.xlu0 %v699, 19
      %v782 = vpop.permute.xlu0 %781
      %783 = vrot.lane.b32.xlu0 %v700, 19
      %v784 = vpop.permute.xlu0 %783
      %v785 = vsel %vm416, %v714, %v716
      %v786 = vsel %vm416, %v716, %v718
      %v787 = vsel %vm416, %v718, %v720
      %v788 = vsel %vm416, %v722, %v724
      %v789 = vsel %vm416, %v724, %v726
      %v790 = vsel %vm416, %v726, %v728
      %v791 = vsel %vm416, %v730, %v732
      %v792 = vsel %vm416, %v732, %v734
      %v793 = vsel %vm416, %v734, %v736
      %v794 = vsel %vm416, %v738, %v740
      %v795 = vsel %vm416, %v740, %v742
      %v796 = vsel %vm416, %v742, %v744
      %v797 = vsel %vm416, %v746, %v748
      %v798 = vsel %vm416, %v748, %v750
      %v799 = vsel %vm416, %v750, %v752
      %v800 = vsel %vm416, %v754, %v756
      %v801 = vsel %vm416, %v756, %v758
      %v802 = vsel %vm416, %v758, %v760
      %v803 = vsel %vm416, %v762, %v764
      %v804 = vsel %vm416, %v764, %v766
      %v805 = vsel %vm416, %v766, %v768
      %v806 = vsel %vm416, %v770, %v772
      %v807 = vsel %vm416, %v772, %v774
      %v808 = vsel %vm416, %v774, %v776
      %v809 = vsel %vm416, %v778, %v780
      %v810 = vsel %vm416, %v780, %v782
      %v811 = vsel %vm416, %v782, %v784
      %v840 = vsel %vm471, %v711, 0
      %842 = vmatprep.subr.bf16.mxu0 %v786
      %843 = vmatpush1.bf16.msra.mxu0 %v785
      %844 = vmatprep.subr.bf16.mxu0 %v789
      %845 = vmatpush1.bf16.msra.mxu0 %v788
      %846 = vmatprep.subr.bf16.mxu0 %v792
      %847 = vmatpush1.bf16.msra.mxu0 %v791
      %848 = vmatprep.subr.bf16.mxu0 %v795
      %849 = vmatpush1.bf16.msra.mxu0 %v794
      %850 = vmatprep.subr.bf16.mxu0 %v798
      %851 = vmatpush1.bf16.msra.mxu0 %v797
      %852 = vmatprep.subr.bf16.mxu0 %v801
      %853 = vmatpush1.bf16.msra.mxu0 %v800
      %854 = vmatprep.subr.bf16.mxu0 %v804
      %855 = vmatpush1.bf16.msra.mxu0 %v803
      %856 = vmatprep.subr.bf16.mxu0 %v807
      %857 = vmatpush1.bf16.msra.mxu0 %v806
      %858 = vmatprep.subr.bf16.mxu0 %v810
      %859 = vmatpush1.bf16.msra.mxu0 %v809
      %860 = vmatprep.subr.bf16.mxu0 0
      %861 = vmatpush1.bf16.msra.mxu0 0
      %862 = vmatprep.subr.bf16.mxu0 0
      %863 = vmatpush1.bf16.msra.mxu0 0
      %864 = vmatprep.subr.bf16.mxu0 0
      %865 = vmatpush1.bf16.msra.mxu0 0
      %866 = vmatprep.subr.bf16.mxu0 0
      %867 = vmatpush1.bf16.msra.mxu0 0
      %868 = vmatprep.subr.bf16.mxu0 0
      %869 = vmatpush1.bf16.msra.mxu0 0
      %870 = vmatprep.subr.bf16.mxu0 0
      %871 = vmatpush1.bf16.msra.mxu0 0
      %872 = vmatprep.subr.bf16.mxu0 0
      %873 = vmatpush1.bf16.msra.mxu0 0
      %874 = vmatprep.mubr.bf16.mxu0 %v840
      %875 = vmatmul.mubr.bf16.gmra.mrb[0].mxu0 %v710
      %v876 = vpop.f32.mrb[0].mxu0
      %v877 = vadd.f32 0.0, %v876
      %v878 = vpop.f32.mrb[0].mxu0
      %v879 = vadd.f32 0.0, %v878
      %v880 = vpop.f32.mrb[0].mxu0
      %v881 = vadd.f32 0.0, %v880
      %v882 = vpop.f32.mrb[0].mxu0
      %v883 = vadd.f32 0.0, %v882
      %884 = vdwg.mxu0
      %885 = vmatprep.subr.bf16.mxu0 0
      %886 = vmatpush1.bf16.msra.mxu0 %v787
      %887 = vmatprep.subr.bf16.mxu0 0
      %888 = vmatpush1.bf16.msra.mxu0 %v790
      %889 = vmatprep.subr.bf16.mxu0 0
      %890 = vmatpush1.bf16.msra.mxu0 %v793
      %891 = vmatprep.subr.bf16.mxu0 0
      %892 = vmatpush1.bf16.msra.mxu0 %v796
      %893 = vmatprep.subr.bf16.mxu0 0
      %894 = vmatpush1.bf16.msra.mxu0 %v799
      %895 = vmatprep.subr.bf16.mxu0 0
      %896 = vmatpush1.bf16.msra.mxu0 %v802
      %897 = vmatprep.subr.bf16.mxu0 0
      %898 = vmatpush1.bf16.msra.mxu0 %v805
      %899 = vmatprep.subr.bf16.mxu0 0
      %900 = vmatpush1.bf16.msra.mxu0 %v808
      %901 = vmatprep.subr.bf16.mxu0 0
      %902 = vmatpush1.bf16.msra.mxu0 %v811
      %903 = vmatprep.subr.bf16.mxu0 0
      %904 = vmatpush1.bf16.msra.mxu0 0
      %905 = vmatprep.subr.bf16.mxu0 0
      %906 = vmatpush1.bf16.msra.mxu0 0
      %907 = vmatprep.subr.bf16.mxu0 0
      %908 = vmatpush1.bf16.msra.mxu0 0
      %909 = vmatprep.subr.bf16.mxu0 0
      %910 = vmatpush1.bf16.msra.mxu0 0
      %911 = vmatprep.subr.bf16.mxu0 0
      %912 = vmatpush1.bf16.msra.mxu0 0
      %913 = vmatprep.subr.bf16.mxu0 0
      %914 = vmatpush1.bf16.msra.mxu0 0
      %915 = vmatprep.subr.bf16.mxu0 0
      %916 = vmatpush1.bf16.msra.mxu0 0
      %917 = vmatprep.mubr.bf16.mxu0 %v840
      %918 = vmatmul.mubr.bf16.gmra.mrb[0].mxu0 %v710
      %v919 = vpop.f32.mrb[0].mxu0
      %v920 = vadd.f32 0.0, %v919
      %v921 = vpop.f32.mrb[0].mxu0
      %v922 = vpop.f32.mrb[0].mxu0
      %v923 = vadd.f32 0.0, %v922
      %v924 = vpop.f32.mrb[0].mxu0
      %925 = vdwg.mxu0
      %s926 = scalar_lea.vmem %s2, 16
      %v927 = vld [vmem:[%s926] sm:$0xff]
      %v928 = vld [vmem:[%s926 + $0x8] sm:$0xff]
      %930 = vset.pattern.permute.xlu0 0
      %931 = vperm.xlu0 %930, %v927
      %v932 = vpop.permute.xlu0 %931
      %935 = vset.pattern.permute.xlu0 0
      %936 = vperm.xlu0 %935, %v928
      %v937 = vpop.permute.xlu0 %936
      %v939 = vmul.f32 %v877, %v932
      %v940 = vmul.f32 %v879, %v932
      %v941 = vmul.f32 %v920, %v932
      %v942 = vmul.f32 %v881, %v937
      %v943 = vmul.f32 %v883, %v937
      %v944 = vmul.f32 %v923, %v937
      %945 = vset.pattern.permute.xlu0 1
      %946 = vperm.xlu0 %945, %v927
      %v947 = vpop.permute.xlu0 %946
      %949 = vset.pattern.permute.xlu0 1
      %950 = vperm.xlu0 %949, %v928
      %v951 = vpop.permute.xlu0 %950
      %v953 = vadd.f32 %v939, %v947
      %v954 = vadd.f32 %v940, %v947
      %v955 = vadd.f32 %v941, %v947
      %v956 = vadd.f32 %v942, %v951
      %v957 = vadd.f32 %v943, %v951
      %v958 = vadd.f32 %v944, %v951
      %v959 = vsel %vm600, %v953, 0.0
      %v960 = vsel %vm601, %v954, 0.0
      %v961 = vsel %vm602, %v955, 0.0
      %v962 = vsel %vm600, %v956, 0.0
      %v963 = vsel %vm601, %v957, 0.0
      %v964 = vsel %vm602, %v958, 0.0
      %v965 = vpack.c.bf16 %v962, %v959
      %v966 = vpack.c.bf16 %v963, %v960
      %v967 = vpack.c.bf16 %v964, %v961
      %v971 = vunpack.c.l.b16 0
      %v972 = vunpack.c.l.b16 %v965
      %v973 = vunpack.c.l.b16 %v966
      %v974 = vunpack.c.l.b16 %v967
      %v975 = vunpack.c.h.b16 0
      %v976 = vunpack.c.h.b16 %v965
      %v977 = vunpack.c.h.b16 %v966
      %v978 = vunpack.c.h.b16 %v967
      %v979 = vpack.c.b16 %v972, %v971
      %v980 = vpack.c.b16 %v974, %v973
      %v981 = vpack.c.b16 %v971, %v971
      %v982 = vpack.c.b16 %v976, %v975
      %v983 = vpack.c.b16 %v978, %v977
      %v984 = vpack.c.b16 %v975, %v975
      %991 = vst [vmem:[%s170] sm:$0xff] %v979
      %992 = vst [vmem:[%s170 + $0x8] sm:$0xff] %v980
      %993 = vst [vmem:[%s170 + $0x10] sm:$0xf] %v981
      %994 = vst [vmem:[%s170 + $0x14] sm:$0xff] %v982
      %995 = vst [vmem:[%s170 + $0x1c] sm:$0xff] %v983
      %996 = vst [vmem:[%s170 + $0x24] sm:$0xf] %v984
      %p997 = scmp.lt.s32.totalorder %s14, 1
      %s998 = scalar_select %p997, %s14, 1
      %s999 = smul.addr %s998, 10
      %s1000 = smul.addr %s999, 4
      %s1001 = scalar_lea.vmem %s3, %s1000
      // Predicated region
      $region33: #{a_call__.9} parent=31 // pred_check
        %p1002 = pneg %p100
      $region34: #{a_call__.9} parent=31 // pred_check_branch
        %1004 = sbr.rel (%p1002) target = $region36
      $region35: #{a_call__.9} parent=31 // pred_region
        _
      $region36: #{a_call__.9} parent=31 // pred_fallthru
        _
    $region32: #{a_call__.9} parent=5 // pred_fallthru
      _
    %p1005 = scmp.le.s32.totalorder 2, %s9
    // Predicated region
    $region37: #{a_call__.9} parent=5 // pred_check
      %p1006 = pneg %p1005
    $region38: #{a_call__.9} parent=5 // pred_check_branch
      %1008 = sbr.rel (%p1006) target = $region40
    $region39: #{a_call__.9} parent=5 // pred_region
      %s1009 = ssub.s32 %s9, 2
      // Predicated region
      $region41: #{a_call__.9} parent=39 // pred_check
        %p1010 = pneg %p106
      $region42: #{a_call__.9} parent=39 // pred_check_branch
        %1012 = sbr.rel (%p1010) target = $region44
      $region43: #{a_call__.9} parent=39 // pred_region
        %p1013 = scmp.lt.s32.totalorder %s15, 1
        %s1014 = scalar_select %p1013, %s15, 1
        %s1015 = smul.addr %s1014, 10
        %s1016 = smul.addr %s1015, 4
        %s1017 = scalar_lea.vmem %s3, %s1016
      $region44: #{a_call__.9} parent=39 // pred_fallthru
        _
    $region40: #{a_call__.9} parent=5 // pred_fallthru
      _
  $region6: #{a_call__.9} parent=0 // loop_footer
    %s13 = sadd.s32 1, %s9
  $region7: #{a_call__.9} parent=0 // loop_footer_branch
    %8 = sbr.rel target = $region3
  $region8: #{a_call__.9} parent=0 // loop_exit
    _

</llo_original>
